<compile_context>
chip_gen: v7x
topology: tpu7x:2x2x1
jax: 0.10.0
libtpu: 0.0.40
codegen_flags: <defaults>
</compile_context>

<pallas_src>
import jax
import jax.numpy as jnp
from jax import lax
from jax.experimental import pallas as pl
from jax.experimental.pallas import tpu as pltpu


def _fused_unpool_kernel(x_ref, sph_ref, spa_ref, smap_ref, out_ref):
    """Fused sphere+spatial max-unpool scatter for one tile of rows.

    x_ref   : [TR, S]            values (kept in input dtype, no f32 widen)
    sph_ref : [TR, S]      int32 window-local sphere slot (valid slots in [0, ksph))
    spa_ref : [TR, ksph*S] int32 flat spatial target indices (chunk d -> chan 4v+d)
    smap_ref: [1, So]      int32 static map: output spatial pos o -> source pos s(o)
    out_ref : [TR, ksph*So]
    """
    TR, S = x_ref.shape
    So = smap_ref.shape[-1]
    ksph = spa_ref.shape[-1] // S

    xv = x_ref[...]                              # [TR, S]  input dtype
    iso = sph_ref[...]                           # [TR, S]  int32
    spa = spa_ref[...]                           # [TR, ksph*S] int32

    # 1) Source-space select of the winning chunk's spatial target (pure VPU,
    #    no lane movement), then pack (slot, target) into one comparison key.
    spa_sel = spa[:, 0:S]
    for d in range(1, ksph):                     # ksph is tiny & static
        spa_sel = jnp.where(iso == d, spa[:, d * S:(d + 1) * S], spa_sel)
    key = iso * So + spa_sel                     # [TR, S] int32

    # 2) Static window upsample S -> So lanes: only TWO lane-gathers per tile
    #    (was 2 + ksph data-driven gathers).
    idx = jnp.broadcast_to(smap_ref[...], (TR, So))       # cheap sublane splat
    x_up = jnp.take_along_axis(xv, idx, axis=1, mode="promise_in_bounds")
    k_up = jnp.take_along_axis(key, idx, axis=1, mode="promise_in_bounds")

    # 3) Compare against the static per-lane pattern (iota) and select.
    opos = lax.broadcasted_iota(jnp.int32, (TR, So), 1)    # output spatial position
    km = k_up - opos                                       # hit for chunk d <=> km == d*So
    zero = jnp.zeros((), dtype=xv.dtype)
    parts = [jnp.where(km == d * So, x_up, zero) for d in range(ksph)]
    # Single lane-dense store of the whole [TR, ksph*So] block.
    out_ref[...] = jnp.concatenate(parts, axis=-1).astype(out_ref.dtype)


def _round_up(a, m):
    return ((a + m - 1) // m) * m


def _choose_row_tile(R, row_out_bytes, out_block_budget=4 << 20):
    """Row tile sized off the (32x larger) OUTPUT block, with an even number of
    roughly-equal grid blocks so v7x's two TensorCores are both busy."""
    if R <= 8:
        return R
    tr_cap = max(8, (out_block_budget // max(row_out_bytes, 1)) // 8 * 8)
    g = pl.cdiv(R, tr_cap)
    g = max(2, 2 * ((g + 1) // 2))                     # even block count
    return max(8, min(_round_up(pl.cdiv(R, g), 8), _round_up(R, 8)))


def mixed_pooling_max_unpool(x, indices_spa, indices_sph,
                             kernel_size_sph=4, kernel_size_spa=(2, 2, 2),
                             stride=None):
    """Forward pass of MixedPoolingMaxUnpool.

    x           : [B, Fin, V, X, Y, Z]
    indices_spa : [B, Fin*4V, X, Y, Z]   flat indices into (2X*2Y*2Z)
    indices_sph : [B, Fin*X*Y*Z, V]      indices into 4V
    returns     : [B, Fin, 4V, 2X, 2Y, 2Z]
    """
    if stride is None:
        stride = kernel_size_spa
    assert tuple(stride) == tuple(kernel_size_spa), (
        "TODO(synk): only stride == kernel_size supported (PyTorch default)")
    B, Fin, V, X, Y, Z = x.shape
    kx, ky, kz = kernel_size_spa
    ksph = kernel_size_sph
    Xo, Yo, Zo = X * kx, Y * ky, Z * kz
    S, So = X * Y * Z, Xo * Yo * Zo
    L = ksph * So
    Vo = V * ksph
    R = B * Fin * V

    # ---- free (row-major) 2-D views -------------------------------------
    x2d = x.reshape(R, S)
    # sphere indices: [B, Fin*XYZ, V] -> [B, Fin, V, X, Y, Z]; subtract window base.
    # TODO(synk): on v5e this int32 transpose could be narrowed to int8 post-subtract.
    isph = jnp.transpose(indices_sph.reshape(B, Fin, X, Y, Z, V).astype(jnp.int32),
                         (0, 1, 5, 2, 3, 4))
    isph = isph - (ksph * jnp.arange(V, dtype=jnp.int32))[None, None, :, None, None, None]
    sph2d = isph.reshape(R, S)
    spa2d = indices_spa.astype(jnp.int32).reshape(R, ksph * S)

    # static map: output spatial flat position o -> source spatial flat position s(o)
    sx = (jnp.arange(Xo, dtype=jnp.int32) // kx)[:, None, None]
    sy = (jnp.arange(Yo, dtype=jnp.int32) // ky)[None, :, None]
    sz = (jnp.arange(Zo, dtype=jnp.int32) // kz)[None, None, :]
    smap = ((sx * Y + sy) * Z + sz).reshape(1, So)

    # ---- row tiling sized off the output block, balanced across 2 TCs ----
    itemsize = x.dtype.itemsize
    TR = _choose_row_tile(R, L * itemsize)
    grid = (pl.cdiv(R, TR),)
    # TODO(synk): for very large X*Y*Z add a second grid axis tiling the spatial dim
    #             so output blocks stay in the few-MiB range on v7x (64 MiB VMEM).

    cost = pl.CostEstimate(
        flops=3 * ksph * R * max(S, So),
        transcendentals=0,
        bytes_accessed=(R * S * itemsize          # x
                        + R * S * 4               # sphere slots
                        + R * ksph * S * 4        # spatial targets
                        + So * 4                  # static map row
                        + R * L * itemsize))      # output (dominant)

    out2d = pl.pallas_call(
        _fused_unpool_kernel,
        out_shape=jax.ShapeDtypeStruct((R, L), x.dtype),
        grid_spec=pltpu.PrefetchScalarGridSpec(
            num_scalar_prefetch=0,
            grid=grid,
            in_specs=[pl.BlockSpec((TR, S), lambda i: (i, 0)),
                      pl.BlockSpec((TR, S), lambda i: (i, 0)),
                      pl.BlockSpec((TR, ksph * S), lambda i: (i, 0)),
                      pl.BlockSpec((1, So), lambda i: (0, 0))],
            out_specs=pl.BlockSpec((TR, L), lambda i: (i, 0)),
        ),
        compiler_params=pltpu.CompilerParams(
            dimension_semantics=("parallel",),
            vmem_limit_bytes=32 * 1024 * 1024),
        cost_estimate=cost,
    )(x2d, sph2d, spa2d, smap)

    # free reshapes back to [B, Fin, V_out, Xo, Yo, Zo]
    return out2d.reshape(B, Fin, V, ksph, Xo, Yo, Zo).reshape(B, Fin, Vo, Xo, Yo, Zo)


# ------------------------- pure-JAX reference ----------------------------
def _reference(x, indices_spa, indices_sph):
    B, Fin, V, X, Y, Z = x.shape
    C1 = Fin * X * Y * Z
    x1 = jnp.transpose(x, (0, 1, 3, 4, 5, 2)).reshape(B, C1, V)
    V_out = 4 * V
    b, c, _ = jnp.meshgrid(jnp.arange(B), jnp.arange(C1), jnp.arange(V),
                           indexing="ij")
    out1 = jnp.zeros((B, C1, V_out), x.dtype).at[b, c, indices_sph].set(x1)

    x2 = out1.reshape(B, Fin, X, Y, Z, V_out)
    x2 = jnp.transpose(x2, (0, 1, 5, 2, 3, 4)).reshape(B, Fin * V_out, X * Y * Z)
    C2 = Fin * V_out
    idxf = indices_spa.reshape(B, C2, X * Y * Z)
    b2, c2, _ = jnp.meshgrid(jnp.arange(B), jnp.arange(C2),
                             jnp.arange(X * Y * Z), indexing="ij")
    out2 = jnp.zeros((B, C2, 8 * X * Y * Z), x.dtype).at[b2, c2, idxf].set(x2)
    return out2.reshape(B, Fin, V_out, 2 * X, 2 * Y, 2 * Z)


def _make_inputs(key, B, Fin, V, X, Y, Z, dtype=jnp.float32):
    """Max-pool-style indices (one position per non-overlapping window)."""
    k1, k2, k3 = jax.random.split(key, 3)
    x = jax.random.normal(k1, (B, Fin, V, X, Y, Z), dtype=dtype)
    V_out, Xo, Yo, Zo = 4 * V, 2 * X, 2 * Y, 2 * Z

    off_sph = jax.random.randint(k2, (B, Fin * X * Y * Z, V), 0, 4)
    indices_sph = (4 * jnp.arange(V)[None, None, :] + off_sph).astype(jnp.int32)

    off3 = jax.random.randint(k3, (B, Fin * V_out, X, Y, Z, 3), 0, 2)
    xi = 2 * jnp.arange(X)[None, None, :, None, None] + off3[..., 0]
    yi = 2 * jnp.arange(Y)[None, None, None, :, None] + off3[..., 1]
    zi = 2 * jnp.arange(Z)[None, None, None, None, :] + off3[..., 2]
    indices_spa = ((xi * Yo + yi) * Zo + zi).astype(jnp.int32)
    return x, indices_spa, indices_sph


if __name__ == "__main__":
    key = jax.random.PRNGKey(0)
    # case 0: R = 1152 -> balanced grid of 2 (576/576 rows, megacore friendly)
    # case 1: R = 15   -> R not a multiple of 8 and R % TR != 0 (ragged last block)
    shapes = [(2, 16, 36, 2, 2, 2),
              (1, 3, 5, 3, 2, 1)]
    for i, (B, Fin, V, X, Y, Z) in enumerate(shapes):
        key, sub = jax.random.split(key)
        x, indices_spa, indices_sph = _make_inputs(sub, B, Fin, V, X, Y, Z)
        out = jax.block_until_ready(
            mixed_pooling_max_unpool(x, indices_spa, indices_sph))
        ref = _reference(x, indices_spa, indices_sph)
        assert out.shape == (B, Fin, 4 * V, 2 * X, 2 * Y, 2 * Z), out.shape
        assert jnp.allclose(out, ref, atol=1e-6), f"mismatch vs reference (case {i})"

    print("KERNEL_OK")
</pallas_src>

<mosaic_0001>
module attributes {stable_mosaic.version = 11 : i64} {
  func.func @_fused_unpool_kernel(%arg0: i32, %arg1: memref<576x8xf32, #tpu.memory_space<vmem>>, %arg2: memref<576x8xi32, #tpu.memory_space<vmem>>, %arg3: memref<576x32xi32, #tpu.memory_space<vmem>>, %arg4: memref<1x64xi32, #tpu.memory_space<vmem>>, %arg5: memref<576x256xf32, #tpu.memory_space<vmem>>) attributes {dimension_semantics = [#tpu.dimension_semantics<parallel>], iteration_bounds = array<i64: 2>, scalar_prefetch = 0 : i64, scratch_operands = 0 : i64, tpu.core_type = #tpu.core_type<tc>, window_params = [{transform_indices = @transform_0, window_bounds = array<i64: 576, 8>}, {transform_indices = @transform_1, window_bounds = array<i64: 576, 8>}, {transform_indices = @transform_2, window_bounds = array<i64: 576, 32>}, {pipeline_mode = #tpu.pipeline_mode<synchronous>, transform_indices = @transform_3, window_bounds = array<i64: 1, 64>}, {transform_indices = @transform_4, window_bounds = array<i64: 576, 256>}]} {
    %c0 = arith.constant 0 : index
    %c0_0 = arith.constant 0 : index
    %0 = vector.load %arg1[%c0, %c0_0] : memref<576x8xf32, #tpu.memory_space<vmem>>, vector<576x8xf32>
    %c0_1 = arith.constant 0 : index
    %c0_2 = arith.constant 0 : index
    %1 = vector.load %arg2[%c0_1, %c0_2] : memref<576x8xi32, #tpu.memory_space<vmem>>, vector<576x8xi32>
    %c0_3 = arith.constant 0 : index
    %c0_4 = arith.constant 0 : index
    %2 = vector.load %arg3[%c0_3, %c0_4] : memref<576x32xi32, #tpu.memory_space<vmem>>, vector<576x32xi32>
    %3 = vector.extract_strided_slice %2 {offsets = [0, 0], sizes = [576, 8], strides = [1, 1]} : vector<576x32xi32> to vector<576x8xi32>
    %c1_i32 = arith.constant 1 : i32
    %4 = vector.broadcast %c1_i32 : i32 to vector<576x8xi32>
    %5 = arith.cmpi eq, %1, %4 : vector<576x8xi32>
    %6 = vector.extract_strided_slice %2 {offsets = [0, 8], sizes = [576, 8], strides = [1, 1]} : vector<576x32xi32> to vector<576x8xi32>
    %7 = arith.select %5, %6, %3 : vector<576x8xi1>, vector<576x8xi32>
    %c2_i32 = arith.constant 2 : i32
    %8 = vector.broadcast %c2_i32 : i32 to vector<576x8xi32>
    %9 = arith.cmpi eq, %1, %8 : vector<576x8xi32>
    %10 = vector.extract_strided_slice %2 {offsets = [0, 16], sizes = [576, 8], strides = [1, 1]} : vector<576x32xi32> to vector<576x8xi32>
    %11 = arith.select %9, %10, %7 : vector<576x8xi1>, vector<576x8xi32>
    %c3_i32 = arith.constant 3 : i32
    %12 = vector.broadcast %c3_i32 : i32 to vector<576x8xi32>
    %13 = arith.cmpi eq, %1, %12 : vector<576x8xi32>
    %14 = vector.extract_strided_slice %2 {offsets = [0, 24], sizes = [576, 8], strides = [1, 1]} : vector<576x32xi32> to vector<576x8xi32>
    %15 = arith.select %13, %14, %11 : vector<576x8xi1>, vector<576x8xi32>
    %c64_i32 = arith.constant 64 : i32
    %16 = vector.broadcast %c64_i32 : i32 to vector<576x8xi32>
    %17 = arith.muli %1, %16 : vector<576x8xi32>
    %18 = arith.addi %17, %15 : vector<576x8xi32>
    %c0_5 = arith.constant 0 : index
    %c0_6 = arith.constant 0 : index
    %19 = vector.load %arg4[%c0_5, %c0_6] : memref<1x64xi32, #tpu.memory_space<vmem>>, vector<1x64xi32>
    %20 = vector.shape_cast %19 : vector<1x64xi32> to vector<1x64xi32>
    %21 = vector.broadcast %20 : vector<1x64xi32> to vector<576x64xi32>
    %22 = vector.shape_cast %21 : vector<576x64xi32> to vector<576x64x1xi32>
    %23 = vector.shape_cast %22 : vector<576x64x1xi32> to vector<576x64xi32>
    %24 = tpu.dynamic_gather %0[%23] in [1] : vector<576x8xf32>, vector<576x64xi32> -> vector<576x64xf32>
    %25 = vector.shape_cast %21 : vector<576x64xi32> to vector<576x64x1xi32>
    %26 = vector.shape_cast %25 : vector<576x64x1xi32> to vector<576x64xi32>
    %27 = tpu.dynamic_gather %18[%26] in [1] : vector<576x8xi32>, vector<576x64xi32> -> vector<576x64xi32>
    %28 = tpu.iota {dimensions = array<i32: 1>} : vector<576x64xi32>
    %29 = arith.subi %27, %28 : vector<576x64xi32>
    %c0_i32 = arith.constant 0 : i32
    %30 = vector.broadcast %c0_i32 : i32 to vector<576x64xi32>
    %31 = arith.cmpi eq, %29, %30 : vector<576x64xi32>
    %cst = arith.constant 0.000000e+00 : f32
    %32 = vector.broadcast %cst : f32 to vector<576x64xf32>
    %33 = arith.select %31, %24, %32 : vector<576x64xi1>, vector<576x64xf32>
    %c64_i32_7 = arith.constant 64 : i32
    %34 = vector.broadcast %c64_i32_7 : i32 to vector<576x64xi32>
    %35 = arith.cmpi eq, %29, %34 : vector<576x64xi32>
    %cst_8 = arith.constant 0.000000e+00 : f32
    %36 = vector.broadcast %cst_8 : f32 to vector<576x64xf32>
    %37 = arith.select %35, %24, %36 : vector<576x64xi1>, vector<576x64xf32>
    %c128_i32 = arith.constant 128 : i32
    %38 = vector.broadcast %c128_i32 : i32 to vector<576x64xi32>
    %39 = arith.cmpi eq, %29, %38 : vector<576x64xi32>
    %cst_9 = arith.constant 0.000000e+00 : f32
    %40 = vector.broadcast %cst_9 : f32 to vector<576x64xf32>
    %41 = arith.select %39, %24, %40 : vector<576x64xi1>, vector<576x64xf32>
    %c192_i32 = arith.constant 192 : i32
    %42 = vector.broadcast %c192_i32 : i32 to vector<576x64xi32>
    %43 = arith.cmpi eq, %29, %42 : vector<576x64xi32>
    %cst_10 = arith.constant 0.000000e+00 : f32
    %44 = vector.broadcast %cst_10 : f32 to vector<576x64xf32>
    %45 = arith.select %43, %24, %44 : vector<576x64xi1>, vector<576x64xf32>
    %46 = tpu.concatenate %33, %37, %41, %45 in 1 : vector<576x64xf32>, vector<576x64xf32>, vector<576x64xf32>, vector<576x64xf32> -> vector<576x256xf32>
    %c0_11 = arith.constant 0 : index
    %c0_12 = arith.constant 0 : index
    %47 = vector.load %arg5[%c0_11, %c0_12] : memref<576x256xf32, #tpu.memory_space<vmem>>, vector<576x256xf32>
    tpu.vector_store %arg5[%c0_11, %c0_12], %46 {strides = array<i32>} : memref<576x256xf32, #tpu.memory_space<vmem>>, vector<576x256xf32>,
    return
  }
  func.func @transform_0(%arg0: i32) -> (i32, i32) {
    %c0_i32 = arith.constant 0 : i32
    %c0_i32_0 = arith.constant 0 : i32
    return %arg0, %c0_i32 : i32, i32
  }
  func.func @transform_1(%arg0: i32) -> (i32, i32) {
    %c0_i32 = arith.constant 0 : i32
    %c0_i32_0 = arith.constant 0 : i32
    return %arg0, %c0_i32 : i32, i32
  }
  func.func @transform_2(%arg0: i32) -> (i32, i32) {
    %c0_i32 = arith.constant 0 : i32
    %c0_i32_0 = arith.constant 0 : i32
    return %arg0, %c0_i32 : i32, i32
  }
  func.func @transform_3(%arg0: i32) -> (i32, i32) {
    %c0_i32 = arith.constant 0 : i32
    %c0_i32_0 = arith.constant 0 : i32
    %c0_i32_1 = arith.constant 0 : i32
    return %c0_i32, %c0_i32_0 : i32, i32
  }
  func.func @transform_4(%arg0: i32) -> (i32, i32) {
    %c0_i32 = arith.constant 0 : i32
    %c0_i32_0 = arith.constant 0 : i32
    return %arg0, %c0_i32 : i32, i32
  }
}

</mosaic_0001>

<llo_original>
// kernel: tpu_custom_call.1
$region0: #{tpu_custom_call.1}
  #allocation0 [shape = 'u32[]', space=smem, size = 0x4, offset = 0x4, fixed_abs, tag = 'smem constant byte address 0x4 - core index']
  #allocation1 [shape = 'u32[144,128]{1,0:T(1,128)}', space=vmem, size = 0x12000, scoped, tag = 'internal scratch']
  %s0 = inlined_call_operand.vmem [shape: f32[1152,8], index: 0, kind: input, shape index: {}]
  %s1 = inlined_call_operand.vmem [shape: s32[1152,8], index: 1, kind: input, shape index: {}]
  %s2 = inlined_call_operand.vmem [shape: s32[1152,32], index: 2, kind: input, shape index: {}]
  %s3 = inlined_call_operand.vmem [shape: s32[1,64], index: 3, kind: input, shape index: {}]
  %s4 = inlined_call_operand.hbm [shape: f32[1152,256], index: 4, kind: output, shape index: {}]
  %s5 = sld [smem:[#allocation0]]
  $region49: #{tpu_custom_call.1} parent=0
    _
  %s7 = ssub.s32 1, %s5
  %s8 = scalar_select 0, %s7, %s5
  $region1: #{tpu_custom_call.1} parent=0
    #allocation2 [shape = 'u8[1179648]{0}', space=vmem, size = 0x120000, scoped, tag = 'output window, operand 0']
    #allocation3 [shape = 's32[2]{0}', space=sflag, size = 0x8, scoped, tag = 'scoped memory for tpu_custom_call.1']
    %9 = vsyncpa [#allocation3], 0
    %s10 = scalar_lea.sflag [#allocation3], 1
    %11 = vsyncpa %s10, 0
    loop: start=0, step=1, limit=4
    $region2: #{tpu_custom_call.1} parent=1 // loop_pre_header
      _
    $region3: #{tpu_custom_call.1} parent=1 // loop_header
      %s13 = sphi 0, %s17
      %p14 = scmp.ge.s32.totalorder %s13, 4
      %s23 = sphi 0, %s25
      %s26 = sphi 0, %s23
      %s27 = sphi 0, %s26
      %s43 = sphi 0, %s27
      %s49 = sphi 0, %s51
      %s52 = sphi 0, %s49
      %s53 = sphi 0, %s52
      %s69 = sphi 0, %s53
      %s75 = sphi 0, %s77
      %s78 = sphi 0, %s75
      %s79 = sphi 0, %s78
      %s95 = sphi 0, %s79
      %s99 = sphi 0, %s99
      %s101 = sphi 0, %s99
      %s102 = sphi 0, %s101
      %s116 = sphi 0, %s102
      %s122 = sphi 0, %s124
      %s125 = sphi 0, %s122
      %s126 = sphi 0, %s125
      %s142 = sphi 0, %s126
    $region4: #{tpu_custom_call.1} parent=1 // loop_header_branch
      %16 = sbr.rel (%p14) target = $region8
    $region5: #{tpu_custom_call.1} parent=1 // loop_body
      %s18 = ssub.s32 %s13, 1
      %s19 = ssub.s32 %s13, 2
      %s20 = sadd.s32 %s13, 1
      %s21 = ssub.s32 %s13, %s20
      %p22 = scmp.eq.s32.totalorder %s21, 0
      %s24 = sadd.s32 %s23, 1
      %s25 = scalar_select %p22, %s23, %s24
      %p28 = pneg %p22
      %p29 = scmp.eq.s32.totalorder %s13, 1
      %p30 = por %p28, %p29
      %p31 = scmp.ne.s32.totalorder %s23, %s26
      %p32 = scmp.eq.s32.totalorder %s13, 0
      %p33 = por %p31, %p32
      %p34 = scmp.ne.s32.totalorder %s23, %s26
      %p35 = scmp.eq.s32.totalorder %s18, 1
      %p36 = por %p34, %p35
      %p37 = scmp.ne.s32.totalorder %s26, %s27
      %p38 = scmp.eq.s32.totalorder %s18, 0
      %p39 = por %p37, %p38
      %p40 = scmp.ne.s32.totalorder %s26, %s27
      %p41 = scmp.eq.s32.totalorder %s19, 1
      %p42 = por %p40, %p41
      %p44 = scmp.ne.s32.totalorder %s27, %s43
      %p45 = scmp.eq.s32.totalorder %s19, 0
      %p46 = por %p44, %p45
      %s47 = ssub.s32 %s13, %s20
      %p48 = scmp.eq.s32.totalorder %s47, 0
      %s50 = sadd.s32 %s49, 1
      %s51 = scalar_select %p48, %s49, %s50
      %p54 = pneg %p48
      %p55 = scmp.eq.s32.totalorder %s13, 1
      %p56 = por %p54, %p55
      %p57 = scmp.ne.s32.totalorder %s49, %s52
      %p58 = scmp.eq.s32.totalorder %s13, 0
      %p59 = por %p57, %p58
      %p60 = scmp.ne.s32.totalorder %s49, %s52
      %p61 = scmp.eq.s32.totalorder %s18, 1
      %p62 = por %p60, %p61
      %p63 = scmp.ne.s32.totalorder %s52, %s53
      %p64 = scmp.eq.s32.totalorder %s18, 0
      %p65 = por %p63, %p64
      %p66 = scmp.ne.s32.totalorder %s52, %s53
      %p67 = scmp.eq.s32.totalorder %s19, 1
      %p68 = por %p66, %p67
      %p70 = scmp.ne.s32.totalorder %s53, %s69
      %p71 = scmp.eq.s32.totalorder %s19, 0
      %p72 = por %p70, %p71
      %s73 = ssub.s32 %s13, %s20
      %p74 = scmp.eq.s32.totalorder %s73, 0
      %s76 = sadd.s32 %s75, 1
      %s77 = scalar_select %p74, %s75, %s76
      %p80 = pneg %p74
      %p81 = scmp.eq.s32.totalorder %s13, 1
      %p82 = por %p80, %p81
      %p83 = scmp.ne.s32.totalorder %s75, %s78
      %p84 = scmp.eq.s32.totalorder %s13, 0
      %p85 = por %p83, %p84
      %p86 = scmp.ne.s32.totalorder %s75, %s78
      %p87 = scmp.eq.s32.totalorder %s18, 1
      %p88 = por %p86, %p87
      %p89 = scmp.ne.s32.totalorder %s78, %s79
      %p90 = scmp.eq.s32.totalorder %s18, 0
      %p91 = por %p89, %p90
      %p92 = scmp.ne.s32.totalorder %s78, %s79
      %p93 = scmp.eq.s32.totalorder %s19, 1
      %p94 = por %p92, %p93
      %p96 = scmp.ne.s32.totalorder %s79, %s95
      %p97 = scmp.eq.s32.totalorder %s19, 0
      %p98 = por %p96, %p97
      %s100 = sadd.s32 %s99, 1
      %p103 = scmp.eq.s32.totalorder %s13, 1
      %p104 = scmp.ne.s32.totalorder %s99, %s101
      %p105 = scmp.eq.s32.totalorder %s13, 0
      %p106 = por %p104, %p105
      %p107 = scmp.ne.s32.totalorder %s99, %s101
      %p108 = scmp.eq.s32.totalorder %s18, 1
      %p109 = por %p107, %p108
      %p110 = scmp.ne.s32.totalorder %s101, %s102
      %p111 = scmp.eq.s32.totalorder %s18, 0
      %p112 = por %p110, %p111
      %p113 = scmp.ne.s32.totalorder %s101, %s102
      %p114 = scmp.eq.s32.totalorder %s19, 1
      %p115 = por %p113, %p114
      %p117 = scmp.ne.s32.totalorder %s102, %s116
      %p118 = scmp.eq.s32.totalorder %s19, 0
      %p119 = por %p117, %p118
      %s120 = ssub.s32 %s13, %s20
      %p121 = scmp.eq.s32.totalorder %s120, 0
      %s123 = sadd.s32 %s122, 1
      %s124 = scalar_select %p121, %s122, %s123
      %p127 = pneg %p121
      %p128 = scmp.eq.s32.totalorder %s13, 1
      %p129 = por %p127, %p128
      %p130 = scmp.ne.s32.totalorder %s122, %s125
      %p131 = scmp.eq.s32.totalorder %s13, 0
      %p132 = por %p130, %p131
      %p133 = scmp.ne.s32.totalorder %s122, %s125
      %p134 = scmp.eq.s32.totalorder %s18, 1
      %p135 = por %p133, %p134
      %p136 = scmp.ne.s32.totalorder %s125, %s126
      %p137 = scmp.eq.s32.totalorder %s18, 0
      %p138 = por %p136, %p137
      %p139 = scmp.ne.s32.totalorder %s125, %s126
      %p140 = scmp.eq.s32.totalorder %s19, 1
      %p141 = por %p139, %p140
      %p143 = scmp.ne.s32.totalorder %s126, %s142
      %p144 = scmp.eq.s32.totalorder %s19, 0
      %p145 = por %p143, %p144
      %p146 = scmp.le.s32.totalorder 1, %s13
      %p147 = scmp.lt.s32.totalorder %s13, 3
      %p148 = pnand %p146, %p147
      %p149 = pneg %p148
      // Predicated region
      $region9: #{tpu_custom_call.1} parent=5 // pred_check
        _
      $region10: #{tpu_custom_call.1} parent=5 // pred_check_branch
        %151 = sbr.rel (%p148) target = $region12
      $region11: #{tpu_custom_call.1} parent=5 // pred_region
        %s152 = ssub.s32 %s13, 1
        // Predicated region
        $region13: #{tpu_custom_call.1} parent=11 // pred_check
          %p153 = pneg %p112
        $region14: #{tpu_custom_call.1} parent=11 // pred_check_branch
          %155 = sbr.rel (%p153) target = $region16
        $region15: #{tpu_custom_call.1} parent=11 // pred_region
          _
        $region16: #{tpu_custom_call.1} parent=11 // pred_fallthru
          _
      $region12: #{tpu_custom_call.1} parent=5 // pred_fallthru
        _
      %p156 = scmp.lt.s32.totalorder %s13, 2
      // Predicated region
      $region17: #{tpu_custom_call.1} parent=5 // pred_check
        %p157 = pneg %p156
      $region18: #{tpu_custom_call.1} parent=5 // pred_check_branch
        %159 = sbr.rel (%p157) target = $region20
      $region19: #{tpu_custom_call.1} parent=5 // pred_region
        // Predicated region
        $region21: #{tpu_custom_call.1} parent=19 // pred_check
          %p160 = pneg %p33
        $region22: #{tpu_custom_call.1} parent=19 // pred_check_branch
          %162 = sbr.rel (%p160) target = $region24
        $region23: #{tpu_custom_call.1} parent=19 // pred_region
          %s163 = smul.u32 72, %s13
          %p164 = scmp.lt.s32.totalorder %s163, 143
          %s165 = scalar_select %p164, %s163, 143
          %s166 = smul.addr %s165, 8
          %s167 = scalar_lea.vmem %s0, %s166
          %s168 = smul.u32 72, %s13
        $region24: #{tpu_custom_call.1} parent=19 // pred_fallthru
          _
        // Predicated region
        $region25: #{tpu_custom_call.1} parent=19 // pred_check
          %p169 = pneg %p59
        $region26: #{tpu_custom_call.1} parent=19 // pred_check_branch
          %171 = sbr.rel (%p169) target = $region28
        $region27: #{tpu_custom_call.1} parent=19 // pred_region
          %s172 = smul.u32 72, %s13
          %p173 = scmp.lt.s32.totalorder %s172, 143
          %s174 = scalar_select %p173, %s172, 143
          %s175 = smul.addr %s174, 8
          %s176 = scalar_lea.vmem %s1, %s175
          %s177 = smul.u32 72, %s13
        $region28: #{tpu_custom_call.1} parent=19 // pred_fallthru
          _
        // Predicated region
        $region29: #{tpu_custom_call.1} parent=19 // pred_check
          %p178 = pneg %p85
        $region30: #{tpu_custom_call.1} parent=19 // pred_check_branch
          %180 = sbr.rel (%p178) target = $region32
        $region31: #{tpu_custom_call.1} parent=19 // pred_region
          %s181 = smul.u32 72, %s13
          %p182 = scmp.lt.s32.totalorder %s181, 143
          %s183 = scalar_select %p182, %s181, 143
          %s184 = smul.addr %s183, 8
          %s185 = scalar_lea.vmem %s2, %s184
          %s186 = smul.u32 72, %s13
        $region32: #{tpu_custom_call.1} parent=19 // pred_fallthru
          _
      $region20: #{tpu_custom_call.1} parent=5 // pred_fallthru
        _
      %p187 = scmp.le.s32.totalorder 1, %s13
      %p188 = scmp.lt.s32.totalorder %s13, 3
      %p189 = pnand %p187, %p188
      %p190 = pneg %p189
      // Predicated region
      $region33: #{tpu_custom_call.1} parent=5 // pred_check
        _
      $region34: #{tpu_custom_call.1} parent=5 // pred_check_branch
        %192 = sbr.rel (%p189) target = $region36
      $region35: #{tpu_custom_call.1} parent=5 // pred_region
        %s193 = ssub.s32 %s13, 1
        %s194 = smul.u32 72, %s18
        %p195 = scmp.lt.s32.totalorder %s194, 143
        %s196 = scalar_select %p195, %s194, 143
        %s197 = smul.addr %s196, 8
        %s198 = scalar_lea.vmem %s0, %s197
        %p199 = pneg %p39
        %p200 = pneg %p36
        %s201 = smul.u32 72, %s18
        %p202 = scmp.lt.s32.totalorder %s201, 143
        %s203 = scalar_select %p202, %s201, 143
        %s204 = smul.addr %s203, 8
        %s205 = scalar_lea.vmem %s1, %s204
        %p206 = pneg %p65
        %p207 = pneg %p62
        %s208 = smul.u32 72, %s18
        %p209 = scmp.lt.s32.totalorder %s208, 143
        %s210 = scalar_select %p209, %s208, 143
        %s211 = smul.addr %s210, 8
        %s212 = scalar_lea.vmem %s2, %s211
        %p213 = pneg %p91
        %p214 = pneg %p88
        %p215 = pneg %p112
        %p216 = pneg %p109
        %p217 = pneg %p138
        %p218 = pneg %p135
        %s219 = sand.u32 %s125, 1
        %s220 = scalar_lea.sflag [#allocation3], %s219
        %s221 = sand.u32 %s125, 1
        %s222 = smul.addr %s221, 1152
        %s223 = scalar_lea.vmem [#allocation2], %s222
        %s224 = smul.u32 72, %s18
        %p225 = scmp.lt.s32.totalorder %s224, 143
        %s226 = scalar_select %p225, %s224, 143
        %s227 = smul.addr %s226, 8
        %s228 = scalar_lea.vmem %s0, %s227
        %s229 = smul.u32 72, %s18
        %s230 = smul.u32 72, %s18
        %p231 = scmp.lt.s32.totalorder %s230, 143
        %s232 = scalar_select %p231, %s230, 143
        %s233 = smul.addr %s232, 8
        %s234 = scalar_lea.vmem %s1, %s233
        %s235 = smul.u32 72, %s18
        %s236 = smul.u32 72, %s18
        %p237 = scmp.lt.s32.totalorder %s236, 143
        %s238 = scalar_select %p237, %s236, 143
        %s239 = smul.addr %s238, 8
        %s240 = scalar_lea.vmem %s2, %s239
        %s241 = smul.u32 72, %s18
        %s242 = smul.u32 72, %s18
        %v243 = vld [vmem:[%s228] sm:$0xff]
        %v244 = vld [vmem:[%s228 + $0x8] sm:$0xff]
        %v245 = vld [vmem:[%s228 + $0x10] sm:$0xff]
        %v246 = vld [vmem:[%s228 + $0x18] sm:$0xff]
        %v247 = vld [vmem:[%s228 + $0x20] sm:$0xff]
        %v248 = vld [vmem:[%s228 + $0x28] sm:$0xff]
        %v249 = vld [vmem:[%s228 + $0x30] sm:$0xff]
        %v250 = vld [vmem:[%s228 + $0x38] sm:$0xff]
        %v251 = vld [vmem:[%s228 + $0x40] sm:$0xff]
        %v252 = vld [vmem:[%s228 + $0x48] sm:$0xff]
        %v253 = vld [vmem:[%s228 + $0x50] sm:$0xff]
        %v254 = vld [vmem:[%s228 + $0x58] sm:$0xff]
        %v255 = vld [vmem:[%s228 + $0x60] sm:$0xff]
        %v256 = vld [vmem:[%s228 + $0x68] sm:$0xff]
        %v257 = vld [vmem:[%s228 + $0x70] sm:$0xff]
        %v258 = vld [vmem:[%s228 + $0x78] sm:$0xff]
        %v259 = vld [vmem:[%s228 + $0x80] sm:$0xff]
        %v260 = vld [vmem:[%s228 + $0x88] sm:$0xff]
        %v261 = vld [vmem:[%s228 + $0x90] sm:$0xff]
        %v262 = vld [vmem:[%s228 + $0x98] sm:$0xff]
        %v263 = vld [vmem:[%s228 + $0xa0] sm:$0xff]
        %v264 = vld [vmem:[%s228 + $0xa8] sm:$0xff]
        %v265 = vld [vmem:[%s228 + $0xb0] sm:$0xff]
        %v266 = vld [vmem:[%s228 + $0xb8] sm:$0xff]
        %v267 = vld [vmem:[%s228 + $0xc0] sm:$0xff]
        %v268 = vld [vmem:[%s228 + $0xc8] sm:$0xff]
        %v269 = vld [vmem:[%s228 + $0xd0] sm:$0xff]
        %v270 = vld [vmem:[%s228 + $0xd8] sm:$0xff]
        %v271 = vld [vmem:[%s228 + $0xe0] sm:$0xff]
        %v272 = vld [vmem:[%s228 + $0xe8] sm:$0xff]
        %v273 = vld [vmem:[%s228 + $0xf0] sm:$0xff]
        %v274 = vld [vmem:[%s228 + $0xf8] sm:$0xff]
        %v275 = vld [vmem:[%s228 + $0x100] sm:$0xff]
        %v276 = vld [vmem:[%s228 + $0x108] sm:$0xff]
        %v277 = vld [vmem:[%s228 + $0x110] sm:$0xff]
        %v278 = vld [vmem:[%s228 + $0x118] sm:$0xff]
        %v279 = vld [vmem:[%s228 + $0x120] sm:$0xff]
        %v280 = vld [vmem:[%s228 + $0x128] sm:$0xff]
        %v281 = vld [vmem:[%s228 + $0x130] sm:$0xff]
        %v282 = vld [vmem:[%s228 + $0x138] sm:$0xff]
        %v283 = vld [vmem:[%s228 + $0x140] sm:$0xff]
        %v284 = vld [vmem:[%s228 + $0x148] sm:$0xff]
        %v285 = vld [vmem:[%s228 + $0x150] sm:$0xff]
        %v286 = vld [vmem:[%s228 + $0x158] sm:$0xff]
        %v287 = vld [vmem:[%s228 + $0x160] sm:$0xff]
        %v288 = vld [vmem:[%s228 + $0x168] sm:$0xff]
        %v289 = vld [vmem:[%s228 + $0x170] sm:$0xff]
        %v290 = vld [vmem:[%s228 + $0x178] sm:$0xff]
        %v291 = vld [vmem:[%s228 + $0x180] sm:$0xff]
        %v292 = vld [vmem:[%s228 + $0x188] sm:$0xff]
        %v293 = vld [vmem:[%s228 + $0x190] sm:$0xff]
        %v294 = vld [vmem:[%s228 + $0x198] sm:$0xff]
        %v295 = vld [vmem:[%s228 + $0x1a0] sm:$0xff]
        %v296 = vld [vmem:[%s228 + $0x1a8] sm:$0xff]
        %v297 = vld [vmem:[%s228 + $0x1b0] sm:$0xff]
        %v298 = vld [vmem:[%s228 + $0x1b8] sm:$0xff]
        %v299 = vld [vmem:[%s228 + $0x1c0] sm:$0xff]
        %v300 = vld [vmem:[%s228 + $0x1c8] sm:$0xff]
        %v301 = vld [vmem:[%s228 + $0x1d0] sm:$0xff]
        %v302 = vld [vmem:[%s228 + $0x1d8] sm:$0xff]
        %v303 = vld [vmem:[%s228 + $0x1e0] sm:$0xff]
        %v304 = vld [vmem:[%s228 + $0x1e8] sm:$0xff]
        %v305 = vld [vmem:[%s228 + $0x1f0] sm:$0xff]
        %v306 = vld [vmem:[%s228 + $0x1f8] sm:$0xff]
        %v307 = vld [vmem:[%s228 + $0x200] sm:$0xff]
        %v308 = vld [vmem:[%s228 + $0x208] sm:$0xff]
        %v309 = vld [vmem:[%s228 + $0x210] sm:$0xff]
        %v310 = vld [vmem:[%s228 + $0x218] sm:$0xff]
        %v311 = vld [vmem:[%s228 + $0x220] sm:$0xff]
        %v312 = vld [vmem:[%s228 + $0x228] sm:$0xff]
        %v313 = vld [vmem:[%s228 + $0x230] sm:$0xff]
        %v314 = vld [vmem:[%s228 + $0x238] sm:$0xff]
        %v315 = vld [vmem:[%s234] sm:$0xff]
        %v316 = vld [vmem:[%s234 + $0x8] sm:$0xff]
        %v317 = vld [vmem:[%s234 + $0x10] sm:$0xff]
        %v318 = vld [vmem:[%s234 + $0x18] sm:$0xff]
        %v319 = vld [vmem:[%s234 + $0x20] sm:$0xff]
        %v320 = vld [vmem:[%s234 + $0x28] sm:$0xff]
        %v321 = vld [vmem:[%s234 + $0x30] sm:$0xff]
        %v322 = vld [vmem:[%s234 + $0x38] sm:$0xff]
        %v323 = vld [vmem:[%s234 + $0x40] sm:$0xff]
        %v324 = vld [vmem:[%s234 + $0x48] sm:$0xff]
        %v325 = vld [vmem:[%s234 + $0x50] sm:$0xff]
        %v326 = vld [vmem:[%s234 + $0x58] sm:$0xff]
        %v327 = vld [vmem:[%s234 + $0x60] sm:$0xff]
        %v328 = vld [vmem:[%s234 + $0x68] sm:$0xff]
        %v329 = vld [vmem:[%s234 + $0x70] sm:$0xff]
        %v330 = vld [vmem:[%s234 + $0x78] sm:$0xff]
        %v331 = vld [vmem:[%s234 + $0x80] sm:$0xff]
        %v332 = vld [vmem:[%s234 + $0x88] sm:$0xff]
        %v333 = vld [vmem:[%s234 + $0x90] sm:$0xff]
        %v334 = vld [vmem:[%s234 + $0x98] sm:$0xff]
        %v335 = vld [vmem:[%s234 + $0xa0] sm:$0xff]
        %v336 = vld [vmem:[%s234 + $0xa8] sm:$0xff]
        %v337 = vld [vmem:[%s234 + $0xb0] sm:$0xff]
        %v338 = vld [vmem:[%s234 + $0xb8] sm:$0xff]
        %v339 = vld [vmem:[%s234 + $0xc0] sm:$0xff]
        %v340 = vld [vmem:[%s234 + $0xc8] sm:$0xff]
        %v341 = vld [vmem:[%s234 + $0xd0] sm:$0xff]
        %v342 = vld [vmem:[%s234 + $0xd8] sm:$0xff]
        %v343 = vld [vmem:[%s234 + $0xe0] sm:$0xff]
        %v344 = vld [vmem:[%s234 + $0xe8] sm:$0xff]
        %v345 = vld [vmem:[%s234 + $0xf0] sm:$0xff]
        %v346 = vld [vmem:[%s234 + $0xf8] sm:$0xff]
        %v347 = vld [vmem:[%s234 + $0x100] sm:$0xff]
        %v348 = vld [vmem:[%s234 + $0x108] sm:$0xff]
        %v349 = vld [vmem:[%s234 + $0x110] sm:$0xff]
        %v350 = vld [vmem:[%s234 + $0x118] sm:$0xff]
        %v351 = vld [vmem:[%s234 + $0x120] sm:$0xff]
        %v352 = vld [vmem:[%s234 + $0x128] sm:$0xff]
        %v353 = vld [vmem:[%s234 + $0x130] sm:$0xff]
        %v354 = vld [vmem:[%s234 + $0x138] sm:$0xff]
        %v355 = vld [vmem:[%s234 + $0x140] sm:$0xff]
        %v356 = vld [vmem:[%s234 + $0x148] sm:$0xff]
        %v357 = vld [vmem:[%s234 + $0x150] sm:$0xff]
        %v358 = vld [vmem:[%s234 + $0x158] sm:$0xff]
        %v359 = vld [vmem:[%s234 + $0x160] sm:$0xff]
        %v360 = vld [vmem:[%s234 + $0x168] sm:$0xff]
        %v361 = vld [vmem:[%s234 + $0x170] sm:$0xff]
        %v362 = vld [vmem:[%s234 + $0x178] sm:$0xff]
        %v363 = vld [vmem:[%s234 + $0x180] sm:$0xff]
        %v364 = vld [vmem:[%s234 + $0x188] sm:$0xff]
        %v365 = vld [vmem:[%s234 + $0x190] sm:$0xff]
        %v366 = vld [vmem:[%s234 + $0x198] sm:$0xff]
        %v367 = vld [vmem:[%s234 + $0x1a0] sm:$0xff]
        %v368 = vld [vmem:[%s234 + $0x1a8] sm:$0xff]
        %v369 = vld [vmem:[%s234 + $0x1b0] sm:$0xff]
        %v370 = vld [vmem:[%s234 + $0x1b8] sm:$0xff]
        %v371 = vld [vmem:[%s234 + $0x1c0] sm:$0xff]
        %v372 = vld [vmem:[%s234 + $0x1c8] sm:$0xff]
        %v373 = vld [vmem:[%s234 + $0x1d0] sm:$0xff]
        %v374 = vld [vmem:[%s234 + $0x1d8] sm:$0xff]
        %v375 = vld [vmem:[%s234 + $0x1e0] sm:$0xff]
        %v376 = vld [vmem:[%s234 + $0x1e8] sm:$0xff]
        %v377 = vld [vmem:[%s234 + $0x1f0] sm:$0xff]
        %v378 = vld [vmem:[%s234 + $0x1f8] sm:$0xff]
        %v379 = vld [vmem:[%s234 + $0x200] sm:$0xff]
        %v380 = vld [vmem:[%s234 + $0x208] sm:$0xff]
        %v381 = vld [vmem:[%s234 + $0x210] sm:$0xff]
        %v382 = vld [vmem:[%s234 + $0x218] sm:$0xff]
        %v383 = vld [vmem:[%s234 + $0x220] sm:$0xff]
        %v384 = vld [vmem:[%s234 + $0x228] sm:$0xff]
        %v385 = vld [vmem:[%s234 + $0x230] sm:$0xff]
        %v386 = vld [vmem:[%s234 + $0x238] sm:$0xff]
        %v387 = vld [vmem:[%s240] sm:$0xff]
        %v388 = vld [vmem:[%s240 + $0x8] sm:$0xff]
        %v389 = vld [vmem:[%s240 + $0x10] sm:$0xff]
        %v390 = vld [vmem:[%s240 + $0x18] sm:$0xff]
        %v391 = vld [vmem:[%s240 + $0x20] sm:$0xff]
        %v392 = vld [vmem:[%s240 + $0x28] sm:$0xff]
        %v393 = vld [vmem:[%s240 + $0x30] sm:$0xff]
        %v394 = vld [vmem:[%s240 + $0x38] sm:$0xff]
        %v395 = vld [vmem:[%s240 + $0x40] sm:$0xff]
        %v396 = vld [vmem:[%s240 + $0x48] sm:$0xff]
        %v397 = vld [vmem:[%s240 + $0x50] sm:$0xff]
        %v398 = vld [vmem:[%s240 + $0x58] sm:$0xff]
        %v399 = vld [vmem:[%s240 + $0x60] sm:$0xff]
        %v400 = vld [vmem:[%s240 + $0x68] sm:$0xff]
        %v401 = vld [vmem:[%s240 + $0x70] sm:$0xff]
        %v402 = vld [vmem:[%s240 + $0x78] sm:$0xff]
        %v403 = vld [vmem:[%s240 + $0x80] sm:$0xff]
        %v404 = vld [vmem:[%s240 + $0x88] sm:$0xff]
        %v405 = vld [vmem:[%s240 + $0x90] sm:$0xff]
        %v406 = vld [vmem:[%s240 + $0x98] sm:$0xff]
        %v407 = vld [vmem:[%s240 + $0xa0] sm:$0xff]
        %v408 = vld [vmem:[%s240 + $0xa8] sm:$0xff]
        %v409 = vld [vmem:[%s240 + $0xb0] sm:$0xff]
        %v410 = vld [vmem:[%s240 + $0xb8] sm:$0xff]
        %v411 = vld [vmem:[%s240 + $0xc0] sm:$0xff]
        %v412 = vld [vmem:[%s240 + $0xc8] sm:$0xff]
        %v413 = vld [vmem:[%s240 + $0xd0] sm:$0xff]
        %v414 = vld [vmem:[%s240 + $0xd8] sm:$0xff]
        %v415 = vld [vmem:[%s240 + $0xe0] sm:$0xff]
        %v416 = vld [vmem:[%s240 + $0xe8] sm:$0xff]
        %v417 = vld [vmem:[%s240 + $0xf0] sm:$0xff]
        %v418 = vld [vmem:[%s240 + $0xf8] sm:$0xff]
        %v419 = vld [vmem:[%s240 + $0x100] sm:$0xff]
        %v420 = vld [vmem:[%s240 + $0x108] sm:$0xff]
        %v421 = vld [vmem:[%s240 + $0x110] sm:$0xff]
        %v422 = vld [vmem:[%s240 + $0x118] sm:$0xff]
        %v423 = vld [vmem:[%s240 + $0x120] sm:$0xff]
        %v424 = vld [vmem:[%s240 + $0x128] sm:$0xff]
        %v425 = vld [vmem:[%s240 + $0x130] sm:$0xff]
        %v426 = vld [vmem:[%s240 + $0x138] sm:$0xff]
        %v427 = vld [vmem:[%s240 + $0x140] sm:$0xff]
        %v428 = vld [vmem:[%s240 + $0x148] sm:$0xff]
        %v429 = vld [vmem:[%s240 + $0x150] sm:$0xff]
        %v430 = vld [vmem:[%s240 + $0x158] sm:$0xff]
        %v431 = vld [vmem:[%s240 + $0x160] sm:$0xff]
        %v432 = vld [vmem:[%s240 + $0x168] sm:$0xff]
        %v433 = vld [vmem:[%s240 + $0x170] sm:$0xff]
        %v434 = vld [vmem:[%s240 + $0x178] sm:$0xff]
        %v435 = vld [vmem:[%s240 + $0x180] sm:$0xff]
        %v436 = vld [vmem:[%s240 + $0x188] sm:$0xff]
        %v437 = vld [vmem:[%s240 + $0x190] sm:$0xff]
        %v438 = vld [vmem:[%s240 + $0x198] sm:$0xff]
        %v439 = vld [vmem:[%s240 + $0x1a0] sm:$0xff]
        %v440 = vld [vmem:[%s240 + $0x1a8] sm:$0xff]
        %v441 = vld [vmem:[%s240 + $0x1b0] sm:$0xff]
        %v442 = vld [vmem:[%s240 + $0x1b8] sm:$0xff]
        %v443 = vld [vmem:[%s240 + $0x1c0] sm:$0xff]
        %v444 = vld [vmem:[%s240 + $0x1c8] sm:$0xff]
        %v445 = vld [vmem:[%s240 + $0x1d0] sm:$0xff]
        %v446 = vld [vmem:[%s240 + $0x1d8] sm:$0xff]
        %v447 = vld [vmem:[%s240 + $0x1e0] sm:$0xff]
        %v448 = vld [vmem:[%s240 + $0x1e8] sm:$0xff]
        %v449 = vld [vmem:[%s240 + $0x1f0] sm:$0xff]
        %v450 = vld [vmem:[%s240 + $0x1f8] sm:$0xff]
        %v451 = vld [vmem:[%s240 + $0x200] sm:$0xff]
        %v452 = vld [vmem:[%s240 + $0x208] sm:$0xff]
        %v453 = vld [vmem:[%s240 + $0x210] sm:$0xff]
        %v454 = vld [vmem:[%s240 + $0x218] sm:$0xff]
        %v455 = vld [vmem:[%s240 + $0x220] sm:$0xff]
        %v456 = vld [vmem:[%s240 + $0x228] sm:$0xff]
        %v457 = vld [vmem:[%s240 + $0x230] sm:$0xff]
        %v458 = vld [vmem:[%s240 + $0x238] sm:$0xff]
        %vm459 = vcmp.eq.s32.totalorder %v315, 1
        %vm460 = vcmp.eq.s32.totalorder %v316, 1
        %vm461 = vcmp.eq.s32.totalorder %v317, 1
        %vm462 = vcmp.eq.s32.totalorder %v318, 1
        %vm463 = vcmp.eq.s32.totalorder %v319, 1
        %vm464 = vcmp.eq.s32.totalorder %v320, 1
        %vm465 = vcmp.eq.s32.totalorder %v321, 1
        %vm466 = vcmp.eq.s32.totalorder %v322, 1
        %vm467 = vcmp.eq.s32.totalorder %v323, 1
        %vm468 = vcmp.eq.s32.totalorder %v324, 1
        %vm469 = vcmp.eq.s32.totalorder %v325, 1
        %vm470 = vcmp.eq.s32.totalorder %v326, 1
        %vm471 = vcmp.eq.s32.totalorder %v327, 1
        %vm472 = vcmp.eq.s32.totalorder %v328, 1
        %vm473 = vcmp.eq.s32.totalorder %v329, 1
        %vm474 = vcmp.eq.s32.totalorder %v330, 1
        %vm475 = vcmp.eq.s32.totalorder %v331, 1
        %vm476 = vcmp.eq.s32.totalorder %v332, 1
        %vm477 = vcmp.eq.s32.totalorder %v333, 1
        %vm478 = vcmp.eq.s32.totalorder %v334, 1
        %vm479 = vcmp.eq.s32.totalorder %v335, 1
        %vm480 = vcmp.eq.s32.totalorder %v336, 1
        %vm481 = vcmp.eq.s32.totalorder %v337, 1
        %vm482 = vcmp.eq.s32.totalorder %v338, 1
        %vm483 = vcmp.eq.s32.totalorder %v339, 1
        %vm484 = vcmp.eq.s32.totalorder %v340, 1
        %vm485 = vcmp.eq.s32.totalorder %v341, 1
        %vm486 = vcmp.eq.s32.totalorder %v342, 1
        %vm487 = vcmp.eq.s32.totalorder %v343, 1
        %vm488 = vcmp.eq.s32.totalorder %v344, 1
        %vm489 = vcmp.eq.s32.totalorder %v345, 1
        %vm490 = vcmp.eq.s32.totalorder %v346, 1
        %vm491 = vcmp.eq.s32.totalorder %v347, 1
        %vm492 = vcmp.eq.s32.totalorder %v348, 1
        %vm493 = vcmp.eq.s32.totalorder %v349, 1
        %vm494 = vcmp.eq.s32.totalorder %v350, 1
        %vm495 = vcmp.eq.s32.totalorder %v351, 1
        %vm496 = vcmp.eq.s32.totalorder %v352, 1
        %vm497 = vcmp.eq.s32.totalorder %v353, 1
        %vm498 = vcmp.eq.s32.totalorder %v354, 1
        %vm499 = vcmp.eq.s32.totalorder %v355, 1
        %vm500 = vcmp.eq.s32.totalorder %v356, 1
        %vm501 = vcmp.eq.s32.totalorder %v357, 1
        %vm502 = vcmp.eq.s32.totalorder %v358, 1
        %vm503 = vcmp.eq.s32.totalorder %v359, 1
        %vm504 = vcmp.eq.s32.totalorder %v360, 1
        %vm505 = vcmp.eq.s32.totalorder %v361, 1
        %vm506 = vcmp.eq.s32.totalorder %v362, 1
        %vm507 = vcmp.eq.s32.totalorder %v363, 1
        %vm508 = vcmp.eq.s32.totalorder %v364, 1
        %vm509 = vcmp.eq.s32.totalorder %v365, 1
        %vm510 = vcmp.eq.s32.totalorder %v366, 1
        %vm511 = vcmp.eq.s32.totalorder %v367, 1
        %vm512 = vcmp.eq.s32.totalorder %v368, 1
        %vm513 = vcmp.eq.s32.totalorder %v369, 1
        %vm514 = vcmp.eq.s32.totalorder %v370, 1
        %vm515 = vcmp.eq.s32.totalorder %v371, 1
        %vm516 = vcmp.eq.s32.totalorder %v372, 1
        %vm517 = vcmp.eq.s32.totalorder %v373, 1
        %vm518 = vcmp.eq.s32.totalorder %v374, 1
        %vm519 = vcmp.eq.s32.totalorder %v375, 1
        %vm520 = vcmp.eq.s32.totalorder %v376, 1
        %vm521 = vcmp.eq.s32.totalorder %v377, 1
        %vm522 = vcmp.eq.s32.totalorder %v378, 1
        %vm523 = vcmp.eq.s32.totalorder %v379, 1
        %vm524 = vcmp.eq.s32.totalorder %v380, 1
        %vm525 = vcmp.eq.s32.totalorder %v381, 1
        %vm526 = vcmp.eq.s32.totalorder %v382, 1
        %vm527 = vcmp.eq.s32.totalorder %v383, 1
        %vm528 = vcmp.eq.s32.totalorder %v384, 1
        %vm529 = vcmp.eq.s32.totalorder %v385, 1
        %vm530 = vcmp.eq.s32.totalorder %v386, 1
        %531 = vrot.lane.b32.xlu0 %v387, 120
        %v532 = vpop.permute.xlu0 %531
        %533 = vrot.lane.b32.xlu0 %v388, 120
        %v534 = vpop.permute.xlu0 %533
        %535 = vrot.lane.b32.xlu0 %v389, 120
        %v536 = vpop.permute.xlu0 %535
        %537 = vrot.lane.b32.xlu0 %v390, 120
        %v538 = vpop.permute.xlu0 %537
        %539 = vrot.lane.b32.xlu0 %v391, 120
        %v540 = vpop.permute.xlu0 %539
        %541 = vrot.lane.b32.xlu0 %v392, 120
        %v542 = vpop.permute.xlu0 %541
        %543 = vrot.lane.b32.xlu0 %v393, 120
        %v544 = vpop.permute.xlu0 %543
        %545 = vrot.lane.b32.xlu0 %v394, 120
        %v546 = vpop.permute.xlu0 %545
        %547 = vrot.lane.b32.xlu0 %v395, 120
        %v548 = vpop.permute.xlu0 %547
        %549 = vrot.lane.b32.xlu0 %v396, 120
        %v550 = vpop.permute.xlu0 %549
        %551 = vrot.lane.b32.xlu0 %v397, 120
        %v552 = vpop.permute.xlu0 %551
        %553 = vrot.lane.b32.xlu0 %v398, 120
        %v554 = vpop.permute.xlu0 %553
        %555 = vrot.lane.b32.xlu0 %v399, 120
        %v556 = vpop.permute.xlu0 %555
        %557 = vrot.lane.b32.xlu0 %v400, 120
        %v558 = vpop.permute.xlu0 %557
        %559 = vrot.lane.b32.xlu0 %v401, 120
        %v560 = vpop.permute.xlu0 %559
        %561 = vrot.lane.b32.xlu0 %v402, 120
        %v562 = vpop.permute.xlu0 %561
        %563 = vrot.lane.b32.xlu0 %v403, 120
        %v564 = vpop.permute.xlu0 %563
        %565 = vrot.lane.b32.xlu0 %v404, 120
        %v566 = vpop.permute.xlu0 %565
        %567 = vrot.lane.b32.xlu0 %v405, 120
        %v568 = vpop.permute.xlu0 %567
        %569 = vrot.lane.b32.xlu0 %v406, 120
        %v570 = vpop.permute.xlu0 %569
        %571 = vrot.lane.b32.xlu0 %v407, 120
        %v572 = vpop.permute.xlu0 %571
        %573 = vrot.lane.b32.xlu0 %v408, 120
        %v574 = vpop.permute.xlu0 %573
        %575 = vrot.lane.b32.xlu0 %v409, 120
        %v576 = vpop.permute.xlu0 %575
        %577 = vrot.lane.b32.xlu0 %v410, 120
        %v578 = vpop.permute.xlu0 %577
        %579 = vrot.lane.b32.xlu0 %v411, 120
        %v580 = vpop.permute.xlu0 %579
        %581 = vrot.lane.b32.xlu0 %v412, 120
        %v582 = vpop.permute.xlu0 %581
        %583 = vrot.lane.b32.xlu0 %v413, 120
        %v584 = vpop.permute.xlu0 %583
        %585 = vrot.lane.b32.xlu0 %v414, 120
        %v586 = vpop.permute.xlu0 %585
        %587 = vrot.lane.b32.xlu0 %v415, 120
        %v588 = vpop.permute.xlu0 %587
        %589 = vrot.lane.b32.xlu0 %v416, 120
        %v590 = vpop.permute.xlu0 %589
        %591 = vrot.lane.b32.xlu0 %v417, 120
        %v592 = vpop.permute.xlu0 %591
        %593 = vrot.lane.b32.xlu0 %v418, 120
        %v594 = vpop.permute.xlu0 %593
        %595 = vrot.lane.b32.xlu0 %v419, 120
        %v596 = vpop.permute.xlu0 %595
        %597 = vrot.lane.b32.xlu0 %v420, 120
        %v598 = vpop.permute.xlu0 %597
        %599 = vrot.lane.b32.xlu0 %v421, 120
        %v600 = vpop.permute.xlu0 %599
        %601 = vrot.lane.b32.xlu0 %v422, 120
        %v602 = vpop.permute.xlu0 %601
        %603 = vrot.lane.b32.xlu0 %v423, 120
        %v604 = vpop.permute.xlu0 %603
        %605 = vrot.lane.b32.xlu0 %v424, 120
        %v606 = vpop.permute.xlu0 %605
        %607 = vrot.lane.b32.xlu0 %v425, 120
        %v608 = vpop.permute.xlu0 %607
        %609 = vrot.lane.b32.xlu0 %v426, 120
        %v610 = vpop.permute.xlu0 %609
        %611 = vrot.lane.b32.xlu0 %v427, 120
        %v612 = vpop.permute.xlu0 %611
        %613 = vrot.lane.b32.xlu0 %v428, 120
        %v614 = vpop.permute.xlu0 %613
        %615 = vrot.lane.b32.xlu0 %v429, 120
        %v616 = vpop.permute.xlu0 %615
        %617 = vrot.lane.b32.xlu0 %v430, 120
        %v618 = vpop.permute.xlu0 %617
        %619 = vrot.lane.b32.xlu0 %v431, 120
        %v620 = vpop.permute.xlu0 %619
        %621 = vrot.lane.b32.xlu0 %v432, 120
        %v622 = vpop.permute.xlu0 %621
        %623 = vrot.lane.b32.xlu0 %v433, 120
        %v624 = vpop.permute.xlu0 %623
        %625 = vrot.lane.b32.xlu0 %v434, 120
        %v626 = vpop.permute.xlu0 %625
        %627 = vrot.lane.b32.xlu0 %v435, 120
        %v628 = vpop.permute.xlu0 %627
        %629 = vrot.lane.b32.xlu0 %v436, 120
        %v630 = vpop.permute.xlu0 %629
        %631 = vrot.lane.b32.xlu0 %v437, 120
        %v632 = vpop.permute.xlu0 %631
        %633 = vrot.lane.b32.xlu0 %v438, 120
        %v634 = vpop.permute.xlu0 %633
        %635 = vrot.lane.b32.xlu0 %v439, 120
        %v636 = vpop.permute.xlu0 %635
        %637 = vrot.lane.b32.xlu0 %v440, 120
        %v638 = vpop.permute.xlu0 %637
        %639 = vrot.lane.b32.xlu0 %v441, 120
        %v640 = vpop.permute.xlu0 %639
        %641 = vrot.lane.b32.xlu0 %v442, 120
        %v642 = vpop.permute.xlu0 %641
        %643 = vrot.lane.b32.xlu0 %v443, 120
        %v644 = vpop.permute.xlu0 %643
        %645 = vrot.lane.b32.xlu0 %v444, 120
        %v646 = vpop.permute.xlu0 %645
        %647 = vrot.lane.b32.xlu0 %v445, 120
        %v648 = vpop.permute.xlu0 %647
        %649 = vrot.lane.b32.xlu0 %v446, 120
        %v650 = vpop.permute.xlu0 %649
        %651 = vrot.lane.b32.xlu0 %v447, 120
        %v652 = vpop.permute.xlu0 %651
        %653 = vrot.lane.b32.xlu0 %v448, 120
        %v654 = vpop.permute.xlu0 %653
        %655 = vrot.lane.b32.xlu0 %v449, 120
        %v656 = vpop.permute.xlu0 %655
        %657 = vrot.lane.b32.xlu0 %v450, 120
        %v658 = vpop.permute.xlu0 %657
        %659 = vrot.lane.b32.xlu0 %v451, 120
        %v660 = vpop.permute.xlu0 %659
        %661 = vrot.lane.b32.xlu0 %v452, 120
        %v662 = vpop.permute.xlu0 %661
        %663 = vrot.lane.b32.xlu0 %v453, 120
        %v664 = vpop.permute.xlu0 %663
        %665 = vrot.lane.b32.xlu0 %v454, 120
        %v666 = vpop.permute.xlu0 %665
        %667 = vrot.lane.b32.xlu0 %v455, 120
        %v668 = vpop.permute.xlu0 %667
        %669 = vrot.lane.b32.xlu0 %v456, 120
        %v670 = vpop.permute.xlu0 %669
        %671 = vrot.lane.b32.xlu0 %v457, 120
        %v672 = vpop.permute.xlu0 %671
        %673 = vrot.lane.b32.xlu0 %v458, 120
        %v674 = vpop.permute.xlu0 %673
        %v675 = vsel %vm459, %v532, %v387
        %v676 = vsel %vm460, %v534, %v388
        %v677 = vsel %vm461, %v536, %v389
        %v678 = vsel %vm462, %v538, %v390
        %v679 = vsel %vm463, %v540, %v391
        %v680 = vsel %vm464, %v542, %v392
        %v681 = vsel %vm465, %v544, %v393
        %v682 = vsel %vm466, %v546, %v394
        %v683 = vsel %vm467, %v548, %v395
        %v684 = vsel %vm468, %v550, %v396
        %v685 = vsel %vm469, %v552, %v397
        %v686 = vsel %vm470, %v554, %v398
        %v687 = vsel %vm471, %v556, %v399
        %v688 = vsel %vm472, %v558, %v400
        %v689 = vsel %vm473, %v560, %v401
        %v690 = vsel %vm474, %v562, %v402
        %v691 = vsel %vm475, %v564, %v403
        %v692 = vsel %vm476, %v566, %v404
        %v693 = vsel %vm477, %v568, %v405
        %v694 = vsel %vm478, %v570, %v406
        %v695 = vsel %vm479, %v572, %v407
        %v696 = vsel %vm480, %v574, %v408
        %v697 = vsel %vm481, %v576, %v409
        %v698 = vsel %vm482, %v578, %v410
        %v699 = vsel %vm483, %v580, %v411
        %v700 = vsel %vm484, %v582, %v412
        %v701 = vsel %vm485, %v584, %v413
        %v702 = vsel %vm486, %v586, %v414
        %v703 = vsel %vm487, %v588, %v415
        %v704 = vsel %vm488, %v590, %v416
        %v705 = vsel %vm489, %v592, %v417
        %v706 = vsel %vm490, %v594, %v418
        %v707 = vsel %vm491, %v596, %v419
        %v708 = vsel %vm492, %v598, %v420
        %v709 = vsel %vm493, %v600, %v421
        %v710 = vsel %vm494, %v602, %v422
        %v711 = vsel %vm495, %v604, %v423
        %v712 = vsel %vm496, %v606, %v424
        %v713 = vsel %vm497, %v608, %v425
        %v714 = vsel %vm498, %v610, %v426
        %v715 = vsel %vm499, %v612, %v427
        %v716 = vsel %vm500, %v614, %v428
        %v717 = vsel %vm501, %v616, %v429
        %v718 = vsel %vm502, %v618, %v430
        %v719 = vsel %vm503, %v620, %v431
        %v720 = vsel %vm504, %v622, %v432
        %v721 = vsel %vm505, %v624, %v433
        %v722 = vsel %vm506, %v626, %v434
        %v723 = vsel %vm507, %v628, %v435
        %v724 = vsel %vm508, %v630, %v436
        %v725 = vsel %vm509, %v632, %v437
        %v726 = vsel %vm510, %v634, %v438
        %v727 = vsel %vm511, %v636, %v439
        %v728 = vsel %vm512, %v638, %v440
        %v729 = vsel %vm513, %v640, %v441
        %v730 = vsel %vm514, %v642, %v442
        %v731 = vsel %vm515, %v644, %v443
        %v732 = vsel %vm516, %v646, %v444
        %v733 = vsel %vm517, %v648, %v445
        %v734 = vsel %vm518, %v650, %v446
        %v735 = vsel %vm519, %v652, %v447
        %v736 = vsel %vm520, %v654, %v448
        %v737 = vsel %vm521, %v656, %v449
        %v738 = vsel %vm522, %v658, %v450
        %v739 = vsel %vm523, %v660, %v451
        %v740 = vsel %vm524, %v662, %v452
        %v741 = vsel %vm525, %v664, %v453
        %v742 = vsel %vm526, %v666, %v454
        %v743 = vsel %vm527, %v668, %v455
        %v744 = vsel %vm528, %v670, %v456
        %v745 = vsel %vm529, %v672, %v457
        %v746 = vsel %vm530, %v674, %v458
        %vm747 = vcmp.eq.s32.totalorder %v315, 2
        %vm748 = vcmp.eq.s32.totalorder %v316, 2
        %vm749 = vcmp.eq.s32.totalorder %v317, 2
        %vm750 = vcmp.eq.s32.totalorder %v318, 2
        %vm751 = vcmp.eq.s32.totalorder %v319, 2
        %vm752 = vcmp.eq.s32.totalorder %v320, 2
        %vm753 = vcmp.eq.s32.totalorder %v321, 2
        %vm754 = vcmp.eq.s32.totalorder %v322, 2
        %vm755 = vcmp.eq.s32.totalorder %v323, 2
        %vm756 = vcmp.eq.s32.totalorder %v324, 2
        %vm757 = vcmp.eq.s32.totalorder %v325, 2
        %vm758 = vcmp.eq.s32.totalorder %v326, 2
        %vm759 = vcmp.eq.s32.totalorder %v327, 2
        %vm760 = vcmp.eq.s32.totalorder %v328, 2
        %vm761 = vcmp.eq.s32.totalorder %v329, 2
        %vm762 = vcmp.eq.s32.totalorder %v330, 2
        %vm763 = vcmp.eq.s32.totalorder %v331, 2
        %vm764 = vcmp.eq.s32.totalorder %v332, 2
        %vm765 = vcmp.eq.s32.totalorder %v333, 2
        %vm766 = vcmp.eq.s32.totalorder %v334, 2
        %vm767 = vcmp.eq.s32.totalorder %v335, 2
        %vm768 = vcmp.eq.s32.totalorder %v336, 2
        %vm769 = vcmp.eq.s32.totalorder %v337, 2
        %vm770 = vcmp.eq.s32.totalorder %v338, 2
        %vm771 = vcmp.eq.s32.totalorder %v339, 2
        %vm772 = vcmp.eq.s32.totalorder %v340, 2
        %vm773 = vcmp.eq.s32.totalorder %v341, 2
        %vm774 = vcmp.eq.s32.totalorder %v342, 2
        %vm775 = vcmp.eq.s32.totalorder %v343, 2
        %vm776 = vcmp.eq.s32.totalorder %v344, 2
        %vm777 = vcmp.eq.s32.totalorder %v345, 2
        %vm778 = vcmp.eq.s32.totalorder %v346, 2
        %vm779 = vcmp.eq.s32.totalorder %v347, 2
        %vm780 = vcmp.eq.s32.totalorder %v348, 2
        %vm781 = vcmp.eq.s32.totalorder %v349, 2
        %vm782 = vcmp.eq.s32.totalorder %v350, 2
        %vm783 = vcmp.eq.s32.totalorder %v351, 2
        %vm784 = vcmp.eq.s32.totalorder %v352, 2
        %vm785 = vcmp.eq.s32.totalorder %v353, 2
        %vm786 = vcmp.eq.s32.totalorder %v354, 2
        %vm787 = vcmp.eq.s32.totalorder %v355, 2
        %vm788 = vcmp.eq.s32.totalorder %v356, 2
        %vm789 = vcmp.eq.s32.totalorder %v357, 2
        %vm790 = vcmp.eq.s32.totalorder %v358, 2
        %vm791 = vcmp.eq.s32.totalorder %v359, 2
        %vm792 = vcmp.eq.s32.totalorder %v360, 2
        %vm793 = vcmp.eq.s32.totalorder %v361, 2
        %vm794 = vcmp.eq.s32.totalorder %v362, 2
        %vm795 = vcmp.eq.s32.totalorder %v363, 2
        %vm796 = vcmp.eq.s32.totalorder %v364, 2
        %vm797 = vcmp.eq.s32.totalorder %v365, 2
        %vm798 = vcmp.eq.s32.totalorder %v366, 2
        %vm799 = vcmp.eq.s32.totalorder %v367, 2
        %vm800 = vcmp.eq.s32.totalorder %v368, 2
        %vm801 = vcmp.eq.s32.totalorder %v369, 2
        %vm802 = vcmp.eq.s32.totalorder %v370, 2
        %vm803 = vcmp.eq.s32.totalorder %v371, 2
        %vm804 = vcmp.eq.s32.totalorder %v372, 2
        %vm805 = vcmp.eq.s32.totalorder %v373, 2
        %vm806 = vcmp.eq.s32.totalorder %v374, 2
        %vm807 = vcmp.eq.s32.totalorder %v375, 2
        %vm808 = vcmp.eq.s32.totalorder %v376, 2
        %vm809 = vcmp.eq.s32.totalorder %v377, 2
        %vm810 = vcmp.eq.s32.totalorder %v378, 2
        %vm811 = vcmp.eq.s32.totalorder %v379, 2
        %vm812 = vcmp.eq.s32.totalorder %v380, 2
        %vm813 = vcmp.eq.s32.totalorder %v381, 2
        %vm814 = vcmp.eq.s32.totalorder %v382, 2
        %vm815 = vcmp.eq.s32.totalorder %v383, 2
        %vm816 = vcmp.eq.s32.totalorder %v384, 2
        %vm817 = vcmp.eq.s32.totalorder %v385, 2
        %vm818 = vcmp.eq.s32.totalorder %v386, 2
        %819 = vrot.lane.b32.xlu0 %v387, 112
        %v820 = vpop.permute.xlu0 %819
        %821 = vrot.lane.b32.xlu0 %v388, 112
        %v822 = vpop.permute.xlu0 %821
        %823 = vrot.lane.b32.xlu0 %v389, 112
        %v824 = vpop.permute.xlu0 %823
        %825 = vrot.lane.b32.xlu0 %v390, 112
        %v826 = vpop.permute.xlu0 %825
        %827 = vrot.lane.b32.xlu0 %v391, 112
        %v828 = vpop.permute.xlu0 %827
        %829 = vrot.lane.b32.xlu0 %v392, 112
        %v830 = vpop.permute.xlu0 %829
        %831 = vrot.lane.b32.xlu0 %v393, 112
        %v832 = vpop.permute.xlu0 %831
        %833 = vrot.lane.b32.xlu0 %v394, 112
        %v834 = vpop.permute.xlu0 %833
        %835 = vrot.lane.b32.xlu0 %v395, 112
        %v836 = vpop.permute.xlu0 %835
        %837 = vrot.lane.b32.xlu0 %v396, 112
        %v838 = vpop.permute.xlu0 %837
        %839 = vrot.lane.b32.xlu0 %v397, 112
        %v840 = vpop.permute.xlu0 %839
        %841 = vrot.lane.b32.xlu0 %v398, 112
        %v842 = vpop.permute.xlu0 %841
        %843 = vrot.lane.b32.xlu0 %v399, 112
        %v844 = vpop.permute.xlu0 %843
        %845 = vrot.lane.b32.xlu0 %v400, 112
        %v846 = vpop.permute.xlu0 %845
        %847 = vrot.lane.b32.xlu0 %v401, 112
        %v848 = vpop.permute.xlu0 %847
        %849 = vrot.lane.b32.xlu0 %v402, 112
        %v850 = vpop.permute.xlu0 %849
        %851 = vrot.lane.b32.xlu0 %v403, 112
        %v852 = vpop.permute.xlu0 %851
        %853 = vrot.lane.b32.xlu0 %v404, 112
        %v854 = vpop.permute.xlu0 %853
        %855 = vrot.lane.b32.xlu0 %v405, 112
        %v856 = vpop.permute.xlu0 %855
        %857 = vrot.lane.b32.xlu0 %v406, 112
        %v858 = vpop.permute.xlu0 %857
        %859 = vrot.lane.b32.xlu0 %v407, 112
        %v860 = vpop.permute.xlu0 %859
        %861 = vrot.lane.b32.xlu0 %v408, 112
        %v862 = vpop.permute.xlu0 %861
        %863 = vrot.lane.b32.xlu0 %v409, 112
        %v864 = vpop.permute.xlu0 %863
        %865 = vrot.lane.b32.xlu0 %v410, 112
        %v866 = vpop.permute.xlu0 %865
        %867 = vrot.lane.b32.xlu0 %v411, 112
        %v868 = vpop.permute.xlu0 %867
        %869 = vrot.lane.b32.xlu0 %v412, 112
        %v870 = vpop.permute.xlu0 %869
        %871 = vrot.lane.b32.xlu0 %v413, 112
        %v872 = vpop.permute.xlu0 %871
        %873 = vrot.lane.b32.xlu0 %v414, 112
        %v874 = vpop.permute.xlu0 %873
        %875 = vrot.lane.b32.xlu0 %v415, 112
        %v876 = vpop.permute.xlu0 %875
        %877 = vrot.lane.b32.xlu0 %v416, 112
        %v878 = vpop.permute.xlu0 %877
        %879 = vrot.lane.b32.xlu0 %v417, 112
        %v880 = vpop.permute.xlu0 %879
        %881 = vrot.lane.b32.xlu0 %v418, 112
        %v882 = vpop.permute.xlu0 %881
        %883 = vrot.lane.b32.xlu0 %v419, 112
        %v884 = vpop.permute.xlu0 %883
        %885 = vrot.lane.b32.xlu0 %v420, 112
        %v886 = vpop.permute.xlu0 %885
        %887 = vrot.lane.b32.xlu0 %v421, 112
        %v888 = vpop.permute.xlu0 %887
        %889 = vrot.lane.b32.xlu0 %v422, 112
        %v890 = vpop.permute.xlu0 %889
        %891 = vrot.lane.b32.xlu0 %v423, 112
        %v892 = vpop.permute.xlu0 %891
        %893 = vrot.lane.b32.xlu0 %v424, 112
        %v894 = vpop.permute.xlu0 %893
        %895 = vrot.lane.b32.xlu0 %v425, 112
        %v896 = vpop.permute.xlu0 %895
        %897 = vrot.lane.b32.xlu0 %v426, 112
        %v898 = vpop.permute.xlu0 %897
        %899 = vrot.lane.b32.xlu0 %v427, 112
        %v900 = vpop.permute.xlu0 %899
        %901 = vrot.lane.b32.xlu0 %v428, 112
        %v902 = vpop.permute.xlu0 %901
        %903 = vrot.lane.b32.xlu0 %v429, 112
        %v904 = vpop.permute.xlu0 %903
        %905 = vrot.lane.b32.xlu0 %v430, 112
        %v906 = vpop.permute.xlu0 %905
        %907 = vrot.lane.b32.xlu0 %v431, 112
        %v908 = vpop.permute.xlu0 %907
        %909 = vrot.lane.b32.xlu0 %v432, 112
        %v910 = vpop.permute.xlu0 %909
        %911 = vrot.lane.b32.xlu0 %v433, 112
        %v912 = vpop.permute.xlu0 %911
        %913 = vrot.lane.b32.xlu0 %v434, 112
        %v914 = vpop.permute.xlu0 %913
        %915 = vrot.lane.b32.xlu0 %v435, 112
        %v916 = vpop.permute.xlu0 %915
        %917 = vrot.lane.b32.xlu0 %v436, 112
        %v918 = vpop.permute.xlu0 %917
        %919 = vrot.lane.b32.xlu0 %v437, 112
        %v920 = vpop.permute.xlu0 %919
        %921 = vrot.lane.b32.xlu0 %v438, 112
        %v922 = vpop.permute.xlu0 %921
        %923 = vrot.lane.b32.xlu0 %v439, 112
        %v924 = vpop.permute.xlu0 %923
        %925 = vrot.lane.b32.xlu0 %v440, 112
        %v926 = vpop.permute.xlu0 %925
        %927 = vrot.lane.b32.xlu0 %v441, 112
        %v928 = vpop.permute.xlu0 %927
        %929 = vrot.lane.b32.xlu0 %v442, 112
        %v930 = vpop.permute.xlu0 %929
        %931 = vrot.lane.b32.xlu0 %v443, 112
        %v932 = vpop.permute.xlu0 %931
        %933 = vrot.lane.b32.xlu0 %v444, 112
        %v934 = vpop.permute.xlu0 %933
        %935 = vrot.lane.b32.xlu0 %v445, 112
        %v936 = vpop.permute.xlu0 %935
        %937 = vrot.lane.b32.xlu0 %v446, 112
        %v938 = vpop.permute.xlu0 %937
        %939 = vrot.lane.b32.xlu0 %v447, 112
        %v940 = vpop.permute.xlu0 %939
        %941 = vrot.lane.b32.xlu0 %v448, 112
        %v942 = vpop.permute.xlu0 %941
        %943 = vrot.lane.b32.xlu0 %v449, 112
        %v944 = vpop.permute.xlu0 %943
        %945 = vrot.lane.b32.xlu0 %v450, 112
        %v946 = vpop.permute.xlu0 %945
        %947 = vrot.lane.b32.xlu0 %v451, 112
        %v948 = vpop.permute.xlu0 %947
        %949 = vrot.lane.b32.xlu0 %v452, 112
        %v950 = vpop.permute.xlu0 %949
        %951 = vrot.lane.b32.xlu0 %v453, 112
        %v952 = vpop.permute.xlu0 %951
        %953 = vrot.lane.b32.xlu0 %v454, 112
        %v954 = vpop.permute.xlu0 %953
        %955 = vrot.lane.b32.xlu0 %v455, 112
        %v956 = vpop.permute.xlu0 %955
        %957 = vrot.lane.b32.xlu0 %v456, 112
        %v958 = vpop.permute.xlu0 %957
        %959 = vrot.lane.b32.xlu0 %v457, 112
        %v960 = vpop.permute.xlu0 %959
        %961 = vrot.lane.b32.xlu0 %v458, 112
        %v962 = vpop.permute.xlu0 %961
        %v963 = vsel %vm747, %v820, %v675
        %v964 = vsel %vm748, %v822, %v676
        %v965 = vsel %vm749, %v824, %v677
        %v966 = vsel %vm750, %v826, %v678
        %v967 = vsel %vm751, %v828, %v679
        %v968 = vsel %vm752, %v830, %v680
        %v969 = vsel %vm753, %v832, %v681
        %v970 = vsel %vm754, %v834, %v682
        %v971 = vsel %vm755, %v836, %v683
        %v972 = vsel %vm756, %v838, %v684
        %v973 = vsel %vm757, %v840, %v685
        %v974 = vsel %vm758, %v842, %v686
        %v975 = vsel %vm759, %v844, %v687
        %v976 = vsel %vm760, %v846, %v688
        %v977 = vsel %vm761, %v848, %v689
        %v978 = vsel %vm762, %v850, %v690
        %v979 = vsel %vm763, %v852, %v691
        %v980 = vsel %vm764, %v854, %v692
        %v981 = vsel %vm765, %v856, %v693
        %v982 = vsel %vm766, %v858, %v694
        %v983 = vsel %vm767, %v860, %v695
        %v984 = vsel %vm768, %v862, %v696
        %v985 = vsel %vm769, %v864, %v697
        %v986 = vsel %vm770, %v866, %v698
        %v987 = vsel %vm771, %v868, %v699
        %v988 = vsel %vm772, %v870, %v700
        %v989 = vsel %vm773, %v872, %v701
        %v990 = vsel %vm774, %v874, %v702
        %v991 = vsel %vm775, %v876, %v703
        %v992 = vsel %vm776, %v878, %v704
        %v993 = vsel %vm777, %v880, %v705
        %v994 = vsel %vm778, %v882, %v706
        %v995 = vsel %vm779, %v884, %v707
        %v996 = vsel %vm780, %v886, %v708
        %v997 = vsel %vm781, %v888, %v709
        %v998 = vsel %vm782, %v890, %v710
        %v999 = vsel %vm783, %v892, %v711
        %v1000 = vsel %vm784, %v894, %v712
        %v1001 = vsel %vm785, %v896, %v713
        %v1002 = vsel %vm786, %v898, %v714
        %v1003 = vsel %vm787, %v900, %v715
        %v1004 = vsel %vm788, %v902, %v716
        %v1005 = vsel %vm789, %v904, %v717
        %v1006 = vsel %vm790, %v906, %v718
        %v1007 = vsel %vm791, %v908, %v719
        %v1008 = vsel %vm792, %v910, %v720
        %v1009 = vsel %vm793, %v912, %v721
        %v1010 = vsel %vm794, %v914, %v722
        %v1011 = vsel %vm795, %v916, %v723
        %v1012 = vsel %vm796, %v918, %v724
        %v1013 = vsel %vm797, %v920, %v725
        %v1014 = vsel %vm798, %v922, %v726
        %v1015 = vsel %vm799, %v924, %v727
        %v1016 = vsel %vm800, %v926, %v728
        %v1017 = vsel %vm801, %v928, %v729
        %v1018 = vsel %vm802, %v930, %v730
        %v1019 = vsel %vm803, %v932, %v731
        %v1020 = vsel %vm804, %v934, %v732
        %v1021 = vsel %vm805, %v936, %v733
        %v1022 = vsel %vm806, %v938, %v734
        %v1023 = vsel %vm807, %v940, %v735
        %v1024 = vsel %vm808, %v942, %v736
        %v1025 = vsel %vm809, %v944, %v737
        %v1026 = vsel %vm810, %v946, %v738
        %v1027 = vsel %vm811, %v948, %v739
        %v1028 = vsel %vm812, %v950, %v740
        %v1029 = vsel %vm813, %v952, %v741
        %v1030 = vsel %vm814, %v954, %v742
        %v1031 = vsel %vm815, %v956, %v743
        %v1032 = vsel %vm816, %v958, %v744
        %v1033 = vsel %vm817, %v960, %v745
        %v1034 = vsel %vm818, %v962, %v746
        %vm1035 = vcmp.eq.s32.totalorder %v315, 3
        %vm1036 = vcmp.eq.s32.totalorder %v316, 3
        %vm1037 = vcmp.eq.s32.totalorder %v317, 3
        %vm1038 = vcmp.eq.s32.totalorder %v318, 3
        %vm1039 = vcmp.eq.s32.totalorder %v319, 3
        %vm1040 = vcmp.eq.s32.totalorder %v320, 3
        %vm1041 = vcmp.eq.s32.totalorder %v321, 3
        %vm1042 = vcmp.eq.s32.totalorder %v322, 3
        %vm1043 = vcmp.eq.s32.totalorder %v323, 3
        %vm1044 = vcmp.eq.s32.totalorder %v324, 3
        %vm1045 = vcmp.eq.s32.totalorder %v325, 3
        %vm1046 = vcmp.eq.s32.totalorder %v326, 3
        %vm1047 = vcmp.eq.s32.totalorder %v327, 3
        %vm1048 = vcmp.eq.s32.totalorder %v328, 3
        %vm1049 = vcmp.eq.s32.totalorder %v329, 3
        %vm1050 = vcmp.eq.s32.totalorder %v330, 3
        %vm1051 = vcmp.eq.s32.totalorder %v331, 3
        %vm1052 = vcmp.eq.s32.totalorder %v332, 3
        %vm1053 = vcmp.eq.s32.totalorder %v333, 3
        %vm1054 = vcmp.eq.s32.totalorder %v334, 3
        %vm1055 = vcmp.eq.s32.totalorder %v335, 3
        %vm1056 = vcmp.eq.s32.totalorder %v336, 3
        %vm1057 = vcmp.eq.s32.totalorder %v337, 3
        %vm1058 = vcmp.eq.s32.totalorder %v338, 3
        %vm1059 = vcmp.eq.s32.totalorder %v339, 3
        %vm1060 = vcmp.eq.s32.totalorder %v340, 3
        %vm1061 = vcmp.eq.s32.totalorder %v341, 3
        %vm1062 = vcmp.eq.s32.totalorder %v342, 3
        %vm1063 = vcmp.eq.s32.totalorder %v343, 3
        %vm1064 = vcmp.eq.s32.totalorder %v344, 3
        %vm1065 = vcmp.eq.s32.totalorder %v345, 3
        %vm1066 = vcmp.eq.s32.totalorder %v346, 3
        %vm1067 = vcmp.eq.s32.totalorder %v347, 3
        %vm1068 = vcmp.eq.s32.totalorder %v348, 3
        %vm1069 = vcmp.eq.s32.totalorder %v349, 3
        %vm1070 = vcmp.eq.s32.totalorder %v350, 3
        %vm1071 = vcmp.eq.s32.totalorder %v351, 3
        %vm1072 = vcmp.eq.s32.totalorder %v352, 3
        %vm1073 = vcmp.eq.s32.totalorder %v353, 3
        %vm1074 = vcmp.eq.s32.totalorder %v354, 3
        %vm1075 = vcmp.eq.s32.totalorder %v355, 3
        %vm1076 = vcmp.eq.s32.totalorder %v356, 3
        %vm1077 = vcmp.eq.s32.totalorder %v357, 3
        %vm1078 = vcmp.eq.s32.totalorder %v358, 3
        %vm1079 = vcmp.eq.s32.totalorder %v359, 3
        %vm1080 = vcmp.eq.s32.totalorder %v360, 3
        %vm1081 = vcmp.eq.s32.totalorder %v361, 3
        %vm1082 = vcmp.eq.s32.totalorder %v362, 3
        %vm1083 = vcmp.eq.s32.totalorder %v363, 3
        %vm1084 = vcmp.eq.s32.totalorder %v364, 3
        %vm1085 = vcmp.eq.s32.totalorder %v365, 3
        %vm1086 = vcmp.eq.s32.totalorder %v366, 3
        %vm1087 = vcmp.eq.s32.totalorder %v367, 3
        %vm1088 = vcmp.eq.s32.totalorder %v368, 3
        %vm1089 = vcmp.eq.s32.totalorder %v369, 3
        %vm1090 = vcmp.eq.s32.totalorder %v370, 3
        %vm1091 = vcmp.eq.s32.totalorder %v371, 3
        %vm1092 = vcmp.eq.s32.totalorder %v372, 3
        %vm1093 = vcmp.eq.s32.totalorder %v373, 3
        %vm1094 = vcmp.eq.s32.totalorder %v374, 3
        %vm1095 = vcmp.eq.s32.totalorder %v375, 3
        %vm1096 = vcmp.eq.s32.totalorder %v376, 3
        %vm1097 = vcmp.eq.s32.totalorder %v377, 3
        %vm1098 = vcmp.eq.s32.totalorder %v378, 3
        %vm1099 = vcmp.eq.s32.totalorder %v379, 3
        %vm1100 = vcmp.eq.s32.totalorder %v380, 3
        %vm1101 = vcmp.eq.s32.totalorder %v381, 3
        %vm1102 = vcmp.eq.s32.totalorder %v382, 3
        %vm1103 = vcmp.eq.s32.totalorder %v383, 3
        %vm1104 = vcmp.eq.s32.totalorder %v384, 3
        %vm1105 = vcmp.eq.s32.totalorder %v385, 3
        %vm1106 = vcmp.eq.s32.totalorder %v386, 3
        %1107 = vrot.lane.b32.xlu0 %v387, 104
        %v1108 = vpop.permute.xlu0 %1107
        %1109 = vrot.lane.b32.xlu0 %v388, 104
        %v1110 = vpop.permute.xlu0 %1109
        %1111 = vrot.lane.b32.xlu0 %v389, 104
        %v1112 = vpop.permute.xlu0 %1111
        %1113 = vrot.lane.b32.xlu0 %v390, 104
        %v1114 = vpop.permute.xlu0 %1113
        %1115 = vrot.lane.b32.xlu0 %v391, 104
        %v1116 = vpop.permute.xlu0 %1115
        %1117 = vrot.lane.b32.xlu0 %v392, 104
        %v1118 = vpop.permute.xlu0 %1117
        %1119 = vrot.lane.b32.xlu0 %v393, 104
        %v1120 = vpop.permute.xlu0 %1119
        %1121 = vrot.lane.b32.xlu0 %v394, 104
        %v1122 = vpop.permute.xlu0 %1121
        %1123 = vrot.lane.b32.xlu0 %v395, 104
        %v1124 = vpop.permute.xlu0 %1123
        %1125 = vrot.lane.b32.xlu0 %v396, 104
        %v1126 = vpop.permute.xlu0 %1125
        %1127 = vrot.lane.b32.xlu0 %v397, 104
        %v1128 = vpop.permute.xlu0 %1127
        %1129 = vrot.lane.b32.xlu0 %v398, 104
        %v1130 = vpop.permute.xlu0 %1129
        %1131 = vrot.lane.b32.xlu0 %v399, 104
        %v1132 = vpop.permute.xlu0 %1131
        %1133 = vrot.lane.b32.xlu0 %v400, 104
        %v1134 = vpop.permute.xlu0 %1133
        %1135 = vrot.lane.b32.xlu0 %v401, 104
        %v1136 = vpop.permute.xlu0 %1135
        %1137 = vrot.lane.b32.xlu0 %v402, 104
        %v1138 = vpop.permute.xlu0 %1137
        %1139 = vrot.lane.b32.xlu0 %v403, 104
        %v1140 = vpop.permute.xlu0 %1139
        %1141 = vrot.lane.b32.xlu0 %v404, 104
        %v1142 = vpop.permute.xlu0 %1141
        %1143 = vrot.lane.b32.xlu0 %v405, 104
        %v1144 = vpop.permute.xlu0 %1143
        %1145 = vrot.lane.b32.xlu0 %v406, 104
        %v1146 = vpop.permute.xlu0 %1145
        %1147 = vrot.lane.b32.xlu0 %v407, 104
        %v1148 = vpop.permute.xlu0 %1147
        %1149 = vrot.lane.b32.xlu0 %v408, 104
        %v1150 = vpop.permute.xlu0 %1149
        %1151 = vrot.lane.b32.xlu0 %v409, 104
        %v1152 = vpop.permute.xlu0 %1151
        %1153 = vrot.lane.b32.xlu0 %v410, 104
        %v1154 = vpop.permute.xlu0 %1153
        %1155 = vrot.lane.b32.xlu0 %v411, 104
        %v1156 = vpop.permute.xlu0 %1155
        %1157 = vrot.lane.b32.xlu0 %v412, 104
        %v1158 = vpop.permute.xlu0 %1157
        %1159 = vrot.lane.b32.xlu0 %v413, 104
        %v1160 = vpop.permute.xlu0 %1159
        %1161 = vrot.lane.b32.xlu0 %v414, 104
        %v1162 = vpop.permute.xlu0 %1161
        %1163 = vrot.lane.b32.xlu0 %v415, 104
        %v1164 = vpop.permute.xlu0 %1163
        %1165 = vrot.lane.b32.xlu0 %v416, 104
        %v1166 = vpop.permute.xlu0 %1165
        %1167 = vrot.lane.b32.xlu0 %v417, 104
        %v1168 = vpop.permute.xlu0 %1167
        %1169 = vrot.lane.b32.xlu0 %v418, 104
        %v1170 = vpop.permute.xlu0 %1169
        %1171 = vrot.lane.b32.xlu0 %v419, 104
        %v1172 = vpop.permute.xlu0 %1171
        %1173 = vrot.lane.b32.xlu0 %v420, 104
        %v1174 = vpop.permute.xlu0 %1173
        %1175 = vrot.lane.b32.xlu0 %v421, 104
        %v1176 = vpop.permute.xlu0 %1175
        %1177 = vrot.lane.b32.xlu0 %v422, 104
        %v1178 = vpop.permute.xlu0 %1177
        %1179 = vrot.lane.b32.xlu0 %v423, 104
        %v1180 = vpop.permute.xlu0 %1179
        %1181 = vrot.lane.b32.xlu0 %v424, 104
        %v1182 = vpop.permute.xlu0 %1181
        %1183 = vrot.lane.b32.xlu0 %v425, 104
        %v1184 = vpop.permute.xlu0 %1183
        %1185 = vrot.lane.b32.xlu0 %v426, 104
        %v1186 = vpop.permute.xlu0 %1185
        %1187 = vrot.lane.b32.xlu0 %v427, 104
        %v1188 = vpop.permute.xlu0 %1187
        %1189 = vrot.lane.b32.xlu0 %v428, 104
        %v1190 = vpop.permute.xlu0 %1189
        %1191 = vrot.lane.b32.xlu0 %v429, 104
        %v1192 = vpop.permute.xlu0 %1191
        %1193 = vrot.lane.b32.xlu0 %v430, 104
        %v1194 = vpop.permute.xlu0 %1193
        %1195 = vrot.lane.b32.xlu0 %v431, 104
        %v1196 = vpop.permute.xlu0 %1195
        %1197 = vrot.lane.b32.xlu0 %v432, 104
        %v1198 = vpop.permute.xlu0 %1197
        %1199 = vrot.lane.b32.xlu0 %v433, 104
        %v1200 = vpop.permute.xlu0 %1199
        %1201 = vrot.lane.b32.xlu0 %v434, 104
        %v1202 = vpop.permute.xlu0 %1201
        %1203 = vrot.lane.b32.xlu0 %v435, 104
        %v1204 = vpop.permute.xlu0 %1203
        %1205 = vrot.lane.b32.xlu0 %v436, 104
        %v1206 = vpop.permute.xlu0 %1205
        %1207 = vrot.lane.b32.xlu0 %v437, 104
        %v1208 = vpop.permute.xlu0 %1207
        %1209 = vrot.lane.b32.xlu0 %v438, 104
        %v1210 = vpop.permute.xlu0 %1209
        %1211 = vrot.lane.b32.xlu0 %v439, 104
        %v1212 = vpop.permute.xlu0 %1211
        %1213 = vrot.lane.b32.xlu0 %v440, 104
        %v1214 = vpop.permute.xlu0 %1213
        %1215 = vrot.lane.b32.xlu0 %v441, 104
        %v1216 = vpop.permute.xlu0 %1215
        %1217 = vrot.lane.b32.xlu0 %v442, 104
        %v1218 = vpop.permute.xlu0 %1217
        %1219 = vrot.lane.b32.xlu0 %v443, 104
        %v1220 = vpop.permute.xlu0 %1219
        %1221 = vrot.lane.b32.xlu0 %v444, 104
        %v1222 = vpop.permute.xlu0 %1221
        %1223 = vrot.lane.b32.xlu0 %v445, 104
        %v1224 = vpop.permute.xlu0 %1223
        %1225 = vrot.lane.b32.xlu0 %v446, 104
        %v1226 = vpop.permute.xlu0 %1225
        %1227 = vrot.lane.b32.xlu0 %v447, 104
        %v1228 = vpop.permute.xlu0 %1227
        %1229 = vrot.lane.b32.xlu0 %v448, 104
        %v1230 = vpop.permute.xlu0 %1229
        %1231 = vrot.lane.b32.xlu0 %v449, 104
        %v1232 = vpop.permute.xlu0 %1231
        %1233 = vrot.lane.b32.xlu0 %v450, 104
        %v1234 = vpop.permute.xlu0 %1233
        %1235 = vrot.lane.b32.xlu0 %v451, 104
        %v1236 = vpop.permute.xlu0 %1235
        %1237 = vrot.lane.b32.xlu0 %v452, 104
        %v1238 = vpop.permute.xlu0 %1237
        %1239 = vrot.lane.b32.xlu0 %v453, 104
        %v1240 = vpop.permute.xlu0 %1239
        %1241 = vrot.lane.b32.xlu0 %v454, 104
        %v1242 = vpop.permute.xlu0 %1241
        %1243 = vrot.lane.b32.xlu0 %v455, 104
        %v1244 = vpop.permute.xlu0 %1243
        %1245 = vrot.lane.b32.xlu0 %v456, 104
        %v1246 = vpop.permute.xlu0 %1245
        %1247 = vrot.lane.b32.xlu0 %v457, 104
        %v1248 = vpop.permute.xlu0 %1247
        %1249 = vrot.lane.b32.xlu0 %v458, 104
        %v1250 = vpop.permute.xlu0 %1249
        %v1251 = vsel %vm1035, %v1108, %v963
        %v1252 = vsel %vm1036, %v1110, %v964
        %v1253 = vsel %vm1037, %v1112, %v965
        %v1254 = vsel %vm1038, %v1114, %v966
        %v1255 = vsel %vm1039, %v1116, %v967
        %v1256 = vsel %vm1040, %v1118, %v968
        %v1257 = vsel %vm1041, %v1120, %v969
        %v1258 = vsel %vm1042, %v1122, %v970
        %v1259 = vsel %vm1043, %v1124, %v971
        %v1260 = vsel %vm1044, %v1126, %v972
        %v1261 = vsel %vm1045, %v1128, %v973
        %v1262 = vsel %vm1046, %v1130, %v974
        %v1263 = vsel %vm1047, %v1132, %v975
        %v1264 = vsel %vm1048, %v1134, %v976
        %v1265 = vsel %vm1049, %v1136, %v977
        %v1266 = vsel %vm1050, %v1138, %v978
        %v1267 = vsel %vm1051, %v1140, %v979
        %v1268 = vsel %vm1052, %v1142, %v980
        %v1269 = vsel %vm1053, %v1144, %v981
        %v1270 = vsel %vm1054, %v1146, %v982
        %v1271 = vsel %vm1055, %v1148, %v983
        %v1272 = vsel %vm1056, %v1150, %v984
        %v1273 = vsel %vm1057, %v1152, %v985
        %v1274 = vsel %vm1058, %v1154, %v986
        %v1275 = vsel %vm1059, %v1156, %v987
        %v1276 = vsel %vm1060, %v1158, %v988
        %v1277 = vsel %vm1061, %v1160, %v989
        %v1278 = vsel %vm1062, %v1162, %v990
        %v1279 = vsel %vm1063, %v1164, %v991
        %v1280 = vsel %vm1064, %v1166, %v992
        %v1281 = vsel %vm1065, %v1168, %v993
        %v1282 = vsel %vm1066, %v1170, %v994
        %v1283 = vsel %vm1067, %v1172, %v995
        %v1284 = vsel %vm1068, %v1174, %v996
        %v1285 = vsel %vm1069, %v1176, %v997
        %v1286 = vsel %vm1070, %v1178, %v998
        %v1287 = vsel %vm1071, %v1180, %v999
        %v1288 = vsel %vm1072, %v1182, %v1000
        %v1289 = vsel %vm1073, %v1184, %v1001
        %v1290 = vsel %vm1074, %v1186, %v1002
        %v1291 = vsel %vm1075, %v1188, %v1003
        %v1292 = vsel %vm1076, %v1190, %v1004
        %v1293 = vsel %vm1077, %v1192, %v1005
        %v1294 = vsel %vm1078, %v1194, %v1006
        %v1295 = vsel %vm1079, %v1196, %v1007
        %v1296 = vsel %vm1080, %v1198, %v1008
        %v1297 = vsel %vm1081, %v1200, %v1009
        %v1298 = vsel %vm1082, %v1202, %v1010
        %v1299 = vsel %vm1083, %v1204, %v1011
        %v1300 = vsel %vm1084, %v1206, %v1012
        %v1301 = vsel %vm1085, %v1208, %v1013
        %v1302 = vsel %vm1086, %v1210, %v1014
        %v1303 = vsel %vm1087, %v1212, %v1015
        %v1304 = vsel %vm1088, %v1214, %v1016
        %v1305 = vsel %vm1089, %v1216, %v1017
        %v1306 = vsel %vm1090, %v1218, %v1018
        %v1307 = vsel %vm1091, %v1220, %v1019
        %v1308 = vsel %vm1092, %v1222, %v1020
        %v1309 = vsel %vm1093, %v1224, %v1021
        %v1310 = vsel %vm1094, %v1226, %v1022
        %v1311 = vsel %vm1095, %v1228, %v1023
        %v1312 = vsel %vm1096, %v1230, %v1024
        %v1313 = vsel %vm1097, %v1232, %v1025
        %v1314 = vsel %vm1098, %v1234, %v1026
        %v1315 = vsel %vm1099, %v1236, %v1027
        %v1316 = vsel %vm1100, %v1238, %v1028
        %v1317 = vsel %vm1101, %v1240, %v1029
        %v1318 = vsel %vm1102, %v1242, %v1030
        %v1319 = vsel %vm1103, %v1244, %v1031
        %v1320 = vsel %vm1104, %v1246, %v1032
        %v1321 = vsel %vm1105, %v1248, %v1033
        %v1322 = vsel %vm1106, %v1250, %v1034
        %v1323 = vmul.u32 %v315, 64
        %v1324 = vmul.u32 %v316, 64
        %v1325 = vmul.u32 %v317, 64
        %v1326 = vmul.u32 %v318, 64
        %v1327 = vmul.u32 %v319, 64
        %v1328 = vmul.u32 %v320, 64
        %v1329 = vmul.u32 %v321, 64
        %v1330 = vmul.u32 %v322, 64
        %v1331 = vmul.u32 %v323, 64
        %v1332 = vmul.u32 %v324, 64
        %v1333 = vmul.u32 %v325, 64
        %v1334 = vmul.u32 %v326, 64
        %v1335 = vmul.u32 %v327, 64
        %v1336 = vmul.u32 %v328, 64
        %v1337 = vmul.u32 %v329, 64
        %v1338 = vmul.u32 %v330, 64
        %v1339 = vmul.u32 %v331, 64
        %v1340 = vmul.u32 %v332, 64
        %v1341 = vmul.u32 %v333, 64
        %v1342 = vmul.u32 %v334, 64
        %v1343 = vmul.u32 %v335, 64
        %v1344 = vmul.u32 %v336, 64
        %v1345 = vmul.u32 %v337, 64
        %v1346 = vmul.u32 %v338, 64
        %v1347 = vmul.u32 %v339, 64
        %v1348 = vmul.u32 %v340, 64
        %v1349 = vmul.u32 %v341, 64
        %v1350 = vmul.u32 %v342, 64
        %v1351 = vmul.u32 %v343, 64
        %v1352 = vmul.u32 %v344, 64
        %v1353 = vmul.u32 %v345, 64
        %v1354 = vmul.u32 %v346, 64
        %v1355 = vmul.u32 %v347, 64
        %v1356 = vmul.u32 %v348, 64
        %v1357 = vmul.u32 %v349, 64
        %v1358 = vmul.u32 %v350, 64
        %v1359 = vmul.u32 %v351, 64
        %v1360 = vmul.u32 %v352, 64
        %v1361 = vmul.u32 %v353, 64
        %v1362 = vmul.u32 %v354, 64
        %v1363 = vmul.u32 %v355, 64
        %v1364 = vmul.u32 %v356, 64
        %v1365 = vmul.u32 %v357, 64
        %v1366 = vmul.u32 %v358, 64
        %v1367 = vmul.u32 %v359, 64
        %v1368 = vmul.u32 %v360, 64
        %v1369 = vmul.u32 %v361, 64
        %v1370 = vmul.u32 %v362, 64
        %v1371 = vmul.u32 %v363, 64
        %v1372 = vmul.u32 %v364, 64
        %v1373 = vmul.u32 %v365, 64
        %v1374 = vmul.u32 %v366, 64
        %v1375 = vmul.u32 %v367, 64
        %v1376 = vmul.u32 %v368, 64
        %v1377 = vmul.u32 %v369, 64
        %v1378 = vmul.u32 %v370, 64
        %v1379 = vmul.u32 %v371, 64
        %v1380 = vmul.u32 %v372, 64
        %v1381 = vmul.u32 %v373, 64
        %v1382 = vmul.u32 %v374, 64
        %v1383 = vmul.u32 %v375, 64
        %v1384 = vmul.u32 %v376, 64
        %v1385 = vmul.u32 %v377, 64
        %v1386 = vmul.u32 %v378, 64
        %v1387 = vmul.u32 %v379, 64
        %v1388 = vmul.u32 %v380, 64
        %v1389 = vmul.u32 %v381, 64
        %v1390 = vmul.u32 %v382, 64
        %v1391 = vmul.u32 %v383, 64
        %v1392 = vmul.u32 %v384, 64
        %v1393 = vmul.u32 %v385, 64
        %v1394 = vmul.u32 %v386, 64
        %v1395 = vadd.s32 %v1323, %v1251
        %v1396 = vadd.s32 %v1324, %v1252
        %v1397 = vadd.s32 %v1325, %v1253
        %v1398 = vadd.s32 %v1326, %v1254
        %v1399 = vadd.s32 %v1327, %v1255
        %v1400 = vadd.s32 %v1328, %v1256
        %v1401 = vadd.s32 %v1329, %v1257
        %v1402 = vadd.s32 %v1330, %v1258
        %v1403 = vadd.s32 %v1331, %v1259
        %v1404 = vadd.s32 %v1332, %v1260
        %v1405 = vadd.s32 %v1333, %v1261
        %v1406 = vadd.s32 %v1334, %v1262
        %v1407 = vadd.s32 %v1335, %v1263
        %v1408 = vadd.s32 %v1336, %v1264
        %v1409 = vadd.s32 %v1337, %v1265
        %v1410 = vadd.s32 %v1338, %v1266
        %v1411 = vadd.s32 %v1339, %v1267
        %v1412 = vadd.s32 %v1340, %v1268
        %v1413 = vadd.s32 %v1341, %v1269
        %v1414 = vadd.s32 %v1342, %v1270
        %v1415 = vadd.s32 %v1343, %v1271
        %v1416 = vadd.s32 %v1344, %v1272
        %v1417 = vadd.s32 %v1345, %v1273
        %v1418 = vadd.s32 %v1346, %v1274
        %v1419 = vadd.s32 %v1347, %v1275
        %v1420 = vadd.s32 %v1348, %v1276
        %v1421 = vadd.s32 %v1349, %v1277
        %v1422 = vadd.s32 %v1350, %v1278
        %v1423 = vadd.s32 %v1351, %v1279
        %v1424 = vadd.s32 %v1352, %v1280
        %v1425 = vadd.s32 %v1353, %v1281
        %v1426 = vadd.s32 %v1354, %v1282
        %v1427 = vadd.s32 %v1355, %v1283
        %v1428 = vadd.s32 %v1356, %v1284
        %v1429 = vadd.s32 %v1357, %v1285
        %v1430 = vadd.s32 %v1358, %v1286
        %v1431 = vadd.s32 %v1359, %v1287
        %v1432 = vadd.s32 %v1360, %v1288
        %v1433 = vadd.s32 %v1361, %v1289
        %v1434 = vadd.s32 %v1362, %v1290
        %v1435 = vadd.s32 %v1363, %v1291
        %v1436 = vadd.s32 %v1364, %v1292
        %v1437 = vadd.s32 %v1365, %v1293
        %v1438 = vadd.s32 %v1366, %v1294
        %v1439 = vadd.s32 %v1367, %v1295
        %v1440 = vadd.s32 %v1368, %v1296
        %v1441 = vadd.s32 %v1369, %v1297
        %v1442 = vadd.s32 %v1370, %v1298
        %v1443 = vadd.s32 %v1371, %v1299
        %v1444 = vadd.s32 %v1372, %v1300
        %v1445 = vadd.s32 %v1373, %v1301
        %v1446 = vadd.s32 %v1374, %v1302
        %v1447 = vadd.s32 %v1375, %v1303
        %v1448 = vadd.s32 %v1376, %v1304
        %v1449 = vadd.s32 %v1377, %v1305
        %v1450 = vadd.s32 %v1378, %v1306
        %v1451 = vadd.s32 %v1379, %v1307
        %v1452 = vadd.s32 %v1380, %v1308
        %v1453 = vadd.s32 %v1381, %v1309
        %v1454 = vadd.s32 %v1382, %v1310
        %v1455 = vadd.s32 %v1383, %v1311
        %v1456 = vadd.s32 %v1384, %v1312
        %v1457 = vadd.s32 %v1385, %v1313
        %v1458 = vadd.s32 %v1386, %v1314
        %v1459 = vadd.s32 %v1387, %v1315
        %v1460 = vadd.s32 %v1388, %v1316
        %v1461 = vadd.s32 %v1389, %v1317
        %v1462 = vadd.s32 %v1390, %v1318
        %v1463 = vadd.s32 %v1391, %v1319
        %v1464 = vadd.s32 %v1392, %v1320
        %v1465 = vadd.s32 %v1393, %v1321
        %v1466 = vadd.s32 %v1394, %v1322
        %v1467 = vld [vmem:[%s3] sm:$0x1]
        %v1468 = vlaneseq
        %v1469 = vshrl.u32 %v1468, 7
        %v1470 = vsub.s32 0, %v1469
        %v1471 = vrot.slane %v1467, %v1470
        %1472 = vset.pattern.permute.xlu0 %v1471
        %1473 = vperm.xlu0 %1472, %v243
        %v1474 = vpop.permute.xlu0 %1473
        %1475 = vset.pattern.permute.xlu0 %v1471
        %1476 = vperm.xlu0 %1475, %v244
        %v1477 = vpop.permute.xlu0 %1476
        %1478 = vset.pattern.permute.xlu0 %v1471
        %1479 = vperm.xlu0 %1478, %v245
        %v1480 = vpop.permute.xlu0 %1479
        %1481 = vset.pattern.permute.xlu0 %v1471
        %1482 = vperm.xlu0 %1481, %v246
        %v1483 = vpop.permute.xlu0 %1482
        %1484 = vset.pattern.permute.xlu0 %v1471
        %1485 = vperm.xlu0 %1484, %v247
        %v1486 = vpop.permute.xlu0 %1485
        %1487 = vset.pattern.permute.xlu0 %v1471
        %1488 = vperm.xlu0 %1487, %v248
        %v1489 = vpop.permute.xlu0 %1488
        %1490 = vset.pattern.permute.xlu0 %v1471
        %1491 = vperm.xlu0 %1490, %v249
        %v1492 = vpop.permute.xlu0 %1491
        %1493 = vset.pattern.permute.xlu0 %v1471
        %1494 = vperm.xlu0 %1493, %v250
        %v1495 = vpop.permute.xlu0 %1494
        %1496 = vset.pattern.permute.xlu0 %v1471
        %1497 = vperm.xlu0 %1496, %v251
        %v1498 = vpop.permute.xlu0 %1497
        %1499 = vset.pattern.permute.xlu0 %v1471
        %1500 = vperm.xlu0 %1499, %v252
        %v1501 = vpop.permute.xlu0 %1500
        %1502 = vset.pattern.permute.xlu0 %v1471
        %1503 = vperm.xlu0 %1502, %v253
        %v1504 = vpop.permute.xlu0 %1503
        %1505 = vset.pattern.permute.xlu0 %v1471
        %1506 = vperm.xlu0 %1505, %v254
        %v1507 = vpop.permute.xlu0 %1506
        %1508 = vset.pattern.permute.xlu0 %v1471
        %1509 = vperm.xlu0 %1508, %v255
        %v1510 = vpop.permute.xlu0 %1509
        %1511 = vset.pattern.permute.xlu0 %v1471
        %1512 = vperm.xlu0 %1511, %v256
        %v1513 = vpop.permute.xlu0 %1512
        %1514 = vset.pattern.permute.xlu0 %v1471
        %1515 = vperm.xlu0 %1514, %v257
        %v1516 = vpop.permute.xlu0 %1515
        %1517 = vset.pattern.permute.xlu0 %v1471
        %1518 = vperm.xlu0 %1517, %v258
        %v1519 = vpop.permute.xlu0 %1518
        %1520 = vset.pattern.permute.xlu0 %v1471
        %1521 = vperm.xlu0 %1520, %v259
        %v1522 = vpop.permute.xlu0 %1521
        %1523 = vset.pattern.permute.xlu0 %v1471
        %1524 = vperm.xlu0 %1523, %v260
        %v1525 = vpop.permute.xlu0 %1524
        %1526 = vset.pattern.permute.xlu0 %v1471
        %1527 = vperm.xlu0 %1526, %v261
        %v1528 = vpop.permute.xlu0 %1527
        %1529 = vset.pattern.permute.xlu0 %v1471
        %1530 = vperm.xlu0 %1529, %v262
        %v1531 = vpop.permute.xlu0 %1530
        %1532 = vset.pattern.permute.xlu0 %v1471
        %1533 = vperm.xlu0 %1532, %v263
        %v1534 = vpop.permute.xlu0 %1533
        %1535 = vset.pattern.permute.xlu0 %v1471
        %1536 = vperm.xlu0 %1535, %v264
        %v1537 = vpop.permute.xlu0 %1536
        %1538 = vset.pattern.permute.xlu0 %v1471
        %1539 = vperm.xlu0 %1538, %v265
        %v1540 = vpop.permute.xlu0 %1539
        %1541 = vset.pattern.permute.xlu0 %v1471
        %1542 = vperm.xlu0 %1541, %v266
        %v1543 = vpop.permute.xlu0 %1542
        %1544 = vset.pattern.permute.xlu0 %v1471
        %1545 = vperm.xlu0 %1544, %v267
        %v1546 = vpop.permute.xlu0 %1545
        %1547 = vset.pattern.permute.xlu0 %v1471
        %1548 = vperm.xlu0 %1547, %v268
        %v1549 = vpop.permute.xlu0 %1548
        %1550 = vset.pattern.permute.xlu0 %v1471
        %1551 = vperm.xlu0 %1550, %v269
        %v1552 = vpop.permute.xlu0 %1551
        %1553 = vset.pattern.permute.xlu0 %v1471
        %1554 = vperm.xlu0 %1553, %v270
        %v1555 = vpop.permute.xlu0 %1554
        %1556 = vset.pattern.permute.xlu0 %v1471
        %1557 = vperm.xlu0 %1556, %v271
        %v1558 = vpop.permute.xlu0 %1557
        %1559 = vset.pattern.permute.xlu0 %v1471
        %1560 = vperm.xlu0 %1559, %v272
        %v1561 = vpop.permute.xlu0 %1560
        %1562 = vset.pattern.permute.xlu0 %v1471
        %1563 = vperm.xlu0 %1562, %v273
        %v1564 = vpop.permute.xlu0 %1563
        %1565 = vset.pattern.permute.xlu0 %v1471
        %1566 = vperm.xlu0 %1565, %v274
        %v1567 = vpop.permute.xlu0 %1566
        %1568 = vset.pattern.permute.xlu0 %v1471
        %1569 = vperm.xlu0 %1568, %v275
        %v1570 = vpop.permute.xlu0 %1569
        %1571 = vset.pattern.permute.xlu0 %v1471
        %1572 = vperm.xlu0 %1571, %v276
        %v1573 = vpop.permute.xlu0 %1572
        %1574 = vset.pattern.permute.xlu0 %v1471
        %1575 = vperm.xlu0 %1574, %v277
        %v1576 = vpop.permute.xlu0 %1575
        %1577 = vset.pattern.permute.xlu0 %v1471
        %1578 = vperm.xlu0 %1577, %v278
        %v1579 = vpop.permute.xlu0 %1578
        %1580 = vset.pattern.permute.xlu0 %v1471
        %1581 = vperm.xlu0 %1580, %v279
        %v1582 = vpop.permute.xlu0 %1581
        %1583 = vset.pattern.permute.xlu0 %v1471
        %1584 = vperm.xlu0 %1583, %v280
        %v1585 = vpop.permute.xlu0 %1584
        %1586 = vset.pattern.permute.xlu0 %v1471
        %1587 = vperm.xlu0 %1586, %v281
        %v1588 = vpop.permute.xlu0 %1587
        %1589 = vset.pattern.permute.xlu0 %v1471
        %1590 = vperm.xlu0 %1589, %v282
        %v1591 = vpop.permute.xlu0 %1590
        %1592 = vset.pattern.permute.xlu0 %v1471
        %1593 = vperm.xlu0 %1592, %v283
        %v1594 = vpop.permute.xlu0 %1593
        %1595 = vset.pattern.permute.xlu0 %v1471
        %1596 = vperm.xlu0 %1595, %v284
        %v1597 = vpop.permute.xlu0 %1596
        %1598 = vset.pattern.permute.xlu0 %v1471
        %1599 = vperm.xlu0 %1598, %v285
        %v1600 = vpop.permute.xlu0 %1599
        %1601 = vset.pattern.permute.xlu0 %v1471
        %1602 = vperm.xlu0 %1601, %v286
        %v1603 = vpop.permute.xlu0 %1602
        %1604 = vset.pattern.permute.xlu0 %v1471
        %1605 = vperm.xlu0 %1604, %v287
        %v1606 = vpop.permute.xlu0 %1605
        %1607 = vset.pattern.permute.xlu0 %v1471
        %1608 = vperm.xlu0 %1607, %v288
        %v1609 = vpop.permute.xlu0 %1608
        %1610 = vset.pattern.permute.xlu0 %v1471
        %1611 = vperm.xlu0 %1610, %v289
        %v1612 = vpop.permute.xlu0 %1611
        %1613 = vset.pattern.permute.xlu0 %v1471
        %1614 = vperm.xlu0 %1613, %v290
        %v1615 = vpop.permute.xlu0 %1614
        %1616 = vset.pattern.permute.xlu0 %v1471
        %1617 = vperm.xlu0 %1616, %v291
        %v1618 = vpop.permute.xlu0 %1617
        %1619 = vset.pattern.permute.xlu0 %v1471
        %1620 = vperm.xlu0 %1619, %v292
        %v1621 = vpop.permute.xlu0 %1620
        %1622 = vset.pattern.permute.xlu0 %v1471
        %1623 = vperm.xlu0 %1622, %v293
        %v1624 = vpop.permute.xlu0 %1623
        %1625 = vset.pattern.permute.xlu0 %v1471
        %1626 = vperm.xlu0 %1625, %v294
        %v1627 = vpop.permute.xlu0 %1626
        %1628 = vset.pattern.permute.xlu0 %v1471
        %1629 = vperm.xlu0 %1628, %v295
        %v1630 = vpop.permute.xlu0 %1629
        %1631 = vset.pattern.permute.xlu0 %v1471
        %1632 = vperm.xlu0 %1631, %v296
        %v1633 = vpop.permute.xlu0 %1632
        %1634 = vset.pattern.permute.xlu0 %v1471
        %1635 = vperm.xlu0 %1634, %v297
        %v1636 = vpop.permute.xlu0 %1635
        %1637 = vset.pattern.permute.xlu0 %v1471
        %1638 = vperm.xlu0 %1637, %v298
        %v1639 = vpop.permute.xlu0 %1638
        %1640 = vset.pattern.permute.xlu0 %v1471
        %1641 = vperm.xlu0 %1640, %v299
        %v1642 = vpop.permute.xlu0 %1641
        %1643 = vset.pattern.permute.xlu0 %v1471
        %1644 = vperm.xlu0 %1643, %v300
        %v1645 = vpop.permute.xlu0 %1644
        %1646 = vset.pattern.permute.xlu0 %v1471
        %1647 = vperm.xlu0 %1646, %v301
        %v1648 = vpop.permute.xlu0 %1647
        %1649 = vset.pattern.permute.xlu0 %v1471
        %1650 = vperm.xlu0 %1649, %v302
        %v1651 = vpop.permute.xlu0 %1650
        %1652 = vset.pattern.permute.xlu0 %v1471
        %1653 = vperm.xlu0 %1652, %v303
        %v1654 = vpop.permute.xlu0 %1653
        %1655 = vset.pattern.permute.xlu0 %v1471
        %1656 = vperm.xlu0 %1655, %v304
        %v1657 = vpop.permute.xlu0 %1656
        %1658 = vset.pattern.permute.xlu0 %v1471
        %1659 = vperm.xlu0 %1658, %v305
        %v1660 = vpop.permute.xlu0 %1659
        %1661 = vset.pattern.permute.xlu0 %v1471
        %1662 = vperm.xlu0 %1661, %v306
        %v1663 = vpop.permute.xlu0 %1662
        %1664 = vset.pattern.permute.xlu0 %v1471
        %1665 = vperm.xlu0 %1664, %v307
        %v1666 = vpop.permute.xlu0 %1665
        %1667 = vset.pattern.permute.xlu0 %v1471
        %1668 = vperm.xlu0 %1667, %v308
        %v1669 = vpop.permute.xlu0 %1668
        %1670 = vset.pattern.permute.xlu0 %v1471
        %1671 = vperm.xlu0 %1670, %v309
        %v1672 = vpop.permute.xlu0 %1671
        %1673 = vset.pattern.permute.xlu0 %v1471
        %1674 = vperm.xlu0 %1673, %v310
        %v1675 = vpop.permute.xlu0 %1674
        %1676 = vset.pattern.permute.xlu0 %v1471
        %1677 = vperm.xlu0 %1676, %v311
        %v1678 = vpop.permute.xlu0 %1677
        %1679 = vset.pattern.permute.xlu0 %v1471
        %1680 = vperm.xlu0 %1679, %v312
        %v1681 = vpop.permute.xlu0 %1680
        %1682 = vset.pattern.permute.xlu0 %v1471
        %1683 = vperm.xlu0 %1682, %v313
        %v1684 = vpop.permute.xlu0 %1683
        %1685 = vset.pattern.permute.xlu0 %v1471
        %1686 = vperm.xlu0 %1685, %v314
        %v1687 = vpop.permute.xlu0 %1686
        %1688 = vset.pattern.permute.xlu0 %v1471
        %1689 = vperm.xlu0 %1688, %v1395
        %v1690 = vpop.permute.xlu0 %1689
        %1691 = vset.pattern.permute.xlu0 %v1471
        %1692 = vperm.xlu0 %1691, %v1396
        %v1693 = vpop.permute.xlu0 %1692
        %1694 = vset.pattern.permute.xlu0 %v1471
        %1695 = vperm.xlu0 %1694, %v1397
        %v1696 = vpop.permute.xlu0 %1695
        %1697 = vset.pattern.permute.xlu0 %v1471
        %1698 = vperm.xlu0 %1697, %v1398
        %v1699 = vpop.permute.xlu0 %1698
        %1700 = vset.pattern.permute.xlu0 %v1471
        %1701 = vperm.xlu0 %1700, %v1399
        %v1702 = vpop.permute.xlu0 %1701
        %1703 = vset.pattern.permute.xlu0 %v1471
        %1704 = vperm.xlu0 %1703, %v1400
        %v1705 = vpop.permute.xlu0 %1704
        %1706 = vset.pattern.permute.xlu0 %v1471
        %1707 = vperm.xlu0 %1706, %v1401
        %v1708 = vpop.permute.xlu0 %1707
        %1709 = vset.pattern.permute.xlu0 %v1471
        %1710 = vperm.xlu0 %1709, %v1402
        %v1711 = vpop.permute.xlu0 %1710
        %1712 = vset.pattern.permute.xlu0 %v1471
        %1713 = vperm.xlu0 %1712, %v1403
        %v1714 = vpop.permute.xlu0 %1713
        %1715 = vset.pattern.permute.xlu0 %v1471
        %1716 = vperm.xlu0 %1715, %v1404
        %v1717 = vpop.permute.xlu0 %1716
        %1718 = vset.pattern.permute.xlu0 %v1471
        %1719 = vperm.xlu0 %1718, %v1405
        %v1720 = vpop.permute.xlu0 %1719
        %1721 = vset.pattern.permute.xlu0 %v1471
        %1722 = vperm.xlu0 %1721, %v1406
        %v1723 = vpop.permute.xlu0 %1722
        %1724 = vset.pattern.permute.xlu0 %v1471
        %1725 = vperm.xlu0 %1724, %v1407
        %v1726 = vpop.permute.xlu0 %1725
        %1727 = vset.pattern.permute.xlu0 %v1471
        %1728 = vperm.xlu0 %1727, %v1408
        %v1729 = vpop.permute.xlu0 %1728
        %1730 = vset.pattern.permute.xlu0 %v1471
        %1731 = vperm.xlu0 %1730, %v1409
        %v1732 = vpop.permute.xlu0 %1731
        %1733 = vset.pattern.permute.xlu0 %v1471
        %1734 = vperm.xlu0 %1733, %v1410
        %v1735 = vpop.permute.xlu0 %1734
        %1736 = vset.pattern.permute.xlu0 %v1471
        %1737 = vperm.xlu0 %1736, %v1411
        %v1738 = vpop.permute.xlu0 %1737
        %1739 = vset.pattern.permute.xlu0 %v1471
        %1740 = vperm.xlu0 %1739, %v1412
        %v1741 = vpop.permute.xlu0 %1740
        %1742 = vset.pattern.permute.xlu0 %v1471
        %1743 = vperm.xlu0 %1742, %v1413
        %v1744 = vpop.permute.xlu0 %1743
        %1745 = vset.pattern.permute.xlu0 %v1471
        %1746 = vperm.xlu0 %1745, %v1414
        %v1747 = vpop.permute.xlu0 %1746
        %1748 = vset.pattern.permute.xlu0 %v1471
        %1749 = vperm.xlu0 %1748, %v1415
        %v1750 = vpop.permute.xlu0 %1749
        %1751 = vset.pattern.permute.xlu0 %v1471
        %1752 = vperm.xlu0 %1751, %v1416
        %v1753 = vpop.permute.xlu0 %1752
        %1754 = vset.pattern.permute.xlu0 %v1471
        %1755 = vperm.xlu0 %1754, %v1417
        %v1756 = vpop.permute.xlu0 %1755
        %1757 = vset.pattern.permute.xlu0 %v1471
        %1758 = vperm.xlu0 %1757, %v1418
        %v1759 = vpop.permute.xlu0 %1758
        %1760 = vset.pattern.permute.xlu0 %v1471
        %1761 = vperm.xlu0 %1760, %v1419
        %v1762 = vpop.permute.xlu0 %1761
        %1763 = vset.pattern.permute.xlu0 %v1471
        %1764 = vperm.xlu0 %1763, %v1420
        %v1765 = vpop.permute.xlu0 %1764
        %1766 = vset.pattern.permute.xlu0 %v1471
        %1767 = vperm.xlu0 %1766, %v1421
        %v1768 = vpop.permute.xlu0 %1767
        %1769 = vset.pattern.permute.xlu0 %v1471
        %1770 = vperm.xlu0 %1769, %v1422
        %v1771 = vpop.permute.xlu0 %1770
        %1772 = vset.pattern.permute.xlu0 %v1471
        %1773 = vperm.xlu0 %1772, %v1423
        %v1774 = vpop.permute.xlu0 %1773
        %1775 = vset.pattern.permute.xlu0 %v1471
        %1776 = vperm.xlu0 %1775, %v1424
        %v1777 = vpop.permute.xlu0 %1776
        %1778 = vset.pattern.permute.xlu0 %v1471
        %1779 = vperm.xlu0 %1778, %v1425
        %v1780 = vpop.permute.xlu0 %1779
        %1781 = vset.pattern.permute.xlu0 %v1471
        %1782 = vperm.xlu0 %1781, %v1426
        %v1783 = vpop.permute.xlu0 %1782
        %1784 = vset.pattern.permute.xlu0 %v1471
        %1785 = vperm.xlu0 %1784, %v1427
        %v1786 = vpop.permute.xlu0 %1785
        %1787 = vset.pattern.permute.xlu0 %v1471
        %1788 = vperm.xlu0 %1787, %v1428
        %v1789 = vpop.permute.xlu0 %1788
        %1790 = vset.pattern.permute.xlu0 %v1471
        %1791 = vperm.xlu0 %1790, %v1429
        %v1792 = vpop.permute.xlu0 %1791
        %1793 = vset.pattern.permute.xlu0 %v1471
        %1794 = vperm.xlu0 %1793, %v1430
        %v1795 = vpop.permute.xlu0 %1794
        %1796 = vset.pattern.permute.xlu0 %v1471
        %1797 = vperm.xlu0 %1796, %v1431
        %v1798 = vpop.permute.xlu0 %1797
        %1799 = vset.pattern.permute.xlu0 %v1471
        %1800 = vperm.xlu0 %1799, %v1432
        %v1801 = vpop.permute.xlu0 %1800
        %1802 = vset.pattern.permute.xlu0 %v1471
        %1803 = vperm.xlu0 %1802, %v1433
        %v1804 = vpop.permute.xlu0 %1803
        %1805 = vset.pattern.permute.xlu0 %v1471
        %1806 = vperm.xlu0 %1805, %v1434
        %v1807 = vpop.permute.xlu0 %1806
        %1808 = vset.pattern.permute.xlu0 %v1471
        %1809 = vperm.xlu0 %1808, %v1435
        %v1810 = vpop.permute.xlu0 %1809
        %1811 = vset.pattern.permute.xlu0 %v1471
        %1812 = vperm.xlu0 %1811, %v1436
        %v1813 = vpop.permute.xlu0 %1812
        %1814 = vset.pattern.permute.xlu0 %v1471
        %1815 = vperm.xlu0 %1814, %v1437
        %v1816 = vpop.permute.xlu0 %1815
        %1817 = vset.pattern.permute.xlu0 %v1471
        %1818 = vperm.xlu0 %1817, %v1438
        %v1819 = vpop.permute.xlu0 %1818
        %1820 = vset.pattern.permute.xlu0 %v1471
        %1821 = vperm.xlu0 %1820, %v1439
        %v1822 = vpop.permute.xlu0 %1821
        %1823 = vset.pattern.permute.xlu0 %v1471
        %1824 = vperm.xlu0 %1823, %v1440
        %v1825 = vpop.permute.xlu0 %1824
        %1826 = vset.pattern.permute.xlu0 %v1471
        %1827 = vperm.xlu0 %1826, %v1441
        %v1828 = vpop.permute.xlu0 %1827
        %1829 = vset.pattern.permute.xlu0 %v1471
        %1830 = vperm.xlu0 %1829, %v1442
        %v1831 = vpop.permute.xlu0 %1830
        %1832 = vset.pattern.permute.xlu0 %v1471
        %1833 = vperm.xlu0 %1832, %v1443
        %v1834 = vpop.permute.xlu0 %1833
        %1835 = vset.pattern.permute.xlu0 %v1471
        %1836 = vperm.xlu0 %1835, %v1444
        %v1837 = vpop.permute.xlu0 %1836
        %1838 = vset.pattern.permute.xlu0 %v1471
        %1839 = vperm.xlu0 %1838, %v1445
        %v1840 = vpop.permute.xlu0 %1839
        %1841 = vset.pattern.permute.xlu0 %v1471
        %1842 = vperm.xlu0 %1841, %v1446
        %v1843 = vpop.permute.xlu0 %1842
        %1844 = vset.pattern.permute.xlu0 %v1471
        %1845 = vperm.xlu0 %1844, %v1447
        %v1846 = vpop.permute.xlu0 %1845
        %1847 = vset.pattern.permute.xlu0 %v1471
        %1848 = vperm.xlu0 %1847, %v1448
        %v1849 = vpop.permute.xlu0 %1848
        %1850 = vset.pattern.permute.xlu0 %v1471
        %1851 = vperm.xlu0 %1850, %v1449
        %v1852 = vpop.permute.xlu0 %1851
        %1853 = vset.pattern.permute.xlu0 %v1471
        %1854 = vperm.xlu0 %1853, %v1450
        %v1855 = vpop.permute.xlu0 %1854
        %1856 = vset.pattern.permute.xlu0 %v1471
        %1857 = vperm.xlu0 %1856, %v1451
        %v1858 = vpop.permute.xlu0 %1857
        %1859 = vset.pattern.permute.xlu0 %v1471
        %1860 = vperm.xlu0 %1859, %v1452
        %v1861 = vpop.permute.xlu0 %1860
        %1862 = vset.pattern.permute.xlu0 %v1471
        %1863 = vperm.xlu0 %1862, %v1453
        %v1864 = vpop.permute.xlu0 %1863
        %1865 = vset.pattern.permute.xlu0 %v1471
        %1866 = vperm.xlu0 %1865, %v1454
        %v1867 = vpop.permute.xlu0 %1866
        %1868 = vset.pattern.permute.xlu0 %v1471
        %1869 = vperm.xlu0 %1868, %v1455
        %v1870 = vpop.permute.xlu0 %1869
        %1871 = vset.pattern.permute.xlu0 %v1471
        %1872 = vperm.xlu0 %1871, %v1456
        %v1873 = vpop.permute.xlu0 %1872
        %1874 = vset.pattern.permute.xlu0 %v1471
        %1875 = vperm.xlu0 %1874, %v1457
        %v1876 = vpop.permute.xlu0 %1875
        %1877 = vset.pattern.permute.xlu0 %v1471
        %1878 = vperm.xlu0 %1877, %v1458
        %v1879 = vpop.permute.xlu0 %1878
        %1880 = vset.pattern.permute.xlu0 %v1471
        %1881 = vperm.xlu0 %1880, %v1459
        %v1882 = vpop.permute.xlu0 %1881
        %1883 = vset.pattern.permute.xlu0 %v1471
        %1884 = vperm.xlu0 %1883, %v1460
        %v1885 = vpop.permute.xlu0 %1884
        %1886 = vset.pattern.permute.xlu0 %v1471
        %1887 = vperm.xlu0 %1886, %v1461
        %v1888 = vpop.permute.xlu0 %1887
        %1889 = vset.pattern.permute.xlu0 %v1471
        %1890 = vperm.xlu0 %1889, %v1462
        %v1891 = vpop.permute.xlu0 %1890
        %1892 = vset.pattern.permute.xlu0 %v1471
        %1893 = vperm.xlu0 %1892, %v1463
        %v1894 = vpop.permute.xlu0 %1893
        %1895 = vset.pattern.permute.xlu0 %v1471
        %1896 = vperm.xlu0 %1895, %v1464
        %v1897 = vpop.permute.xlu0 %1896
        %1898 = vset.pattern.permute.xlu0 %v1471
        %1899 = vperm.xlu0 %1898, %v1465
        %v1900 = vpop.permute.xlu0 %1899
        %1901 = vset.pattern.permute.xlu0 %v1471
        %1902 = vperm.xlu0 %1901, %v1466
        %v1903 = vpop.permute.xlu0 %1902
        %v1904 = vlaneseq
        %v1905 = vand.u32 %v1904, 127
        %v1906 = vsub.s32 %v1690, %v1905
        %v1907 = vsub.s32 %v1693, %v1905
        %v1908 = vsub.s32 %v1696, %v1905
        %v1909 = vsub.s32 %v1699, %v1905
        %v1910 = vsub.s32 %v1702, %v1905
        %v1911 = vsub.s32 %v1705, %v1905
        %v1912 = vsub.s32 %v1708, %v1905
        %v1913 = vsub.s32 %v1711, %v1905
        %v1914 = vsub.s32 %v1714, %v1905
        %v1915 = vsub.s32 %v1717, %v1905
        %v1916 = vsub.s32 %v1720, %v1905
        %v1917 = vsub.s32 %v1723, %v1905
        %v1918 = vsub.s32 %v1726, %v1905
        %v1919 = vsub.s32 %v1729, %v1905
        %v1920 = vsub.s32 %v1732, %v1905
        %v1921 = vsub.s32 %v1735, %v1905
        %v1922 = vsub.s32 %v1738, %v1905
        %v1923 = vsub.s32 %v1741, %v1905
        %v1924 = vsub.s32 %v1744, %v1905
        %v1925 = vsub.s32 %v1747, %v1905
        %v1926 = vsub.s32 %v1750, %v1905
        %v1927 = vsub.s32 %v1753, %v1905
        %v1928 = vsub.s32 %v1756, %v1905
        %v1929 = vsub.s32 %v1759, %v1905
        %v1930 = vsub.s32 %v1762, %v1905
        %v1931 = vsub.s32 %v1765, %v1905
        %v1932 = vsub.s32 %v1768, %v1905
        %v1933 = vsub.s32 %v1771, %v1905
        %v1934 = vsub.s32 %v1774, %v1905
        %v1935 = vsub.s32 %v1777, %v1905
        %v1936 = vsub.s32 %v1780, %v1905
        %v1937 = vsub.s32 %v1783, %v1905
        %v1938 = vsub.s32 %v1786, %v1905
        %v1939 = vsub.s32 %v1789, %v1905
        %v1940 = vsub.s32 %v1792, %v1905
        %v1941 = vsub.s32 %v1795, %v1905
        %v1942 = vsub.s32 %v1798, %v1905
        %v1943 = vsub.s32 %v1801, %v1905
        %v1944 = vsub.s32 %v1804, %v1905
        %v1945 = vsub.s32 %v1807, %v1905
        %v1946 = vsub.s32 %v1810, %v1905
        %v1947 = vsub.s32 %v1813, %v1905
        %v1948 = vsub.s32 %v1816, %v1905
        %v1949 = vsub.s32 %v1819, %v1905
        %v1950 = vsub.s32 %v1822, %v1905
        %v1951 = vsub.s32 %v1825, %v1905
        %v1952 = vsub.s32 %v1828, %v1905
        %v1953 = vsub.s32 %v1831, %v1905
        %v1954 = vsub.s32 %v1834, %v1905
        %v1955 = vsub.s32 %v1837, %v1905
        %v1956 = vsub.s32 %v1840, %v1905
        %v1957 = vsub.s32 %v1843, %v1905
        %v1958 = vsub.s32 %v1846, %v1905
        %v1959 = vsub.s32 %v1849, %v1905
        %v1960 = vsub.s32 %v1852, %v1905
        %v1961 = vsub.s32 %v1855, %v1905
        %v1962 = vsub.s32 %v1858, %v1905
        %v1963 = vsub.s32 %v1861, %v1905
        %v1964 = vsub.s32 %v1864, %v1905
        %v1965 = vsub.s32 %v1867, %v1905
        %v1966 = vsub.s32 %v1870, %v1905
        %v1967 = vsub.s32 %v1873, %v1905
        %v1968 = vsub.s32 %v1876, %v1905
        %v1969 = vsub.s32 %v1879, %v1905
        %v1970 = vsub.s32 %v1882, %v1905
        %v1971 = vsub.s32 %v1885, %v1905
        %v1972 = vsub.s32 %v1888, %v1905
        %v1973 = vsub.s32 %v1891, %v1905
        %v1974 = vsub.s32 %v1894, %v1905
        %v1975 = vsub.s32 %v1897, %v1905
        %v1976 = vsub.s32 %v1900, %v1905
        %v1977 = vsub.s32 %v1903, %v1905
        %vm1978 = vcmp.eq.s32.totalorder %v1906, 0
        %vm1979 = vcmp.eq.s32.totalorder %v1907, 0
        %vm1980 = vcmp.eq.s32.totalorder %v1908, 0
        %vm1981 = vcmp.eq.s32.totalorder %v1909, 0
        %vm1982 = vcmp.eq.s32.totalorder %v1910, 0
        %vm1983 = vcmp.eq.s32.totalorder %v1911, 0
        %vm1984 = vcmp.eq.s32.totalorder %v1912, 0
        %vm1985 = vcmp.eq.s32.totalorder %v1913, 0
        %vm1986 = vcmp.eq.s32.totalorder %v1914, 0
        %vm1987 = vcmp.eq.s32.totalorder %v1915, 0
        %vm1988 = vcmp.eq.s32.totalorder %v1916, 0
        %vm1989 = vcmp.eq.s32.totalorder %v1917, 0
        %vm1990 = vcmp.eq.s32.totalorder %v1918, 0
        %vm1991 = vcmp.eq.s32.totalorder %v1919, 0
        %vm1992 = vcmp.eq.s32.totalorder %v1920, 0
        %vm1993 = vcmp.eq.s32.totalorder %v1921, 0
        %vm1994 = vcmp.eq.s32.totalorder %v1922, 0
        %vm1995 = vcmp.eq.s32.totalorder %v1923, 0
        %vm1996 = vcmp.eq.s32.totalorder %v1924, 0
        %vm1997 = vcmp.eq.s32.totalorder %v1925, 0
        %vm1998 = vcmp.eq.s32.totalorder %v1926, 0
        %vm1999 = vcmp.eq.s32.totalorder %v1927, 0
        %vm2000 = vcmp.eq.s32.totalorder %v1928, 0
        %vm2001 = vcmp.eq.s32.totalorder %v1929, 0
        %vm2002 = vcmp.eq.s32.totalorder %v1930, 0
        %vm2003 = vcmp.eq.s32.totalorder %v1931, 0
        %vm2004 = vcmp.eq.s32.totalorder %v1932, 0
        %vm2005 = vcmp.eq.s32.totalorder %v1933, 0
        %vm2006 = vcmp.eq.s32.totalorder %v1934, 0
        %vm2007 = vcmp.eq.s32.totalorder %v1935, 0
        %vm2008 = vcmp.eq.s32.totalorder %v1936, 0
        %vm2009 = vcmp.eq.s32.totalorder %v1937, 0
        %vm2010 = vcmp.eq.s32.totalorder %v1938, 0
        %vm2011 = vcmp.eq.s32.totalorder %v1939, 0
        %vm2012 = vcmp.eq.s32.totalorder %v1940, 0
        %vm2013 = vcmp.eq.s32.totalorder %v1941, 0
        %vm2014 = vcmp.eq.s32.totalorder %v1942, 0
        %vm2015 = vcmp.eq.s32.totalorder %v1943, 0
        %vm2016 = vcmp.eq.s32.totalorder %v1944, 0
        %vm2017 = vcmp.eq.s32.totalorder %v1945, 0
        %vm2018 = vcmp.eq.s32.totalorder %v1946, 0
        %vm2019 = vcmp.eq.s32.totalorder %v1947, 0
        %vm2020 = vcmp.eq.s32.totalorder %v1948, 0
        %vm2021 = vcmp.eq.s32.totalorder %v1949, 0
        %vm2022 = vcmp.eq.s32.totalorder %v1950, 0
        %vm2023 = vcmp.eq.s32.totalorder %v1951, 0
        %vm2024 = vcmp.eq.s32.totalorder %v1952, 0
        %vm2025 = vcmp.eq.s32.totalorder %v1953, 0
        %vm2026 = vcmp.eq.s32.totalorder %v1954, 0
        %vm2027 = vcmp.eq.s32.totalorder %v1955, 0
        %vm2028 = vcmp.eq.s32.totalorder %v1956, 0
        %vm2029 = vcmp.eq.s32.totalorder %v1957, 0
        %vm2030 = vcmp.eq.s32.totalorder %v1958, 0
        %vm2031 = vcmp.eq.s32.totalorder %v1959, 0
        %vm2032 = vcmp.eq.s32.totalorder %v1960, 0
        %vm2033 = vcmp.eq.s32.totalorder %v1961, 0
        %vm2034 = vcmp.eq.s32.totalorder %v1962, 0
        %vm2035 = vcmp.eq.s32.totalorder %v1963, 0
        %vm2036 = vcmp.eq.s32.totalorder %v1964, 0
        %vm2037 = vcmp.eq.s32.totalorder %v1965, 0
        %vm2038 = vcmp.eq.s32.totalorder %v1966, 0
        %vm2039 = vcmp.eq.s32.totalorder %v1967, 0
        %vm2040 = vcmp.eq.s32.totalorder %v1968, 0
        %vm2041 = vcmp.eq.s32.totalorder %v1969, 0
        %vm2042 = vcmp.eq.s32.totalorder %v1970, 0
        %vm2043 = vcmp.eq.s32.totalorder %v1971, 0
        %vm2044 = vcmp.eq.s32.totalorder %v1972, 0
        %vm2045 = vcmp.eq.s32.totalorder %v1973, 0
        %vm2046 = vcmp.eq.s32.totalorder %v1974, 0
        %vm2047 = vcmp.eq.s32.totalorder %v1975, 0
        %vm2048 = vcmp.eq.s32.totalorder %v1976, 0
        %vm2049 = vcmp.eq.s32.totalorder %v1977, 0
        %v2050 = vsel %vm1978, %v1474, 0.0
        %v2051 = vsel %vm1979, %v1477, 0.0
        %v2052 = vsel %vm1980, %v1480, 0.0
        %v2053 = vsel %vm1981, %v1483, 0.0
        %v2054 = vsel %vm1982, %v1486, 0.0
        %v2055 = vsel %vm1983, %v1489, 0.0
        %v2056 = vsel %vm1984, %v1492, 0.0
        %v2057 = vsel %vm1985, %v1495, 0.0
        %v2058 = vsel %vm1986, %v1498, 0.0
        %v2059 = vsel %vm1987, %v1501, 0.0
        %v2060 = vsel %vm1988, %v1504, 0.0
        %v2061 = vsel %vm1989, %v1507, 0.0
        %v2062 = vsel %vm1990, %v1510, 0.0
        %v2063 = vsel %vm1991, %v1513, 0.0
        %v2064 = vsel %vm1992, %v1516, 0.0
        %v2065 = vsel %vm1993, %v1519, 0.0
        %v2066 = vsel %vm1994, %v1522, 0.0
        %v2067 = vsel %vm1995, %v1525, 0.0
        %v2068 = vsel %vm1996, %v1528, 0.0
        %v2069 = vsel %vm1997, %v1531, 0.0
        %v2070 = vsel %vm1998, %v1534, 0.0
        %v2071 = vsel %vm1999, %v1537, 0.0
        %v2072 = vsel %vm2000, %v1540, 0.0
        %v2073 = vsel %vm2001, %v1543, 0.0
        %v2074 = vsel %vm2002, %v1546, 0.0
        %v2075 = vsel %vm2003, %v1549, 0.0
        %v2076 = vsel %vm2004, %v1552, 0.0
        %v2077 = vsel %vm2005, %v1555, 0.0
        %v2078 = vsel %vm2006, %v1558, 0.0
        %v2079 = vsel %vm2007, %v1561, 0.0
        %v2080 = vsel %vm2008, %v1564, 0.0
        %v2081 = vsel %vm2009, %v1567, 0.0
        %v2082 = vsel %vm2010, %v1570, 0.0
        %v2083 = vsel %vm2011, %v1573, 0.0
        %v2084 = vsel %vm2012, %v1576, 0.0
        %v2085 = vsel %vm2013, %v1579, 0.0
        %v2086 = vsel %vm2014, %v1582, 0.0
        %v2087 = vsel %vm2015, %v1585, 0.0
        %v2088 = vsel %vm2016, %v1588, 0.0
        %v2089 = vsel %vm2017, %v1591, 0.0
        %v2090 = vsel %vm2018, %v1594, 0.0
        %v2091 = vsel %vm2019, %v1597, 0.0
        %v2092 = vsel %vm2020, %v1600, 0.0
        %v2093 = vsel %vm2021, %v1603, 0.0
        %v2094 = vsel %vm2022, %v1606, 0.0
        %v2095 = vsel %vm2023, %v1609, 0.0
        %v2096 = vsel %vm2024, %v1612, 0.0
        %v2097 = vsel %vm2025, %v1615, 0.0
        %v2098 = vsel %vm2026, %v1618, 0.0
        %v2099 = vsel %vm2027, %v1621, 0.0
        %v2100 = vsel %vm2028, %v1624, 0.0
        %v2101 = vsel %vm2029, %v1627, 0.0
        %v2102 = vsel %vm2030, %v1630, 0.0
        %v2103 = vsel %vm2031, %v1633, 0.0
        %v2104 = vsel %vm2032, %v1636, 0.0
        %v2105 = vsel %vm2033, %v1639, 0.0
        %v2106 = vsel %vm2034, %v1642, 0.0
        %v2107 = vsel %vm2035, %v1645, 0.0
        %v2108 = vsel %vm2036, %v1648, 0.0
        %v2109 = vsel %vm2037, %v1651, 0.0
        %v2110 = vsel %vm2038, %v1654, 0.0
        %v2111 = vsel %vm2039, %v1657, 0.0
        %v2112 = vsel %vm2040, %v1660, 0.0
        %v2113 = vsel %vm2041, %v1663, 0.0
        %v2114 = vsel %vm2042, %v1666, 0.0
        %v2115 = vsel %vm2043, %v1669, 0.0
        %v2116 = vsel %vm2044, %v1672, 0.0
        %v2117 = vsel %vm2045, %v1675, 0.0
        %v2118 = vsel %vm2046, %v1678, 0.0
        %v2119 = vsel %vm2047, %v1681, 0.0
        %v2120 = vsel %vm2048, %v1684, 0.0
        %v2121 = vsel %vm2049, %v1687, 0.0
        %vm2122 = vcmp.eq.s32.totalorder %v1906, 64
        %vm2123 = vcmp.eq.s32.totalorder %v1907, 64
        %vm2124 = vcmp.eq.s32.totalorder %v1908, 64
        %vm2125 = vcmp.eq.s32.totalorder %v1909, 64
        %vm2126 = vcmp.eq.s32.totalorder %v1910, 64
        %vm2127 = vcmp.eq.s32.totalorder %v1911, 64
        %vm2128 = vcmp.eq.s32.totalorder %v1912, 64
        %vm2129 = vcmp.eq.s32.totalorder %v1913, 64
        %vm2130 = vcmp.eq.s32.totalorder %v1914, 64
        %vm2131 = vcmp.eq.s32.totalorder %v1915, 64
        %vm2132 = vcmp.eq.s32.totalorder %v1916, 64
        %vm2133 = vcmp.eq.s32.totalorder %v1917, 64
        %vm2134 = vcmp.eq.s32.totalorder %v1918, 64
        %vm2135 = vcmp.eq.s32.totalorder %v1919, 64
        %vm2136 = vcmp.eq.s32.totalorder %v1920, 64
        %vm2137 = vcmp.eq.s32.totalorder %v1921, 64
        %vm2138 = vcmp.eq.s32.totalorder %v1922, 64
        %vm2139 = vcmp.eq.s32.totalorder %v1923, 64
        %vm2140 = vcmp.eq.s32.totalorder %v1924, 64
        %vm2141 = vcmp.eq.s32.totalorder %v1925, 64
        %vm2142 = vcmp.eq.s32.totalorder %v1926, 64
        %vm2143 = vcmp.eq.s32.totalorder %v1927, 64
        %vm2144 = vcmp.eq.s32.totalorder %v1928, 64
        %vm2145 = vcmp.eq.s32.totalorder %v1929, 64
        %vm2146 = vcmp.eq.s32.totalorder %v1930, 64
        %vm2147 = vcmp.eq.s32.totalorder %v1931, 64
        %vm2148 = vcmp.eq.s32.totalorder %v1932, 64
        %vm2149 = vcmp.eq.s32.totalorder %v1933, 64
        %vm2150 = vcmp.eq.s32.totalorder %v1934, 64
        %vm2151 = vcmp.eq.s32.totalorder %v1935, 64
        %vm2152 = vcmp.eq.s32.totalorder %v1936, 64
        %vm2153 = vcmp.eq.s32.totalorder %v1937, 64
        %vm2154 = vcmp.eq.s32.totalorder %v1938, 64
        %vm2155 = vcmp.eq.s32.totalorder %v1939, 64
        %vm2156 = vcmp.eq.s32.totalorder %v1940, 64
        %vm2157 = vcmp.eq.s32.totalorder %v1941, 64
        %vm2158 = vcmp.eq.s32.totalorder %v1942, 64
        %vm2159 = vcmp.eq.s32.totalorder %v1943, 64
        %vm2160 = vcmp.eq.s32.totalorder %v1944, 64
        %vm2161 = vcmp.eq.s32.totalorder %v1945, 64
        %vm2162 = vcmp.eq.s32.totalorder %v1946, 64
        %vm2163 = vcmp.eq.s32.totalorder %v1947, 64
        %vm2164 = vcmp.eq.s32.totalorder %v1948, 64
        %vm2165 = vcmp.eq.s32.totalorder %v1949, 64
        %vm2166 = vcmp.eq.s32.totalorder %v1950, 64
        %vm2167 = vcmp.eq.s32.totalorder %v1951, 64
        %vm2168 = vcmp.eq.s32.totalorder %v1952, 64
        %vm2169 = vcmp.eq.s32.totalorder %v1953, 64
        %vm2170 = vcmp.eq.s32.totalorder %v1954, 64
        %vm2171 = vcmp.eq.s32.totalorder %v1955, 64
        %vm2172 = vcmp.eq.s32.totalorder %v1956, 64
        %vm2173 = vcmp.eq.s32.totalorder %v1957, 64
        %vm2174 = vcmp.eq.s32.totalorder %v1958, 64
        %vm2175 = vcmp.eq.s32.totalorder %v1959, 64
        %vm2176 = vcmp.eq.s32.totalorder %v1960, 64
        %vm2177 = vcmp.eq.s32.totalorder %v1961, 64
        %vm2178 = vcmp.eq.s32.totalorder %v1962, 64
        %vm2179 = vcmp.eq.s32.totalorder %v1963, 64
        %vm2180 = vcmp.eq.s32.totalorder %v1964, 64
        %vm2181 = vcmp.eq.s32.totalorder %v1965, 64
        %vm2182 = vcmp.eq.s32.totalorder %v1966, 64
        %vm2183 = vcmp.eq.s32.totalorder %v1967, 64
        %vm2184 = vcmp.eq.s32.totalorder %v1968, 64
        %vm2185 = vcmp.eq.s32.totalorder %v1969, 64
        %vm2186 = vcmp.eq.s32.totalorder %v1970, 64
        %vm2187 = vcmp.eq.s32.totalorder %v1971, 64
        %vm2188 = vcmp.eq.s32.totalorder %v1972, 64
        %vm2189 = vcmp.eq.s32.totalorder %v1973, 64
        %vm2190 = vcmp.eq.s32.totalorder %v1974, 64
        %vm2191 = vcmp.eq.s32.totalorder %v1975, 64
        %vm2192 = vcmp.eq.s32.totalorder %v1976, 64
        %vm2193 = vcmp.eq.s32.totalorder %v1977, 64
        %v2194 = vsel %vm2122, %v1474, 0.0
        %v2195 = vsel %vm2123, %v1477, 0.0
        %v2196 = vsel %vm2124, %v1480, 0.0
        %v2197 = vsel %vm2125, %v1483, 0.0
        %v2198 = vsel %vm2126, %v1486, 0.0
        %v2199 = vsel %vm2127, %v1489, 0.0
        %v2200 = vsel %vm2128, %v1492, 0.0
        %v2201 = vsel %vm2129, %v1495, 0.0
        %v2202 = vsel %vm2130, %v1498, 0.0
        %v2203 = vsel %vm2131, %v1501, 0.0
        %v2204 = vsel %vm2132, %v1504, 0.0
        %v2205 = vsel %vm2133, %v1507, 0.0
        %v2206 = vsel %vm2134, %v1510, 0.0
        %v2207 = vsel %vm2135, %v1513, 0.0
        %v2208 = vsel %vm2136, %v1516, 0.0
        %v2209 = vsel %vm2137, %v1519, 0.0
        %v2210 = vsel %vm2138, %v1522, 0.0
        %v2211 = vsel %vm2139, %v1525, 0.0
        %v2212 = vsel %vm2140, %v1528, 0.0
        %v2213 = vsel %vm2141, %v1531, 0.0
        %v2214 = vsel %vm2142, %v1534, 0.0
        %v2215 = vsel %vm2143, %v1537, 0.0
        %v2216 = vsel %vm2144, %v1540, 0.0
        %v2217 = vsel %vm2145, %v1543, 0.0
        %v2218 = vsel %vm2146, %v1546, 0.0
        %v2219 = vsel %vm2147, %v1549, 0.0
        %v2220 = vsel %vm2148, %v1552, 0.0
        %v2221 = vsel %vm2149, %v1555, 0.0
        %v2222 = vsel %vm2150, %v1558, 0.0
        %v2223 = vsel %vm2151, %v1561, 0.0
        %v2224 = vsel %vm2152, %v1564, 0.0
        %v2225 = vsel %vm2153, %v1567, 0.0
        %v2226 = vsel %vm2154, %v1570, 0.0
        %v2227 = vsel %vm2155, %v1573, 0.0
        %v2228 = vsel %vm2156, %v1576, 0.0
        %v2229 = vsel %vm2157, %v1579, 0.0
        %v2230 = vsel %vm2158, %v1582, 0.0
        %v2231 = vsel %vm2159, %v1585, 0.0
        %v2232 = vsel %vm2160, %v1588, 0.0
        %v2233 = vsel %vm2161, %v1591, 0.0
        %v2234 = vsel %vm2162, %v1594, 0.0
        %v2235 = vsel %vm2163, %v1597, 0.0
        %v2236 = vsel %vm2164, %v1600, 0.0
        %v2237 = vsel %vm2165, %v1603, 0.0
        %v2238 = vsel %vm2166, %v1606, 0.0
        %v2239 = vsel %vm2167, %v1609, 0.0
        %v2240 = vsel %vm2168, %v1612, 0.0
        %v2241 = vsel %vm2169, %v1615, 0.0
        %v2242 = vsel %vm2170, %v1618, 0.0
        %v2243 = vsel %vm2171, %v1621, 0.0
        %v2244 = vsel %vm2172, %v1624, 0.0
        %v2245 = vsel %vm2173, %v1627, 0.0
        %v2246 = vsel %vm2174, %v1630, 0.0
        %v2247 = vsel %vm2175, %v1633, 0.0
        %v2248 = vsel %vm2176, %v1636, 0.0
        %v2249 = vsel %vm2177, %v1639, 0.0
        %v2250 = vsel %vm2178, %v1642, 0.0
        %v2251 = vsel %vm2179, %v1645, 0.0
        %v2252 = vsel %vm2180, %v1648, 0.0
        %v2253 = vsel %vm2181, %v1651, 0.0
        %v2254 = vsel %vm2182, %v1654, 0.0
        %v2255 = vsel %vm2183, %v1657, 0.0
        %v2256 = vsel %vm2184, %v1660, 0.0
        %v2257 = vsel %vm2185, %v1663, 0.0
        %v2258 = vsel %vm2186, %v1666, 0.0
        %v2259 = vsel %vm2187, %v1669, 0.0
        %v2260 = vsel %vm2188, %v1672, 0.0
        %v2261 = vsel %vm2189, %v1675, 0.0
        %v2262 = vsel %vm2190, %v1678, 0.0
        %v2263 = vsel %vm2191, %v1681, 0.0
        %v2264 = vsel %vm2192, %v1684, 0.0
        %v2265 = vsel %vm2193, %v1687, 0.0
        %vm2266 = vcmp.eq.s32.totalorder %v1906, 128
        %vm2267 = vcmp.eq.s32.totalorder %v1907, 128
        %vm2268 = vcmp.eq.s32.totalorder %v1908, 128
        %vm2269 = vcmp.eq.s32.totalorder %v1909, 128
        %vm2270 = vcmp.eq.s32.totalorder %v1910, 128
        %vm2271 = vcmp.eq.s32.totalorder %v1911, 128
        %vm2272 = vcmp.eq.s32.totalorder %v1912, 128
        %vm2273 = vcmp.eq.s32.totalorder %v1913, 128
        %vm2274 = vcmp.eq.s32.totalorder %v1914, 128
        %vm2275 = vcmp.eq.s32.totalorder %v1915, 128
        %vm2276 = vcmp.eq.s32.totalorder %v1916, 128
        %vm2277 = vcmp.eq.s32.totalorder %v1917, 128
        %vm2278 = vcmp.eq.s32.totalorder %v1918, 128
        %vm2279 = vcmp.eq.s32.totalorder %v1919, 128
        %vm2280 = vcmp.eq.s32.totalorder %v1920, 128
        %vm2281 = vcmp.eq.s32.totalorder %v1921, 128
        %vm2282 = vcmp.eq.s32.totalorder %v1922, 128
        %vm2283 = vcmp.eq.s32.totalorder %v1923, 128
        %vm2284 = vcmp.eq.s32.totalorder %v1924, 128
        %vm2285 = vcmp.eq.s32.totalorder %v1925, 128
        %vm2286 = vcmp.eq.s32.totalorder %v1926, 128
        %vm2287 = vcmp.eq.s32.totalorder %v1927, 128
        %vm2288 = vcmp.eq.s32.totalorder %v1928, 128
        %vm2289 = vcmp.eq.s32.totalorder %v1929, 128
        %vm2290 = vcmp.eq.s32.totalorder %v1930, 128
        %vm2291 = vcmp.eq.s32.totalorder %v1931, 128
        %vm2292 = vcmp.eq.s32.totalorder %v1932, 128
        %vm2293 = vcmp.eq.s32.totalorder %v1933, 128
        %vm2294 = vcmp.eq.s32.totalorder %v1934, 128
        %vm2295 = vcmp.eq.s32.totalorder %v1935, 128
        %vm2296 = vcmp.eq.s32.totalorder %v1936, 128
        %vm2297 = vcmp.eq.s32.totalorder %v1937, 128
        %vm2298 = vcmp.eq.s32.totalorder %v1938, 128
        %vm2299 = vcmp.eq.s32.totalorder %v1939, 128
        %vm2300 = vcmp.eq.s32.totalorder %v1940, 128
        %vm2301 = vcmp.eq.s32.totalorder %v1941, 128
        %vm2302 = vcmp.eq.s32.totalorder %v1942, 128
        %vm2303 = vcmp.eq.s32.totalorder %v1943, 128
        %vm2304 = vcmp.eq.s32.totalorder %v1944, 128
        %vm2305 = vcmp.eq.s32.totalorder %v1945, 128
        %vm2306 = vcmp.eq.s32.totalorder %v1946, 128
        %vm2307 = vcmp.eq.s32.totalorder %v1947, 128
        %vm2308 = vcmp.eq.s32.totalorder %v1948, 128
        %vm2309 = vcmp.eq.s32.totalorder %v1949, 128
        %vm2310 = vcmp.eq.s32.totalorder %v1950, 128
        %vm2311 = vcmp.eq.s32.totalorder %v1951, 128
        %vm2312 = vcmp.eq.s32.totalorder %v1952, 128
        %vm2313 = vcmp.eq.s32.totalorder %v1953, 128
        %vm2314 = vcmp.eq.s32.totalorder %v1954, 128
        %vm2315 = vcmp.eq.s32.totalorder %v1955, 128
        %vm2316 = vcmp.eq.s32.totalorder %v1956, 128
        %vm2317 = vcmp.eq.s32.totalorder %v1957, 128
        %vm2318 = vcmp.eq.s32.totalorder %v1958, 128
        %vm2319 = vcmp.eq.s32.totalorder %v1959, 128
        %vm2320 = vcmp.eq.s32.totalorder %v1960, 128
        %vm2321 = vcmp.eq.s32.totalorder %v1961, 128
        %vm2322 = vcmp.eq.s32.totalorder %v1962, 128
        %vm2323 = vcmp.eq.s32.totalorder %v1963, 128
        %vm2324 = vcmp.eq.s32.totalorder %v1964, 128
        %vm2325 = vcmp.eq.s32.totalorder %v1965, 128
        %vm2326 = vcmp.eq.s32.totalorder %v1966, 128
        %vm2327 = vcmp.eq.s32.totalorder %v1967, 128
        %vm2328 = vcmp.eq.s32.totalorder %v1968, 128
        %vm2329 = vcmp.eq.s32.totalorder %v1969, 128
        %vm2330 = vcmp.eq.s32.totalorder %v1970, 128
        %vm2331 = vcmp.eq.s32.totalorder %v1971, 128
        %vm2332 = vcmp.eq.s32.totalorder %v1972, 128
        %vm2333 = vcmp.eq.s32.totalorder %v1973, 128
        %vm2334 = vcmp.eq.s32.totalorder %v1974, 128
        %vm2335 = vcmp.eq.s32.totalorder %v1975, 128
        %vm2336 = vcmp.eq.s32.totalorder %v1976, 128
        %vm2337 = vcmp.eq.s32.totalorder %v1977, 128
        %v2338 = vsel %vm2266, %v1474, 0.0
        %v2339 = vsel %vm2267, %v1477, 0.0
        %v2340 = vsel %vm2268, %v1480, 0.0
        %v2341 = vsel %vm2269, %v1483, 0.0
        %v2342 = vsel %vm2270, %v1486, 0.0
        %v2343 = vsel %vm2271, %v1489, 0.0
        %v2344 = vsel %vm2272, %v1492, 0.0
        %v2345 = vsel %vm2273, %v1495, 0.0
        %v2346 = vsel %vm2274, %v1498, 0.0
        %v2347 = vsel %vm2275, %v1501, 0.0
        %v2348 = vsel %vm2276, %v1504, 0.0
        %v2349 = vsel %vm2277, %v1507, 0.0
        %v2350 = vsel %vm2278, %v1510, 0.0
        %v2351 = vsel %vm2279, %v1513, 0.0
        %v2352 = vsel %vm2280, %v1516, 0.0
        %v2353 = vsel %vm2281, %v1519, 0.0
        %v2354 = vsel %vm2282, %v1522, 0.0
        %v2355 = vsel %vm2283, %v1525, 0.0
        %v2356 = vsel %vm2284, %v1528, 0.0
        %v2357 = vsel %vm2285, %v1531, 0.0
        %v2358 = vsel %vm2286, %v1534, 0.0
        %v2359 = vsel %vm2287, %v1537, 0.0
        %v2360 = vsel %vm2288, %v1540, 0.0
        %v2361 = vsel %vm2289, %v1543, 0.0
        %v2362 = vsel %vm2290, %v1546, 0.0
        %v2363 = vsel %vm2291, %v1549, 0.0
        %v2364 = vsel %vm2292, %v1552, 0.0
        %v2365 = vsel %vm2293, %v1555, 0.0
        %v2366 = vsel %vm2294, %v1558, 0.0
        %v2367 = vsel %vm2295, %v1561, 0.0
        %v2368 = vsel %vm2296, %v1564, 0.0
        %v2369 = vsel %vm2297, %v1567, 0.0
        %v2370 = vsel %vm2298, %v1570, 0.0
        %v2371 = vsel %vm2299, %v1573, 0.0
        %v2372 = vsel %vm2300, %v1576, 0.0
        %v2373 = vsel %vm2301, %v1579, 0.0
        %v2374 = vsel %vm2302, %v1582, 0.0
        %v2375 = vsel %vm2303, %v1585, 0.0
        %v2376 = vsel %vm2304, %v1588, 0.0
        %v2377 = vsel %vm2305, %v1591, 0.0
        %v2378 = vsel %vm2306, %v1594, 0.0
        %v2379 = vsel %vm2307, %v1597, 0.0
        %v2380 = vsel %vm2308, %v1600, 0.0
        %v2381 = vsel %vm2309, %v1603, 0.0
        %v2382 = vsel %vm2310, %v1606, 0.0
        %v2383 = vsel %vm2311, %v1609, 0.0
        %v2384 = vsel %vm2312, %v1612, 0.0
        %v2385 = vsel %vm2313, %v1615, 0.0
        %v2386 = vsel %vm2314, %v1618, 0.0
        %v2387 = vsel %vm2315, %v1621, 0.0
        %v2388 = vsel %vm2316, %v1624, 0.0
        %v2389 = vsel %vm2317, %v1627, 0.0
        %v2390 = vsel %vm2318, %v1630, 0.0
        %v2391 = vsel %vm2319, %v1633, 0.0
        %v2392 = vsel %vm2320, %v1636, 0.0
        %v2393 = vsel %vm2321, %v1639, 0.0
        %v2394 = vsel %vm2322, %v1642, 0.0
        %v2395 = vsel %vm2323, %v1645, 0.0
        %v2396 = vsel %vm2324, %v1648, 0.0
        %v2397 = vsel %vm2325, %v1651, 0.0
        %v2398 = vsel %vm2326, %v1654, 0.0
        %v2399 = vsel %vm2327, %v1657, 0.0
        %v2400 = vsel %vm2328, %v1660, 0.0
        %v2401 = vsel %vm2329, %v1663, 0.0
        %v2402 = vsel %vm2330, %v1666, 0.0
        %v2403 = vsel %vm2331, %v1669, 0.0
        %v2404 = vsel %vm2332, %v1672, 0.0
        %v2405 = vsel %vm2333, %v1675, 0.0
        %v2406 = vsel %vm2334, %v1678, 0.0
        %v2407 = vsel %vm2335, %v1681, 0.0
        %v2408 = vsel %vm2336, %v1684, 0.0
        %v2409 = vsel %vm2337, %v1687, 0.0
        %vm2410 = vcmp.eq.s32.totalorder %v1906, 192
        %vm2411 = vcmp.eq.s32.totalorder %v1907, 192
        %vm2412 = vcmp.eq.s32.totalorder %v1908, 192
        %vm2413 = vcmp.eq.s32.totalorder %v1909, 192
        %vm2414 = vcmp.eq.s32.totalorder %v1910, 192
        %vm2415 = vcmp.eq.s32.totalorder %v1911, 192
        %vm2416 = vcmp.eq.s32.totalorder %v1912, 192
        %vm2417 = vcmp.eq.s32.totalorder %v1913, 192
        %vm2418 = vcmp.eq.s32.totalorder %v1914, 192
        %vm2419 = vcmp.eq.s32.totalorder %v1915, 192
        %vm2420 = vcmp.eq.s32.totalorder %v1916, 192
        %vm2421 = vcmp.eq.s32.totalorder %v1917, 192
        %vm2422 = vcmp.eq.s32.totalorder %v1918, 192
        %vm2423 = vcmp.eq.s32.totalorder %v1919, 192
        %vm2424 = vcmp.eq.s32.totalorder %v1920, 192
        %vm2425 = vcmp.eq.s32.totalorder %v1921, 192
        %vm2426 = vcmp.eq.s32.totalorder %v1922, 192
        %vm2427 = vcmp.eq.s32.totalorder %v1923, 192
        %vm2428 = vcmp.eq.s32.totalorder %v1924, 192
        %vm2429 = vcmp.eq.s32.totalorder %v1925, 192
        %vm2430 = vcmp.eq.s32.totalorder %v1926, 192
        %vm2431 = vcmp.eq.s32.totalorder %v1927, 192
        %vm2432 = vcmp.eq.s32.totalorder %v1928, 192
        %vm2433 = vcmp.eq.s32.totalorder %v1929, 192
        %vm2434 = vcmp.eq.s32.totalorder %v1930, 192
        %vm2435 = vcmp.eq.s32.totalorder %v1931, 192
        %vm2436 = vcmp.eq.s32.totalorder %v1932, 192
        %vm2437 = vcmp.eq.s32.totalorder %v1933, 192
        %vm2438 = vcmp.eq.s32.totalorder %v1934, 192
        %vm2439 = vcmp.eq.s32.totalorder %v1935, 192
        %vm2440 = vcmp.eq.s32.totalorder %v1936, 192
        %vm2441 = vcmp.eq.s32.totalorder %v1937, 192
        %vm2442 = vcmp.eq.s32.totalorder %v1938, 192
        %vm2443 = vcmp.eq.s32.totalorder %v1939, 192
        %vm2444 = vcmp.eq.s32.totalorder %v1940, 192
        %vm2445 = vcmp.eq.s32.totalorder %v1941, 192
        %vm2446 = vcmp.eq.s32.totalorder %v1942, 192
        %vm2447 = vcmp.eq.s32.totalorder %v1943, 192
        %vm2448 = vcmp.eq.s32.totalorder %v1944, 192
        %vm2449 = vcmp.eq.s32.totalorder %v1945, 192
        %vm2450 = vcmp.eq.s32.totalorder %v1946, 192
        %vm2451 = vcmp.eq.s32.totalorder %v1947, 192
        %vm2452 = vcmp.eq.s32.totalorder %v1948, 192
        %vm2453 = vcmp.eq.s32.totalorder %v1949, 192
        %vm2454 = vcmp.eq.s32.totalorder %v1950, 192
        %vm2455 = vcmp.eq.s32.totalorder %v1951, 192
        %vm2456 = vcmp.eq.s32.totalorder %v1952, 192
        %vm2457 = vcmp.eq.s32.totalorder %v1953, 192
        %vm2458 = vcmp.eq.s32.totalorder %v1954, 192
        %vm2459 = vcmp.eq.s32.totalorder %v1955, 192
        %vm2460 = vcmp.eq.s32.totalorder %v1956, 192
        %vm2461 = vcmp.eq.s32.totalorder %v1957, 192
        %vm2462 = vcmp.eq.s32.totalorder %v1958, 192
        %vm2463 = vcmp.eq.s32.totalorder %v1959, 192
        %vm2464 = vcmp.eq.s32.totalorder %v1960, 192
        %vm2465 = vcmp.eq.s32.totalorder %v1961, 192
        %vm2466 = vcmp.eq.s32.totalorder %v1962, 192
        %vm2467 = vcmp.eq.s32.totalorder %v1963, 192
        %vm2468 = vcmp.eq.s32.totalorder %v1964, 192
        %vm2469 = vcmp.eq.s32.totalorder %v1965, 192
        %vm2470 = vcmp.eq.s32.totalorder %v1966, 192
        %vm2471 = vcmp.eq.s32.totalorder %v1967, 192
        %vm2472 = vcmp.eq.s32.totalorder %v1968, 192
        %vm2473 = vcmp.eq.s32.totalorder %v1969, 192
        %vm2474 = vcmp.eq.s32.totalorder %v1970, 192
        %vm2475 = vcmp.eq.s32.totalorder %v1971, 192
        %vm2476 = vcmp.eq.s32.totalorder %v1972, 192
        %vm2477 = vcmp.eq.s32.totalorder %v1973, 192
        %vm2478 = vcmp.eq.s32.totalorder %v1974, 192
        %vm2479 = vcmp.eq.s32.totalorder %v1975, 192
        %vm2480 = vcmp.eq.s32.totalorder %v1976, 192
        %vm2481 = vcmp.eq.s32.totalorder %v1977, 192
        %v2482 = vsel %vm2410, %v1474, 0.0
        %v2483 = vsel %vm2411, %v1477, 0.0
        %v2484 = vsel %vm2412, %v1480, 0.0
        %v2485 = vsel %vm2413, %v1483, 0.0
        %v2486 = vsel %vm2414, %v1486, 0.0
        %v2487 = vsel %vm2415, %v1489, 0.0
        %v2488 = vsel %vm2416, %v1492, 0.0
        %v2489 = vsel %vm2417, %v1495, 0.0
        %v2490 = vsel %vm2418, %v1498, 0.0
        %v2491 = vsel %vm2419, %v1501, 0.0
        %v2492 = vsel %vm2420, %v1504, 0.0
        %v2493 = vsel %vm2421, %v1507, 0.0
        %v2494 = vsel %vm2422, %v1510, 0.0
        %v2495 = vsel %vm2423, %v1513, 0.0
        %v2496 = vsel %vm2424, %v1516, 0.0
        %v2497 = vsel %vm2425, %v1519, 0.0
        %v2498 = vsel %vm2426, %v1522, 0.0
        %v2499 = vsel %vm2427, %v1525, 0.0
        %v2500 = vsel %vm2428, %v1528, 0.0
        %v2501 = vsel %vm2429, %v1531, 0.0
        %v2502 = vsel %vm2430, %v1534, 0.0
        %v2503 = vsel %vm2431, %v1537, 0.0
        %v2504 = vsel %vm2432, %v1540, 0.0
        %v2505 = vsel %vm2433, %v1543, 0.0
        %v2506 = vsel %vm2434, %v1546, 0.0
        %v2507 = vsel %vm2435, %v1549, 0.0
        %v2508 = vsel %vm2436, %v1552, 0.0
        %v2509 = vsel %vm2437, %v1555, 0.0
        %v2510 = vsel %vm2438, %v1558, 0.0
        %v2511 = vsel %vm2439, %v1561, 0.0
        %v2512 = vsel %vm2440, %v1564, 0.0
        %v2513 = vsel %vm2441, %v1567, 0.0
        %v2514 = vsel %vm2442, %v1570, 0.0
        %v2515 = vsel %vm2443, %v1573, 0.0
        %v2516 = vsel %vm2444, %v1576, 0.0
        %v2517 = vsel %vm2445, %v1579, 0.0
        %v2518 = vsel %vm2446, %v1582, 0.0
        %v2519 = vsel %vm2447, %v1585, 0.0
        %v2520 = vsel %vm2448, %v1588, 0.0
        %v2521 = vsel %vm2449, %v1591, 0.0
        %v2522 = vsel %vm2450, %v1594, 0.0
        %v2523 = vsel %vm2451, %v1597, 0.0
        %v2524 = vsel %vm2452, %v1600, 0.0
        %v2525 = vsel %vm2453, %v1603, 0.0
        %v2526 = vsel %vm2454, %v1606, 0.0
        %v2527 = vsel %vm2455, %v1609, 0.0
        %v2528 = vsel %vm2456, %v1612, 0.0
        %v2529 = vsel %vm2457, %v1615, 0.0
        %v2530 = vsel %vm2458, %v1618, 0.0
        %v2531 = vsel %vm2459, %v1621, 0.0
        %v2532 = vsel %vm2460, %v1624, 0.0
        %v2533 = vsel %vm2461, %v1627, 0.0
        %v2534 = vsel %vm2462, %v1630, 0.0
        %v2535 = vsel %vm2463, %v1633, 0.0
        %v2536 = vsel %vm2464, %v1636, 0.0
        %v2537 = vsel %vm2465, %v1639, 0.0
        %v2538 = vsel %vm2466, %v1642, 0.0
        %v2539 = vsel %vm2467, %v1645, 0.0
        %v2540 = vsel %vm2468, %v1648, 0.0
        %v2541 = vsel %vm2469, %v1651, 0.0
        %v2542 = vsel %vm2470, %v1654, 0.0
        %v2543 = vsel %vm2471, %v1657, 0.0
        %v2544 = vsel %vm2472, %v1660, 0.0
        %v2545 = vsel %vm2473, %v1663, 0.0
        %v2546 = vsel %vm2474, %v1666, 0.0
        %v2547 = vsel %vm2475, %v1669, 0.0
        %v2548 = vsel %vm2476, %v1672, 0.0
        %v2549 = vsel %vm2477, %v1675, 0.0
        %v2550 = vsel %vm2478, %v1678, 0.0
        %v2551 = vsel %vm2479, %v1681, 0.0
        %v2552 = vsel %vm2480, %v1684, 0.0
        %v2553 = vsel %vm2481, %v1687, 0.0
        %2626 = vrot.lane.b32.xlu0 %v2194, 64
        %v2627 = vpop.permute.xlu0 %2626
        %2628 = vrot.lane.b32.xlu0 %v2195, 64
        %v2629 = vpop.permute.xlu0 %2628
        %2630 = vrot.lane.b32.xlu0 %v2196, 64
        %v2631 = vpop.permute.xlu0 %2630
        %2632 = vrot.lane.b32.xlu0 %v2197, 64
        %v2633 = vpop.permute.xlu0 %2632
        %2634 = vrot.lane.b32.xlu0 %v2198, 64
        %v2635 = vpop.permute.xlu0 %2634
        %2636 = vrot.lane.b32.xlu0 %v2199, 64
        %v2637 = vpop.permute.xlu0 %2636
        %2638 = vrot.lane.b32.xlu0 %v2200, 64
        %v2639 = vpop.permute.xlu0 %2638
        %2640 = vrot.lane.b32.xlu0 %v2201, 64
        %v2641 = vpop.permute.xlu0 %2640
        %2642 = vrot.lane.b32.xlu0 %v2202, 64
        %v2643 = vpop.permute.xlu0 %2642
        %2644 = vrot.lane.b32.xlu0 %v2203, 64
        %v2645 = vpop.permute.xlu0 %2644
        %2646 = vrot.lane.b32.xlu0 %v2204, 64
        %v2647 = vpop.permute.xlu0 %2646
        %2648 = vrot.lane.b32.xlu0 %v2205, 64
        %v2649 = vpop.permute.xlu0 %2648
        %2650 = vrot.lane.b32.xlu0 %v2206, 64
        %v2651 = vpop.permute.xlu0 %2650
        %2652 = vrot.lane.b32.xlu0 %v2207, 64
        %v2653 = vpop.permute.xlu0 %2652
        %2654 = vrot.lane.b32.xlu0 %v2208, 64
        %v2655 = vpop.permute.xlu0 %2654
        %2656 = vrot.lane.b32.xlu0 %v2209, 64
        %v2657 = vpop.permute.xlu0 %2656
        %2658 = vrot.lane.b32.xlu0 %v2210, 64
        %v2659 = vpop.permute.xlu0 %2658
        %2660 = vrot.lane.b32.xlu0 %v2211, 64
        %v2661 = vpop.permute.xlu0 %2660
        %2662 = vrot.lane.b32.xlu0 %v2212, 64
        %v2663 = vpop.permute.xlu0 %2662
        %2664 = vrot.lane.b32.xlu0 %v2213, 64
        %v2665 = vpop.permute.xlu0 %2664
        %2666 = vrot.lane.b32.xlu0 %v2214, 64
        %v2667 = vpop.permute.xlu0 %2666
        %2668 = vrot.lane.b32.xlu0 %v2215, 64
        %v2669 = vpop.permute.xlu0 %2668
        %2670 = vrot.lane.b32.xlu0 %v2216, 64
        %v2671 = vpop.permute.xlu0 %2670
        %2672 = vrot.lane.b32.xlu0 %v2217, 64
        %v2673 = vpop.permute.xlu0 %2672
        %2674 = vrot.lane.b32.xlu0 %v2218, 64
        %v2675 = vpop.permute.xlu0 %2674
        %2676 = vrot.lane.b32.xlu0 %v2219, 64
        %v2677 = vpop.permute.xlu0 %2676
        %2678 = vrot.lane.b32.xlu0 %v2220, 64
        %v2679 = vpop.permute.xlu0 %2678
        %2680 = vrot.lane.b32.xlu0 %v2221, 64
        %v2681 = vpop.permute.xlu0 %2680
        %2682 = vrot.lane.b32.xlu0 %v2222, 64
        %v2683 = vpop.permute.xlu0 %2682
        %2684 = vrot.lane.b32.xlu0 %v2223, 64
        %v2685 = vpop.permute.xlu0 %2684
        %2686 = vrot.lane.b32.xlu0 %v2224, 64
        %v2687 = vpop.permute.xlu0 %2686
        %2688 = vrot.lane.b32.xlu0 %v2225, 64
        %v2689 = vpop.permute.xlu0 %2688
        %2690 = vrot.lane.b32.xlu0 %v2226, 64
        %v2691 = vpop.permute.xlu0 %2690
        %2692 = vrot.lane.b32.xlu0 %v2227, 64
        %v2693 = vpop.permute.xlu0 %2692
        %2694 = vrot.lane.b32.xlu0 %v2228, 64
        %v2695 = vpop.permute.xlu0 %2694
        %2696 = vrot.lane.b32.xlu0 %v2229, 64
        %v2697 = vpop.permute.xlu0 %2696
        %2698 = vrot.lane.b32.xlu0 %v2230, 64
        %v2699 = vpop.permute.xlu0 %2698
        %2700 = vrot.lane.b32.xlu0 %v2231, 64
        %v2701 = vpop.permute.xlu0 %2700
        %2702 = vrot.lane.b32.xlu0 %v2232, 64
        %v2703 = vpop.permute.xlu0 %2702
        %2704 = vrot.lane.b32.xlu0 %v2233, 64
        %v2705 = vpop.permute.xlu0 %2704
        %2706 = vrot.lane.b32.xlu0 %v2234, 64
        %v2707 = vpop.permute.xlu0 %2706
        %2708 = vrot.lane.b32.xlu0 %v2235, 64
        %v2709 = vpop.permute.xlu0 %2708
        %2710 = vrot.lane.b32.xlu0 %v2236, 64
        %v2711 = vpop.permute.xlu0 %2710
        %2712 = vrot.lane.b32.xlu0 %v2237, 64
        %v2713 = vpop.permute.xlu0 %2712
        %2714 = vrot.lane.b32.xlu0 %v2238, 64
        %v2715 = vpop.permute.xlu0 %2714
        %2716 = vrot.lane.b32.xlu0 %v2239, 64
        %v2717 = vpop.permute.xlu0 %2716
        %2718 = vrot.lane.b32.xlu0 %v2240, 64
        %v2719 = vpop.permute.xlu0 %2718
        %2720 = vrot.lane.b32.xlu0 %v2241, 64
        %v2721 = vpop.permute.xlu0 %2720
        %2722 = vrot.lane.b32.xlu0 %v2242, 64
        %v2723 = vpop.permute.xlu0 %2722
        %2724 = vrot.lane.b32.xlu0 %v2243, 64
        %v2725 = vpop.permute.xlu0 %2724
        %2726 = vrot.lane.b32.xlu0 %v2244, 64
        %v2727 = vpop.permute.xlu0 %2726
        %2728 = vrot.lane.b32.xlu0 %v2245, 64
        %v2729 = vpop.permute.xlu0 %2728
        %2730 = vrot.lane.b32.xlu0 %v2246, 64
        %v2731 = vpop.permute.xlu0 %2730
        %2732 = vrot.lane.b32.xlu0 %v2247, 64
        %v2733 = vpop.permute.xlu0 %2732
        %2734 = vrot.lane.b32.xlu0 %v2248, 64
        %v2735 = vpop.permute.xlu0 %2734
        %2736 = vrot.lane.b32.xlu0 %v2249, 64
        %v2737 = vpop.permute.xlu0 %2736
        %2738 = vrot.lane.b32.xlu0 %v2250, 64
        %v2739 = vpop.permute.xlu0 %2738
        %2740 = vrot.lane.b32.xlu0 %v2251, 64
        %v2741 = vpop.permute.xlu0 %2740
        %2742 = vrot.lane.b32.xlu0 %v2252, 64
        %v2743 = vpop.permute.xlu0 %2742
        %2744 = vrot.lane.b32.xlu0 %v2253, 64
        %v2745 = vpop.permute.xlu0 %2744
        %2746 = vrot.lane.b32.xlu0 %v2254, 64
        %v2747 = vpop.permute.xlu0 %2746
        %2748 = vrot.lane.b32.xlu0 %v2255, 64
        %v2749 = vpop.permute.xlu0 %2748
        %2750 = vrot.lane.b32.xlu0 %v2256, 64
        %v2751 = vpop.permute.xlu0 %2750
        %2752 = vrot.lane.b32.xlu0 %v2257, 64
        %v2753 = vpop.permute.xlu0 %2752
        %2754 = vrot.lane.b32.xlu0 %v2258, 64
        %v2755 = vpop.permute.xlu0 %2754
        %2756 = vrot.lane.b32.xlu0 %v2259, 64
        %v2757 = vpop.permute.xlu0 %2756
        %2758 = vrot.lane.b32.xlu0 %v2260, 64
        %v2759 = vpop.permute.xlu0 %2758
        %2760 = vrot.lane.b32.xlu0 %v2261, 64
        %v2761 = vpop.permute.xlu0 %2760
        %2762 = vrot.lane.b32.xlu0 %v2262, 64
        %v2763 = vpop.permute.xlu0 %2762
        %2764 = vrot.lane.b32.xlu0 %v2263, 64
        %v2765 = vpop.permute.xlu0 %2764
        %2766 = vrot.lane.b32.xlu0 %v2264, 64
        %v2767 = vpop.permute.xlu0 %2766
        %2768 = vrot.lane.b32.xlu0 %v2265, 64
        %v2769 = vpop.permute.xlu0 %2768
        %2914 = vrot.lane.b32.xlu0 %v2482, 64
        %v2915 = vpop.permute.xlu0 %2914
        %2916 = vrot.lane.b32.xlu0 %v2483, 64
        %v2917 = vpop.permute.xlu0 %2916
        %2918 = vrot.lane.b32.xlu0 %v2484, 64
        %v2919 = vpop.permute.xlu0 %2918
        %2920 = vrot.lane.b32.xlu0 %v2485, 64
        %v2921 = vpop.permute.xlu0 %2920
        %2922 = vrot.lane.b32.xlu0 %v2486, 64
        %v2923 = vpop.permute.xlu0 %2922
        %2924 = vrot.lane.b32.xlu0 %v2487, 64
        %v2925 = vpop.permute.xlu0 %2924
        %2926 = vrot.lane.b32.xlu0 %v2488, 64
        %v2927 = vpop.permute.xlu0 %2926
        %2928 = vrot.lane.b32.xlu0 %v2489, 64
        %v2929 = vpop.permute.xlu0 %2928
        %2930 = vrot.lane.b32.xlu0 %v2490, 64
        %v2931 = vpop.permute.xlu0 %2930
        %2932 = vrot.lane.b32.xlu0 %v2491, 64
        %v2933 = vpop.permute.xlu0 %2932
        %2934 = vrot.lane.b32.xlu0 %v2492, 64
        %v2935 = vpop.permute.xlu0 %2934
        %2936 = vrot.lane.b32.xlu0 %v2493, 64
        %v2937 = vpop.permute.xlu0 %2936
        %2938 = vrot.lane.b32.xlu0 %v2494, 64
        %v2939 = vpop.permute.xlu0 %2938
        %2940 = vrot.lane.b32.xlu0 %v2495, 64
        %v2941 = vpop.permute.xlu0 %2940
        %2942 = vrot.lane.b32.xlu0 %v2496, 64
        %v2943 = vpop.permute.xlu0 %2942
        %2944 = vrot.lane.b32.xlu0 %v2497, 64
        %v2945 = vpop.permute.xlu0 %2944
        %2946 = vrot.lane.b32.xlu0 %v2498, 64
        %v2947 = vpop.permute.xlu0 %2946
        %2948 = vrot.lane.b32.xlu0 %v2499, 64
        %v2949 = vpop.permute.xlu0 %2948
        %2950 = vrot.lane.b32.xlu0 %v2500, 64
        %v2951 = vpop.permute.xlu0 %2950
        %2952 = vrot.lane.b32.xlu0 %v2501, 64
        %v2953 = vpop.permute.xlu0 %2952
        %2954 = vrot.lane.b32.xlu0 %v2502, 64
        %v2955 = vpop.permute.xlu0 %2954
        %2956 = vrot.lane.b32.xlu0 %v2503, 64
        %v2957 = vpop.permute.xlu0 %2956
        %2958 = vrot.lane.b32.xlu0 %v2504, 64
        %v2959 = vpop.permute.xlu0 %2958
        %2960 = vrot.lane.b32.xlu0 %v2505, 64
        %v2961 = vpop.permute.xlu0 %2960
        %2962 = vrot.lane.b32.xlu0 %v2506, 64
        %v2963 = vpop.permute.xlu0 %2962
        %2964 = vrot.lane.b32.xlu0 %v2507, 64
        %v2965 = vpop.permute.xlu0 %2964
        %2966 = vrot.lane.b32.xlu0 %v2508, 64
        %v2967 = vpop.permute.xlu0 %2966
        %2968 = vrot.lane.b32.xlu0 %v2509, 64
        %v2969 = vpop.permute.xlu0 %2968
        %2970 = vrot.lane.b32.xlu0 %v2510, 64
        %v2971 = vpop.permute.xlu0 %2970
        %2972 = vrot.lane.b32.xlu0 %v2511, 64
        %v2973 = vpop.permute.xlu0 %2972
        %2974 = vrot.lane.b32.xlu0 %v2512, 64
        %v2975 = vpop.permute.xlu0 %2974
        %2976 = vrot.lane.b32.xlu0 %v2513, 64
        %v2977 = vpop.permute.xlu0 %2976
        %2978 = vrot.lane.b32.xlu0 %v2514, 64
        %v2979 = vpop.permute.xlu0 %2978
        %2980 = vrot.lane.b32.xlu0 %v2515, 64
        %v2981 = vpop.permute.xlu0 %2980
        %2982 = vrot.lane.b32.xlu0 %v2516, 64
        %v2983 = vpop.permute.xlu0 %2982
        %2984 = vrot.lane.b32.xlu0 %v2517, 64
        %v2985 = vpop.permute.xlu0 %2984
        %2986 = vrot.lane.b32.xlu0 %v2518, 64
        %v2987 = vpop.permute.xlu0 %2986
        %2988 = vrot.lane.b32.xlu0 %v2519, 64
        %v2989 = vpop.permute.xlu0 %2988
        %2990 = vrot.lane.b32.xlu0 %v2520, 64
        %v2991 = vpop.permute.xlu0 %2990
        %2992 = vrot.lane.b32.xlu0 %v2521, 64
        %v2993 = vpop.permute.xlu0 %2992
        %2994 = vrot.lane.b32.xlu0 %v2522, 64
        %v2995 = vpop.permute.xlu0 %2994
        %2996 = vrot.lane.b32.xlu0 %v2523, 64
        %v2997 = vpop.permute.xlu0 %2996
        %2998 = vrot.lane.b32.xlu0 %v2524, 64
        %v2999 = vpop.permute.xlu0 %2998
        %3000 = vrot.lane.b32.xlu0 %v2525, 64
        %v3001 = vpop.permute.xlu0 %3000
        %3002 = vrot.lane.b32.xlu0 %v2526, 64
        %v3003 = vpop.permute.xlu0 %3002
        %3004 = vrot.lane.b32.xlu0 %v2527, 64
        %v3005 = vpop.permute.xlu0 %3004
        %3006 = vrot.lane.b32.xlu0 %v2528, 64
        %v3007 = vpop.permute.xlu0 %3006
        %3008 = vrot.lane.b32.xlu0 %v2529, 64
        %v3009 = vpop.permute.xlu0 %3008
        %3010 = vrot.lane.b32.xlu0 %v2530, 64
        %v3011 = vpop.permute.xlu0 %3010
        %3012 = vrot.lane.b32.xlu0 %v2531, 64
        %v3013 = vpop.permute.xlu0 %3012
        %3014 = vrot.lane.b32.xlu0 %v2532, 64
        %v3015 = vpop.permute.xlu0 %3014
        %3016 = vrot.lane.b32.xlu0 %v2533, 64
        %v3017 = vpop.permute.xlu0 %3016
        %3018 = vrot.lane.b32.xlu0 %v2534, 64
        %v3019 = vpop.permute.xlu0 %3018
        %3020 = vrot.lane.b32.xlu0 %v2535, 64
        %v3021 = vpop.permute.xlu0 %3020
        %3022 = vrot.lane.b32.xlu0 %v2536, 64
        %v3023 = vpop.permute.xlu0 %3022
        %3024 = vrot.lane.b32.xlu0 %v2537, 64
        %v3025 = vpop.permute.xlu0 %3024
        %3026 = vrot.lane.b32.xlu0 %v2538, 64
        %v3027 = vpop.permute.xlu0 %3026
        %3028 = vrot.lane.b32.xlu0 %v2539, 64
        %v3029 = vpop.permute.xlu0 %3028
        %3030 = vrot.lane.b32.xlu0 %v2540, 64
        %v3031 = vpop.permute.xlu0 %3030
        %3032 = vrot.lane.b32.xlu0 %v2541, 64
        %v3033 = vpop.permute.xlu0 %3032
        %3034 = vrot.lane.b32.xlu0 %v2542, 64
        %v3035 = vpop.permute.xlu0 %3034
        %3036 = vrot.lane.b32.xlu0 %v2543, 64
        %v3037 = vpop.permute.xlu0 %3036
        %3038 = vrot.lane.b32.xlu0 %v2544, 64
        %v3039 = vpop.permute.xlu0 %3038
        %3040 = vrot.lane.b32.xlu0 %v2545, 64
        %v3041 = vpop.permute.xlu0 %3040
        %3042 = vrot.lane.b32.xlu0 %v2546, 64
        %v3043 = vpop.permute.xlu0 %3042
        %3044 = vrot.lane.b32.xlu0 %v2547, 64
        %v3045 = vpop.permute.xlu0 %3044
        %3046 = vrot.lane.b32.xlu0 %v2548, 64
        %v3047 = vpop.permute.xlu0 %3046
        %3048 = vrot.lane.b32.xlu0 %v2549, 64
        %v3049 = vpop.permute.xlu0 %3048
        %3050 = vrot.lane.b32.xlu0 %v2550, 64
        %v3051 = vpop.permute.xlu0 %3050
        %3052 = vrot.lane.b32.xlu0 %v2551, 64
        %v3053 = vpop.permute.xlu0 %3052
        %3054 = vrot.lane.b32.xlu0 %v2552, 64
        %v3055 = vpop.permute.xlu0 %3054
        %3056 = vrot.lane.b32.xlu0 %v2553, 64
        %v3057 = vpop.permute.xlu0 %3056
        %vm3130 = vcmask 523264
        %v3131 = vsel %vm3130, %v2050, %v2627
        %v3132 = vsel %vm3130, %v2051, %v2629
        %v3133 = vsel %vm3130, %v2052, %v2631
        %v3134 = vsel %vm3130, %v2053, %v2633
        %v3135 = vsel %vm3130, %v2054, %v2635
        %v3136 = vsel %vm3130, %v2055, %v2637
        %v3137 = vsel %vm3130, %v2056, %v2639
        %v3138 = vsel %vm3130, %v2057, %v2641
        %v3139 = vsel %vm3130, %v2058, %v2643
        %v3140 = vsel %vm3130, %v2059, %v2645
        %v3141 = vsel %vm3130, %v2060, %v2647
        %v3142 = vsel %vm3130, %v2061, %v2649
        %v3143 = vsel %vm3130, %v2062, %v2651
        %v3144 = vsel %vm3130, %v2063, %v2653
        %v3145 = vsel %vm3130, %v2064, %v2655
        %v3146 = vsel %vm3130, %v2065, %v2657
        %v3147 = vsel %vm3130, %v2066, %v2659
        %v3148 = vsel %vm3130, %v2067, %v2661
        %v3149 = vsel %vm3130, %v2068, %v2663
        %v3150 = vsel %vm3130, %v2069, %v2665
        %v3151 = vsel %vm3130, %v2070, %v2667
        %v3152 = vsel %vm3130, %v2071, %v2669
        %v3153 = vsel %vm3130, %v2072, %v2671
        %v3154 = vsel %vm3130, %v2073, %v2673
        %v3155 = vsel %vm3130, %v2074, %v2675
        %v3156 = vsel %vm3130, %v2075, %v2677
        %v3157 = vsel %vm3130, %v2076, %v2679
        %v3158 = vsel %vm3130, %v2077, %v2681
        %v3159 = vsel %vm3130, %v2078, %v2683
        %v3160 = vsel %vm3130, %v2079, %v2685
        %v3161 = vsel %vm3130, %v2080, %v2687
        %v3162 = vsel %vm3130, %v2081, %v2689
        %v3163 = vsel %vm3130, %v2082, %v2691
        %v3164 = vsel %vm3130, %v2083, %v2693
        %v3165 = vsel %vm3130, %v2084, %v2695
        %v3166 = vsel %vm3130, %v2085, %v2697
        %v3167 = vsel %vm3130, %v2086, %v2699
        %v3168 = vsel %vm3130, %v2087, %v2701
        %v3169 = vsel %vm3130, %v2088, %v2703
        %v3170 = vsel %vm3130, %v2089, %v2705
        %v3171 = vsel %vm3130, %v2090, %v2707
        %v3172 = vsel %vm3130, %v2091, %v2709
        %v3173 = vsel %vm3130, %v2092, %v2711
        %v3174 = vsel %vm3130, %v2093, %v2713
        %v3175 = vsel %vm3130, %v2094, %v2715
        %v3176 = vsel %vm3130, %v2095, %v2717
        %v3177 = vsel %vm3130, %v2096, %v2719
        %v3178 = vsel %vm3130, %v2097, %v2721
        %v3179 = vsel %vm3130, %v2098, %v2723
        %v3180 = vsel %vm3130, %v2099, %v2725
        %v3181 = vsel %vm3130, %v2100, %v2727
        %v3182 = vsel %vm3130, %v2101, %v2729
        %v3183 = vsel %vm3130, %v2102, %v2731
        %v3184 = vsel %vm3130, %v2103, %v2733
        %v3185 = vsel %vm3130, %v2104, %v2735
        %v3186 = vsel %vm3130, %v2105, %v2737
        %v3187 = vsel %vm3130, %v2106, %v2739
        %v3188 = vsel %vm3130, %v2107, %v2741
        %v3189 = vsel %vm3130, %v2108, %v2743
        %v3190 = vsel %vm3130, %v2109, %v2745
        %v3191 = vsel %vm3130, %v2110, %v2747
        %v3192 = vsel %vm3130, %v2111, %v2749
        %v3193 = vsel %vm3130, %v2112, %v2751
        %v3194 = vsel %vm3130, %v2113, %v2753
        %v3195 = vsel %vm3130, %v2114, %v2755
        %v3196 = vsel %vm3130, %v2115, %v2757
        %v3197 = vsel %vm3130, %v2116, %v2759
        %v3198 = vsel %vm3130, %v2117, %v2761
        %v3199 = vsel %vm3130, %v2118, %v2763
        %v3200 = vsel %vm3130, %v2119, %v2765
        %v3201 = vsel %vm3130, %v2120, %v2767
        %v3202 = vsel %vm3130, %v2121, %v2769
        %v3203 = vsel %vm3130, %v2338, %v2915
        %v3204 = vsel %vm3130, %v2339, %v2917
        %v3205 = vsel %vm3130, %v2340, %v2919
        %v3206 = vsel %vm3130, %v2341, %v2921
        %v3207 = vsel %vm3130, %v2342, %v2923
        %v3208 = vsel %vm3130, %v2343, %v2925
        %v3209 = vsel %vm3130, %v2344, %v2927
        %v3210 = vsel %vm3130, %v2345, %v2929
        %v3211 = vsel %vm3130, %v2346, %v2931
        %v3212 = vsel %vm3130, %v2347, %v2933
        %v3213 = vsel %vm3130, %v2348, %v2935
        %v3214 = vsel %vm3130, %v2349, %v2937
        %v3215 = vsel %vm3130, %v2350, %v2939
        %v3216 = vsel %vm3130, %v2351, %v2941
        %v3217 = vsel %vm3130, %v2352, %v2943
        %v3218 = vsel %vm3130, %v2353, %v2945
        %v3219 = vsel %vm3130, %v2354, %v2947
        %v3220 = vsel %vm3130, %v2355, %v2949
        %v3221 = vsel %vm3130, %v2356, %v2951
        %v3222 = vsel %vm3130, %v2357, %v2953
        %v3223 = vsel %vm3130, %v2358, %v2955
        %v3224 = vsel %vm3130, %v2359, %v2957
        %v3225 = vsel %vm3130, %v2360, %v2959
        %v3226 = vsel %vm3130, %v2361, %v2961
        %v3227 = vsel %vm3130, %v2362, %v2963
        %v3228 = vsel %vm3130, %v2363, %v2965
        %v3229 = vsel %vm3130, %v2364, %v2967
        %v3230 = vsel %vm3130, %v2365, %v2969
        %v3231 = vsel %vm3130, %v2366, %v2971
        %v3232 = vsel %vm3130, %v2367, %v2973
        %v3233 = vsel %vm3130, %v2368, %v2975
        %v3234 = vsel %vm3130, %v2369, %v2977
        %v3235 = vsel %vm3130, %v2370, %v2979
        %v3236 = vsel %vm3130, %v2371, %v2981
        %v3237 = vsel %vm3130, %v2372, %v2983
        %v3238 = vsel %vm3130, %v2373, %v2985
        %v3239 = vsel %vm3130, %v2374, %v2987
        %v3240 = vsel %vm3130, %v2375, %v2989
        %v3241 = vsel %vm3130, %v2376, %v2991
        %v3242 = vsel %vm3130, %v2377, %v2993
        %v3243 = vsel %vm3130, %v2378, %v2995
        %v3244 = vsel %vm3130, %v2379, %v2997
        %v3245 = vsel %vm3130, %v2380, %v2999
        %v3246 = vsel %vm3130, %v2381, %v3001
        %v3247 = vsel %vm3130, %v2382, %v3003
        %v3248 = vsel %vm3130, %v2383, %v3005
        %v3249 = vsel %vm3130, %v2384, %v3007
        %v3250 = vsel %vm3130, %v2385, %v3009
        %v3251 = vsel %vm3130, %v2386, %v3011
        %v3252 = vsel %vm3130, %v2387, %v3013
        %v3253 = vsel %vm3130, %v2388, %v3015
        %v3254 = vsel %vm3130, %v2389, %v3017
        %v3255 = vsel %vm3130, %v2390, %v3019
        %v3256 = vsel %vm3130, %v2391, %v3021
        %v3257 = vsel %vm3130, %v2392, %v3023
        %v3258 = vsel %vm3130, %v2393, %v3025
        %v3259 = vsel %vm3130, %v2394, %v3027
        %v3260 = vsel %vm3130, %v2395, %v3029
        %v3261 = vsel %vm3130, %v2396, %v3031
        %v3262 = vsel %vm3130, %v2397, %v3033
        %v3263 = vsel %vm3130, %v2398, %v3035
        %v3264 = vsel %vm3130, %v2399, %v3037
        %v3265 = vsel %vm3130, %v2400, %v3039
        %v3266 = vsel %vm3130, %v2401, %v3041
        %v3267 = vsel %vm3130, %v2402, %v3043
        %v3268 = vsel %vm3130, %v2403, %v3045
        %v3269 = vsel %vm3130, %v2404, %v3047
        %v3270 = vsel %vm3130, %v2405, %v3049
        %v3271 = vsel %vm3130, %v2406, %v3051
        %v3272 = vsel %vm3130, %v2407, %v3053
        %v3273 = vsel %vm3130, %v2408, %v3055
        %v3274 = vsel %vm3130, %v2409, %v3057
        %3275 = vst [vmem:[%s223] sm:$0xff] %v3131
        %3276 = vst [vmem:[%s223 + $0x8] sm:$0xff] %v3203
        %3277 = vst [vmem:[%s223 + $0x10] sm:$0xff] %v3132
        %3278 = vst [vmem:[%s223 + $0x18] sm:$0xff] %v3204
        %3279 = vst [vmem:[%s223 + $0x20] sm:$0xff] %v3133
        %3280 = vst [vmem:[%s223 + $0x28] sm:$0xff] %v3205
        %3281 = vst [vmem:[%s223 + $0x30] sm:$0xff] %v3134
        %3282 = vst [vmem:[%s223 + $0x38] sm:$0xff] %v3206
        %3283 = vst [vmem:[%s223 + $0x40] sm:$0xff] %v3135
        %3284 = vst [vmem:[%s223 + $0x48] sm:$0xff] %v3207
        %3285 = vst [vmem:[%s223 + $0x50] sm:$0xff] %v3136
        %3286 = vst [vmem:[%s223 + $0x58] sm:$0xff] %v3208
        %3287 = vst [vmem:[%s223 + $0x60] sm:$0xff] %v3137
        %3288 = vst [vmem:[%s223 + $0x68] sm:$0xff] %v3209
        %3289 = vst [vmem:[%s223 + $0x70] sm:$0xff] %v3138
        %3290 = vst [vmem:[%s223 + $0x78] sm:$0xff] %v3210
        %3291 = vst [vmem:[%s223 + $0x80] sm:$0xff] %v3139
        %3292 = vst [vmem:[%s223 + $0x88] sm:$0xff] %v3211
        %3293 = vst [vmem:[%s223 + $0x90] sm:$0xff] %v3140
        %3294 = vst [vmem:[%s223 + $0x98] sm:$0xff] %v3212
        %3295 = vst [vmem:[%s223 + $0xa0] sm:$0xff] %v3141
        %3296 = vst [vmem:[%s223 + $0xa8] sm:$0xff] %v3213
        %3297 = vst [vmem:[%s223 + $0xb0] sm:$0xff] %v3142
        %3298 = vst [vmem:[%s223 + $0xb8] sm:$0xff] %v3214
        %3299 = vst [vmem:[%s223 + $0xc0] sm:$0xff] %v3143
        %3300 = vst [vmem:[%s223 + $0xc8] sm:$0xff] %v3215
        %3301 = vst [vmem:[%s223 + $0xd0] sm:$0xff] %v3144
        %3302 = vst [vmem:[%s223 + $0xd8] sm:$0xff] %v3216
        %3303 = vst [vmem:[%s223 + $0xe0] sm:$0xff] %v3145
        %3304 = vst [vmem:[%s223 + $0xe8] sm:$0xff] %v3217
        %3305 = vst [vmem:[%s223 + $0xf0] sm:$0xff] %v3146
        %3306 = vst [vmem:[%s223 + $0xf8] sm:$0xff] %v3218
        %3307 = vst [vmem:[%s223 + $0x100] sm:$0xff] %v3147
        %3308 = vst [vmem:[%s223 + $0x108] sm:$0xff] %v3219
        %3309 = vst [vmem:[%s223 + $0x110] sm:$0xff] %v3148
        %3310 = vst [vmem:[%s223 + $0x118] sm:$0xff] %v3220
        %3311 = vst [vmem:[%s223 + $0x120] sm:$0xff] %v3149
        %3312 = vst [vmem:[%s223 + $0x128] sm:$0xff] %v3221
        %3313 = vst [vmem:[%s223 + $0x130] sm:$0xff] %v3150
        %3314 = vst [vmem:[%s223 + $0x138] sm:$0xff] %v3222
        %3315 = vst [vmem:[%s223 + $0x140] sm:$0xff] %v3151
        %3316 = vst [vmem:[%s223 + $0x148] sm:$0xff] %v3223
        %3317 = vst [vmem:[%s223 + $0x150] sm:$0xff] %v3152
        %3318 = vst [vmem:[%s223 + $0x158] sm:$0xff] %v3224
        %3319 = vst [vmem:[%s223 + $0x160] sm:$0xff] %v3153
        %3320 = vst [vmem:[%s223 + $0x168] sm:$0xff] %v3225
        %3321 = vst [vmem:[%s223 + $0x170] sm:$0xff] %v3154
        %3322 = vst [vmem:[%s223 + $0x178] sm:$0xff] %v3226
        %3323 = vst [vmem:[%s223 + $0x180] sm:$0xff] %v3155
        %3324 = vst [vmem:[%s223 + $0x188] sm:$0xff] %v3227
        %3325 = vst [vmem:[%s223 + $0x190] sm:$0xff] %v3156
        %3326 = vst [vmem:[%s223 + $0x198] sm:$0xff] %v3228
        %3327 = vst [vmem:[%s223 + $0x1a0] sm:$0xff] %v3157
        %3328 = vst [vmem:[%s223 + $0x1a8] sm:$0xff] %v3229
        %3329 = vst [vmem:[%s223 + $0x1b0] sm:$0xff] %v3158
        %3330 = vst [vmem:[%s223 + $0x1b8] sm:$0xff] %v3230
        %3331 = vst [vmem:[%s223 + $0x1c0] sm:$0xff] %v3159
        %3332 = vst [vmem:[%s223 + $0x1c8] sm:$0xff] %v3231
        %3333 = vst [vmem:[%s223 + $0x1d0] sm:$0xff] %v3160
        %3334 = vst [vmem:[%s223 + $0x1d8] sm:$0xff] %v3232
        %3335 = vst [vmem:[%s223 + $0x1e0] sm:$0xff] %v3161
        %3336 = vst [vmem:[%s223 + $0x1e8] sm:$0xff] %v3233
        %3337 = vst [vmem:[%s223 + $0x1f0] sm:$0xff] %v3162
        %3338 = vst [vmem:[%s223 + $0x1f8] sm:$0xff] %v3234
        %3339 = vst [vmem:[%s223 + $0x200] sm:$0xff] %v3163
        %3340 = vst [vmem:[%s223 + $0x208] sm:$0xff] %v3235
        %3341 = vst [vmem:[%s223 + $0x210] sm:$0xff] %v3164
        %3342 = vst [vmem:[%s223 + $0x218] sm:$0xff] %v3236
        %3343 = vst [vmem:[%s223 + $0x220] sm:$0xff] %v3165
        %3344 = vst [vmem:[%s223 + $0x228] sm:$0xff] %v3237
        %3345 = vst [vmem:[%s223 + $0x230] sm:$0xff] %v3166
        %3346 = vst [vmem:[%s223 + $0x238] sm:$0xff] %v3238
        %3347 = vst [vmem:[%s223 + $0x240] sm:$0xff] %v3167
        %3348 = vst [vmem:[%s223 + $0x248] sm:$0xff] %v3239
        %3349 = vst [vmem:[%s223 + $0x250] sm:$0xff] %v3168
        %3350 = vst [vmem:[%s223 + $0x258] sm:$0xff] %v3240
        %3351 = vst [vmem:[%s223 + $0x260] sm:$0xff] %v3169
        %3352 = vst [vmem:[%s223 + $0x268] sm:$0xff] %v3241
        %3353 = vst [vmem:[%s223 + $0x270] sm:$0xff] %v3170
        %3354 = vst [vmem:[%s223 + $0x278] sm:$0xff] %v3242
        %3355 = vst [vmem:[%s223 + $0x280] sm:$0xff] %v3171
        %3356 = vst [vmem:[%s223 + $0x288] sm:$0xff] %v3243
        %3357 = vst [vmem:[%s223 + $0x290] sm:$0xff] %v3172
        %3358 = vst [vmem:[%s223 + $0x298] sm:$0xff] %v3244
        %3359 = vst [vmem:[%s223 + $0x2a0] sm:$0xff] %v3173
        %3360 = vst [vmem:[%s223 + $0x2a8] sm:$0xff] %v3245
        %3361 = vst [vmem:[%s223 + $0x2b0] sm:$0xff] %v3174
        %3362 = vst [vmem:[%s223 + $0x2b8] sm:$0xff] %v3246
        %3363 = vst [vmem:[%s223 + $0x2c0] sm:$0xff] %v3175
        %3364 = vst [vmem:[%s223 + $0x2c8] sm:$0xff] %v3247
        %3365 = vst [vmem:[%s223 + $0x2d0] sm:$0xff] %v3176
        %3366 = vst [vmem:[%s223 + $0x2d8] sm:$0xff] %v3248
        %3367 = vst [vmem:[%s223 + $0x2e0] sm:$0xff] %v3177
        %3368 = vst [vmem:[%s223 + $0x2e8] sm:$0xff] %v3249
        %3369 = vst [vmem:[%s223 + $0x2f0] sm:$0xff] %v3178
        %3370 = vst [vmem:[%s223 + $0x2f8] sm:$0xff] %v3250
        %3371 = vst [vmem:[%s223 + $0x300] sm:$0xff] %v3179
        %3372 = vst [vmem:[%s223 + $0x308] sm:$0xff] %v3251
        %3373 = vst [vmem:[%s223 + $0x310] sm:$0xff] %v3180
        %3374 = vst [vmem:[%s223 + $0x318] sm:$0xff] %v3252
        %3375 = vst [vmem:[%s223 + $0x320] sm:$0xff] %v3181
        %3376 = vst [vmem:[%s223 + $0x328] sm:$0xff] %v3253
        %3377 = vst [vmem:[%s223 + $0x330] sm:$0xff] %v3182
        %3378 = vst [vmem:[%s223 + $0x338] sm:$0xff] %v3254
        %3379 = vst [vmem:[%s223 + $0x340] sm:$0xff] %v3183
        %3380 = vst [vmem:[%s223 + $0x348] sm:$0xff] %v3255
        %3381 = vst [vmem:[%s223 + $0x350] sm:$0xff] %v3184
        %3382 = vst [vmem:[%s223 + $0x358] sm:$0xff] %v3256
        %3383 = vst [vmem:[%s223 + $0x360] sm:$0xff] %v3185
        %3384 = vst [vmem:[%s223 + $0x368] sm:$0xff] %v3257
        %3385 = vst [vmem:[%s223 + $0x370] sm:$0xff] %v3186
        %3386 = vst [vmem:[%s223 + $0x378] sm:$0xff] %v3258
        %3387 = vst [vmem:[%s223 + $0x380] sm:$0xff] %v3187
        %3388 = vst [vmem:[%s223 + $0x388] sm:$0xff] %v3259
        %3389 = vst [vmem:[%s223 + $0x390] sm:$0xff] %v3188
        %3390 = vst [vmem:[%s223 + $0x398] sm:$0xff] %v3260
        %3391 = vst [vmem:[%s223 + $0x3a0] sm:$0xff] %v3189
        %3392 = vst [vmem:[%s223 + $0x3a8] sm:$0xff] %v3261
        %3393 = vst [vmem:[%s223 + $0x3b0] sm:$0xff] %v3190
        %3394 = vst [vmem:[%s223 + $0x3b8] sm:$0xff] %v3262
        %3395 = vst [vmem:[%s223 + $0x3c0] sm:$0xff] %v3191
        %3396 = vst [vmem:[%s223 + $0x3c8] sm:$0xff] %v3263
        %3397 = vst [vmem:[%s223 + $0x3d0] sm:$0xff] %v3192
        %3398 = vst [vmem:[%s223 + $0x3d8] sm:$0xff] %v3264
        %3399 = vst [vmem:[%s223 + $0x3e0] sm:$0xff] %v3193
        %3400 = vst [vmem:[%s223 + $0x3e8] sm:$0xff] %v3265
        %3401 = vst [vmem:[%s223 + $0x3f0] sm:$0xff] %v3194
        %3402 = vst [vmem:[%s223 + $0x3f8] sm:$0xff] %v3266
        %3403 = vst [vmem:[%s223 + $0x400] sm:$0xff] %v3195
        %3404 = vst [vmem:[%s223 + $0x408] sm:$0xff] %v3267
        %3405 = vst [vmem:[%s223 + $0x410] sm:$0xff] %v3196
        %3406 = vst [vmem:[%s223 + $0x418] sm:$0xff] %v3268
        %3407 = vst [vmem:[%s223 + $0x420] sm:$0xff] %v3197
        %3408 = vst [vmem:[%s223 + $0x428] sm:$0xff] %v3269
        %3409 = vst [vmem:[%s223 + $0x430] sm:$0xff] %v3198
        %3410 = vst [vmem:[%s223 + $0x438] sm:$0xff] %v3270
        %3411 = vst [vmem:[%s223 + $0x440] sm:$0xff] %v3199
        %3412 = vst [vmem:[%s223 + $0x448] sm:$0xff] %v3271
        %3413 = vst [vmem:[%s223 + $0x450] sm:$0xff] %v3200
        %3414 = vst [vmem:[%s223 + $0x458] sm:$0xff] %v3272
        %3415 = vst [vmem:[%s223 + $0x460] sm:$0xff] %v3201
        %3416 = vst [vmem:[%s223 + $0x468] sm:$0xff] %v3273
        %3417 = vst [vmem:[%s223 + $0x470] sm:$0xff] %v3202
        %3418 = vst [vmem:[%s223 + $0x478] sm:$0xff] %v3274
        %s3419 = sand.u32 %s125, 1
        %s3420 = scalar_lea.sflag [#allocation3], %s3419
        %s3421 = sand.u32 %s125, 1
        %s3422 = smul.addr %s3421, 1152
        %s3423 = scalar_lea.vmem [#allocation2], %s3422
        // Predicated region
        $region37: #{tpu_custom_call.1} parent=35 // pred_check
          %p3424 = pneg %p135
        $region38: #{tpu_custom_call.1} parent=35 // pred_check_branch
          %3426 = sbr.rel (%p3424) target = $region40
        $region39: #{tpu_custom_call.1} parent=35 // pred_region
          %s3427 = smul.u32 72, %s18
          %s3429 = ssub.s32 18432, 18432
          %3430 = vsyncadd %s3420, %s3429
          %s3431 = smul.addr %s3427, 2
          %s3432 = smul.addr %s3431, 128
          %s3433 = scalar_lea.hbm %s4, %s3432
          %s3434 = sshll.u32 %s3423, 4
          %s3435 = int_to_ptr.vmem [resolvable:$true] %s3434
          %3440 = dma.vmem_to_hbm [thread:$0]  %s3435, 18432, %s3433, %s3420, 256, 256, 16
        $region40: #{tpu_custom_call.1} parent=35 // pred_fallthru
          _
      $region36: #{tpu_custom_call.1} parent=5 // pred_fallthru
        _
      %p3441 = scmp.le.s32.totalorder 2, %s13
      // Predicated region
      $region41: #{tpu_custom_call.1} parent=5 // pred_check
        %p3442 = pneg %p3441
      $region42: #{tpu_custom_call.1} parent=5 // pred_check_branch
        %3444 = sbr.rel (%p3442) target = $region44
      $region43: #{tpu_custom_call.1} parent=5 // pred_region
        %s3445 = ssub.s32 %s13, 2
        // Predicated region
        $region45: #{tpu_custom_call.1} parent=43 // pred_check
          %p3446 = pneg %p141
        $region46: #{tpu_custom_call.1} parent=43 // pred_check_branch
          %3448 = sbr.rel (%p3446) target = $region48
        $region47: #{tpu_custom_call.1} parent=43 // pred_region
          %s3449 = sand.u32 %s126, 1
          %s3450 = scalar_lea.sflag [#allocation3], %s3449
          %s3451 = sand.u32 %s126, 1
          %s3452 = smul.addr %s3451, 1152
          %s3453 = scalar_lea.vmem [#allocation2], %s3452
          %3454 = dma.done %s3450, 18432
        $region48: #{tpu_custom_call.1} parent=43 // pred_fallthru
          _
      $region44: #{tpu_custom_call.1} parent=5 // pred_fallthru
        _
    $region6: #{tpu_custom_call.1} parent=1 // loop_footer
      %s17 = sadd.s32 1, %s13
    $region7: #{tpu_custom_call.1} parent=1 // loop_footer_branch
      %12 = sbr.rel target = $region3
    $region8: #{tpu_custom_call.1} parent=1 // loop_exit
      _
    %3455 = vsyncpa [#allocation3], 1
    %s3456 = scalar_lea.sflag [#allocation3], 1
    %3457 = vsyncpa %s3456, 1

</llo_original>
